<compile_context>
chip_gen: v6e
topology: v6e:2x2x1
jax: 0.10.0
libtpu: 0.0.40
codegen_flags: <defaults>
</compile_context>

<pallas_src>
import jax
import jax.numpy as jnp
from jax import lax
from jax.experimental import pallas as pl
from jax.experimental.pallas import tpu as pltpu

WORD_EMBED_DIM = 16
LSTM_OUT_DIM = 32          # H
HIDDEN_DIM = 32            # stored by the torch module but unused in forward
VOCAB_SIZE = 50
MEMBER_SIZE = 20
STATE_SIZE = 10
PARTY_SIZE = 4
GCN_TABLE_ROWS = MEMBER_SIZE + PARTY_SIZE + STATE_SIZE   # 34
MAX_SEQ = 32               # torch zero-pads the sentence to 32 tokens
BN_EPS = 1e-5
NORM_EPS = 1e-12

# ---- packed bf16 weight-slab layouts (built once in init_params) -----------
# slab A (bf16, (88, 4H=128)): rows 0:50   T = leg_emb @ W_ih^T
#                              row  50     b = b_ih + b_hh   (bias row)
#                              rows 51:56  zero pad (aligns next section)
#                              rows 56:88  W_hh^T
A_GX_ROWS = 56             # rows consumed by the augmented one-hot matmul
A_BIAS_ROW = VOCAB_SIZE    # 50
A_WHH_START = 56
A_ROWS = 88

# slab B (bf16, (160, 32)):    rows 0:34    block-diag member/party/state table
#                              rows 48:80   GCN W1^T (32,32)
#                              rows 80:112  GCN W2^T (32,32)
#                              rows 112:144 folded head W (32,3) in cols 0:3
#                              row  144     folded head bias in cols 0:3
B_TAB_ROWS = 48            # padded multi-hot width (>= 34, 16-aligned)
B_W1_START = 48
B_W2_START = 80
B_HW_START = 112
B_HB_ROW = 144
B_ROWS = 160

OUT_PAD_ROWS = 8           # merged output rows = n (gcn) + 1 (tail) + padding


# ------------------------------ fused kernel ------------------------------

def _fused_kernel(sent_ref, idx_ref, adj_ref, slab_a_ref, slab_b_ref, out_ref):
    H = LSTM_OUT_DIM
    f32 = jnp.float32
    bf16 = jnp.bfloat16
    n = adj_ref.shape[0]

    # ----------------------------- LSTM branch -----------------------------
    # Augmented one-hot: col j<50 selects row j of the pre-folded table
    # T = leg_emb @ W_ih^T; col 50 is a constant-1 column that adds the bias
    # row (b_ih + b_hh). Padded tokens carry a -1 sentinel -> zero embedding
    # contribution but the bias still applies (== torch zero-padding).
    iota_v = lax.broadcasted_iota(jnp.int32, (MAX_SEQ, A_GX_ROWS), 1)
    onehot = ((iota_v == sent_ref[...]) | (iota_v == A_BIAS_ROW)).astype(bf16)
    gx = jnp.dot(onehot, slab_a_ref[0:A_GX_ROWS, :],
                 preferred_element_type=f32)                      # (32, 4H) f32

    w_hh = slab_a_ref[A_WHH_START:A_ROWS, :]                      # (H, 4H) bf16

    h = jnp.zeros((1, H), f32)
    c = jnp.zeros((1, H), f32)
    for t in range(MAX_SEQ):            # fully unrolled serial recurrence
        gates = gx[t:t + 1, :] + jnp.dot(h.astype(bf16), w_hh,
                                         preferred_element_type=f32)  # (1,4H)
        s = jax.nn.sigmoid(gates)       # one full-vreg sigmoid (EUP)
        tg = jnp.tanh(gates)            # one full-vreg tanh (EUP)
        i = s[:, 0 * H:1 * H]
        f = s[:, 1 * H:2 * H]
        g = tg[:, 2 * H:3 * H]
        o = s[:, 3 * H:4 * H]
        c = f * c + i * g
        h = o * jnp.tanh(c)

    # normalized h_n (the mask_size expand happens outside the kernel)
    hn = h / jnp.maximum(jnp.sqrt(jnp.sum(h * h, axis=1, keepdims=True)),
                         NORM_EPS)

    # head on the UN-normalized h_n: folded mlp1∘mlp2 (exact, no ReLU between)
    head_w = slab_b_ref[B_HW_START:B_HW_START + H, :]             # (32,32) bf16
    head_b = slab_b_ref[B_HB_ROW:B_HB_ROW + 1, :].astype(f32)     # (1,32)
    logits = jnp.dot(h.astype(bf16), head_w,
                     preferred_element_type=f32) + head_b          # (1,32)
    lane = lax.broadcasted_iota(jnp.int32, (1, 32), 1)
    logits = jnp.where(lane < 3, logits, -1e30)    # only 3 real classes
    logits = logits - jnp.max(logits, axis=1, keepdims=True)
    e = jnp.exp(logits)
    vote32 = e / jnp.sum(e, axis=1, keepdims=True)  # lanes 0:3 = softmax, rest 0

    # ------------------------------ GCN branch ------------------------------
    # cat([member_emb, party_emb, state_emb], dim=1) as ONE multi-hot matmul
    # against the block-diagonal table (bf16 operands, exact for 0/1 multi-hot)
    iota_g = lax.broadcasted_iota(jnp.int32, (n, B_TAB_ROWS), 1)
    mh = ((iota_g == idx_ref[:, 0:1])
          | (iota_g == idx_ref[:, 1:2])
          | (iota_g == idx_ref[:, 2:3])).astype(bf16)
    x = jnp.dot(mh, slab_b_ref[0:B_TAB_ROWS, :],
                preferred_element_type=f32)                        # (n, 32)

    # BatchNorm1d with batch statistics (training mode), affine = identity
    mean = jnp.mean(x, axis=0, keepdims=True)
    var = jnp.mean((x - mean) ** 2, axis=0, keepdims=True)
    xbn = (x - mean) * lax.rsqrt(var + BN_EPS)

    # normalize(A): D^-1/2 (A+I) D^-1/2 applied only via row scalings:
    #   A_norm @ X == r * (A_hat @ (r * X)),  r = rowsum(A_hat)^-1/2
    row_i = lax.broadcasted_iota(jnp.int32, (n, n), 0)
    col_i = lax.broadcasted_iota(jnp.int32, (n, n), 1)
    a_hat = adj_ref[...] + (row_i == col_i).astype(f32)
    r = lax.rsqrt(jnp.sum(a_hat, axis=1, keepdims=True))           # (n, 1)
    a_bf = a_hat.astype(bf16)

    w1 = slab_b_ref[B_W1_START:B_W1_START + 32, :]                 # bf16
    w2 = slab_b_ref[B_W2_START:B_W2_START + 32, :]                 # bf16

    ax = r * jnp.dot(a_bf, (r * xbn).astype(bf16), preferred_element_type=f32)
    x1 = jnp.maximum(jnp.dot(ax.astype(bf16), w1,
                             preferred_element_type=f32), 0.0)
    ax1 = r * jnp.dot(a_bf, (r * x1).astype(bf16), preferred_element_type=f32)
    gout = jnp.dot(ax1.astype(bf16), w2, preferred_element_type=f32)

    # F.normalize(gcn_out): row-wise L2, eps=1e-12
    gnorm = jnp.sqrt(jnp.sum(gout * gout, axis=1, keepdims=True))
    gout = gout / jnp.maximum(gnorm, NORM_EPS)

    # ------------------ single lane-dense merged output --------------------
    # rows 0:n , cols 0:32  -> normalized gcn_out
    # row  n   , cols 0:32  -> normalized h_n
    # row  n   , cols 32:64 -> vote softmax (lanes 0:3 valid)
    top = jnp.concatenate([gout, jnp.zeros((n, 96), f32)], axis=1)         # (n,128)
    tail = jnp.concatenate([hn, vote32, jnp.zeros((1, 64), f32)], axis=1)  # (1,128)
    pad = jnp.zeros((out_ref.shape[0] - n - 1, 128), f32)
    out_ref[...] = jnp.concatenate([top, tail, pad], axis=0)


# ------------------------------ JAX wrapper -------------------------------

def _vmem():
    return pl.BlockSpec(memory_space=pltpu.MemorySpace.VMEM)


def init_params(key):
    ks = jax.random.split(key, 14)
    s = 0.1
    H, E = LSTM_OUT_DIM, WORD_EMBED_DIM
    f32 = jnp.float32

    leg_emb = jax.random.normal(ks[0], (VOCAB_SIZE, E), f32) * s
    w_ih_t = jax.random.normal(ks[1], (E, 4 * H), f32) * s    # W_ih^T, [i|f|g|o]
    w_hh_t = jax.random.normal(ks[2], (H, 4 * H), f32) * s    # W_hh^T
    b = (jax.random.normal(ks[3], (4 * H,), f32) * s
         + jax.random.normal(ks[4], (4 * H,), f32) * s)       # b_ih + b_hh

    member_emb = jax.random.normal(ks[5], (MEMBER_SIZE, 16), f32) * s
    party_emb = jax.random.normal(ks[6], (PARTY_SIZE, 8), f32) * s
    state_emb = jax.random.normal(ks[7], (STATE_SIZE, 8), f32) * s
    gcn_w1_t = jax.random.normal(ks[8], (32, 32), f32) * s
    gcn_w2_t = jax.random.normal(ks[9], (32, 32), f32) * s
    mlp1_w_t = jax.random.normal(ks[10], (H, H // 2), f32) * s
    mlp1_b = jax.random.normal(ks[11], (H // 2,), f32) * s
    mlp2_w_t = jax.random.normal(ks[12], (H // 2, 3), f32) * s
    mlp2_b = jax.random.normal(ks[13], (3,), f32) * s

    # ---- offline exact foldings (no nonlinearity in between) ----
    t_fused = leg_emb @ w_ih_t                                 # (50, 4H)
    head_w = mlp1_w_t @ mlp2_w_t                               # (32, 3)
    head_b = mlp1_b @ mlp2_w_t + mlp2_b                        # (3,)

    slab_a = jnp.zeros((A_ROWS, 4 * H), f32)
    slab_a = slab_a.at[0:VOCAB_SIZE, :].set(t_fused)
    slab_a = slab_a.at[A_BIAS_ROW, :].set(b)
    slab_a = slab_a.at[A_WHH_START:A_ROWS, :].set(w_hh_t)

    # block-diagonal combined embedding table == torch.cat([m, p, st], dim=1)
    gcn_tab = jnp.zeros((GCN_TABLE_ROWS, 32), f32)
    gcn_tab = gcn_tab.at[0:MEMBER_SIZE, 0:16].set(member_emb)
    gcn_tab = gcn_tab.at[MEMBER_SIZE:MEMBER_SIZE + PARTY_SIZE, 16:24].set(party_emb)
    gcn_tab = gcn_tab.at[MEMBER_SIZE + PARTY_SIZE:, 24:32].set(state_emb)

    slab_b = jnp.zeros((B_ROWS, 32), f32)
    slab_b = slab_b.at[0:GCN_TABLE_ROWS, :].set(gcn_tab)
    slab_b = slab_b.at[B_W1_START:B_W1_START + 32, :].set(gcn_w1_t)
    slab_b = slab_b.at[B_W2_START:B_W2_START + 32, :].set(gcn_w2_t)
    slab_b = slab_b.at[B_HW_START:B_HW_START + H, 0:3].set(head_w)
    slab_b = slab_b.at[B_HB_ROW, 0:3].set(head_b)

    return {"lstm_slab": slab_a.astype(jnp.bfloat16),
            "gcn_slab": slab_b.astype(jnp.bfloat16)}


def lg_lstm_gcn_forward(params, sentence, member_all, state_all, party_all,
                        mask_size, adjacent_matrix):
    seq_len = sentence.shape[0]          # static; torch assumes seq_len <= 32
    assert seq_len <= MAX_SEQ
    n = member_all.shape[0]

    # pad token indices to 32 with a -1 sentinel (zero one-hot row == torch's
    # zero-padded embeddings; the bias column still fires for padded rows)
    sent_pad = jnp.concatenate(
        [sentence.astype(jnp.int32),
         jnp.full((MAX_SEQ - seq_len,), -1, jnp.int32)]).reshape(MAX_SEQ, 1)

    # member / party / state indices packed into ONE int32 array with the
    # block-diagonal table offsets pre-applied (1 DMA instead of 3)
    gcn_idx = jnp.stack(
        [member_all.astype(jnp.int32),
         party_all.astype(jnp.int32) + MEMBER_SIZE,
         state_all.astype(jnp.int32) + MEMBER_SIZE + PARTY_SIZE], axis=1)

    out_rows = n + OUT_PAD_ROWS
    merged = pl.pallas_call(
        _fused_kernel,
        out_shape=jax.ShapeDtypeStruct((out_rows, 128), jnp.float32),
        in_specs=[_vmem()] * 5,
        out_specs=_vmem(),
    )(sent_pad, gcn_idx, adjacent_matrix.astype(jnp.float32),
      params["lstm_slab"], params["gcn_slab"])

    gcn_out = merged[:n, 0:32]
    hn = merged[n:n + 1, 0:32]                               # already normalized
    lstm_out = jnp.broadcast_to(hn, (mask_size, LSTM_OUT_DIM))
    vote_rate = merged[n:n + 1, 32:35]
    return gcn_out, lstm_out, vote_rate


if __name__ == "__main__":
    key = jax.random.PRNGKey(0)
    k_param, k_sent, k_mem, k_state, k_party, k_adj = jax.random.split(key, 6)

    params = init_params(k_param)

    seq_len = 8
    n_members = 16
    mask_size = 16

    sentence = jax.random.randint(k_sent, (seq_len,), 0, VOCAB_SIZE, jnp.int32)
    member_all = jax.random.randint(k_mem, (n_members,), 0, MEMBER_SIZE, jnp.int32)
    state_all = jax.random.randint(k_state, (n_members,), 0, STATE_SIZE, jnp.int32)
    party_all = jax.random.randint(k_party, (n_members,), 0, PARTY_SIZE, jnp.int32)

    # symmetric 0/1 adjacency (self-loop added inside the kernel's normalize)
    a_rand = jax.random.bernoulli(k_adj, 0.3, (n_members, n_members)).astype(jnp.float32)
    adjacent_matrix = jnp.maximum(a_rand, a_rand.T)

    gcn_out, lstm_out, vote_rate = lg_lstm_gcn_forward(
        params, sentence, member_all, state_all, party_all, mask_size,
        adjacent_matrix)

    jax.block_until_ready((gcn_out, lstm_out, vote_rate))
    assert gcn_out.shape == (n_members, 32)
    assert lstm_out.shape == (mask_size, LSTM_OUT_DIM)
    assert vote_rate.shape == (1, 3)
    print("KERNEL_OK")
</pallas_src>

<mosaic_0001>
module attributes {stable_mosaic.version = 11 : i64} {
  func.func @_fused_kernel(%arg0: memref<32x1xi32, #tpu.memory_space<vmem>>, %arg1: memref<16x3xi32, #tpu.memory_space<vmem>>, %arg2: memref<16x16xf32, #tpu.memory_space<vmem>>, %arg3: memref<88x128xbf16, #tpu.memory_space<vmem>>, %arg4: memref<160x32xbf16, #tpu.memory_space<vmem>>, %arg5: memref<24x128xf32, #tpu.memory_space<vmem>>) attributes {dimension_semantics = [], scalar_prefetch = 0 : i64, scratch_operands = 0 : i64, tpu.core_type = #tpu.core_type<tc>} {
    %0 = tpu.iota {dimensions = array<i32: 1>} : vector<32x56xi32>
    %c0 = arith.constant 0 : index
    %c0_0 = arith.constant 0 : index
    %1 = vector.load %arg0[%c0, %c0_0] : memref<32x1xi32, #tpu.memory_space<vmem>>, vector<32x1xi32>
    %2 = vector.broadcast %1 : vector<32x1xi32> to vector<32x56xi32>
    %3 = arith.cmpi eq, %0, %2 : vector<32x56xi32>
    %c50_i32 = arith.constant 50 : i32
    %4 = vector.broadcast %c50_i32 : i32 to vector<32x56xi32>
    %5 = arith.cmpi eq, %0, %4 : vector<32x56xi32>
    %6 = arith.ori %3, %5 : vector<32x56xi1>
    %7 = arith.extui %6 : vector<32x56xi1> to vector<32x56xi32>
    %8 = arith.sitofp %7 : vector<32x56xi32> to vector<32x56xf32>
    %9 = arith.truncf %8 : vector<32x56xf32> to vector<32x56xbf16>
    %c0_1 = arith.constant 0 : index
    %c0_2 = arith.constant 0 : index
    %10 = vector.load %arg3[%c0_1, %c0_2] : memref<88x128xbf16, #tpu.memory_space<vmem>>, vector<56x128xbf16>
    %cst = arith.constant dense<0.000000e+00> : vector<32x128xf32>
    %11 = tpu.matmul %9, %10, %cst {dimension_numbers = #tpu.dot_dimension_numbers<[1], [0], [0], [1], [0, 0, 1, 1], [], []>} : vector<32x56xbf16>, vector<56x128xbf16>, vector<32x128xf32> -> vector<32x128xf32>
    %c56 = arith.constant 56 : index
    %c0_3 = arith.constant 0 : index
    %12 = vector.load %arg3[%c56, %c0_3] : memref<88x128xbf16, #tpu.memory_space<vmem>>, vector<32x128xbf16>
    %cst_4 = arith.constant 0.000000e+00 : f32
    %13 = vector.broadcast %cst_4 : f32 to vector<1x32xf32>
    %cst_5 = arith.constant 0.000000e+00 : f32
    %14 = vector.broadcast %cst_5 : f32 to vector<1x32xf32>
    %15 = vector.extract_strided_slice %11 {offsets = [0, 0], sizes = [1, 128], strides = [1, 1]} : vector<32x128xf32> to vector<1x128xf32>
    %16 = arith.truncf %13 : vector<1x32xf32> to vector<1x32xbf16>
    %cst_6 = arith.constant dense<0.000000e+00> : vector<1x128xf32>
    %17 = tpu.matmul %16, %12, %cst_6 {dimension_numbers = #tpu.dot_dimension_numbers<[1], [0], [0], [1], [0, 0, 1, 1], [], []>} : vector<1x32xbf16>, vector<32x128xbf16>, vector<1x128xf32> -> vector<1x128xf32>
    %18 = arith.addf %15, %17 : vector<1x128xf32>
    %19 = arith.negf %18 : vector<1x128xf32>
    %20 = math.exp %19 : vector<1x128xf32>
    %cst_7 = arith.constant 1.000000e+00 : f32
    %21 = vector.broadcast %cst_7 : f32 to vector<1x128xf32>
    %22 = arith.addf %21, %20 : vector<1x128xf32>
    %23 = arith.divf %21, %22 : vector<1x128xf32>
    %24 = math.tanh %18 : vector<1x128xf32>
    %25 = vector.extract_strided_slice %23 {offsets = [0, 0], sizes = [1, 32], strides = [1, 1]} : vector<1x128xf32> to vector<1x32xf32>
    %26 = vector.extract_strided_slice %23 {offsets = [0, 32], sizes = [1, 32], strides = [1, 1]} : vector<1x128xf32> to vector<1x32xf32>
    %27 = vector.extract_strided_slice %24 {offsets = [0, 64], sizes = [1, 32], strides = [1, 1]} : vector<1x128xf32> to vector<1x32xf32>
    %28 = vector.extract_strided_slice %23 {offsets = [0, 96], sizes = [1, 32], strides = [1, 1]} : vector<1x128xf32> to vector<1x32xf32>
    %29 = arith.mulf %26, %14 : vector<1x32xf32>
    %30 = arith.mulf %25, %27 : vector<1x32xf32>
    %31 = arith.addf %29, %30 : vector<1x32xf32>
    %32 = math.tanh %31 : vector<1x32xf32>
    %33 = arith.mulf %28, %32 : vector<1x32xf32>
    %34 = vector.extract_strided_slice %11 {offsets = [1, 0], sizes = [1, 128], strides = [1, 1]} : vector<32x128xf32> to vector<1x128xf32>
    %35 = arith.truncf %33 : vector<1x32xf32> to vector<1x32xbf16>
    %cst_8 = arith.constant dense<0.000000e+00> : vector<1x128xf32>
    %36 = tpu.matmul %35, %12, %cst_8 {dimension_numbers = #tpu.dot_dimension_numbers<[1], [0], [0], [1], [0, 0, 1, 1], [], []>} : vector<1x32xbf16>, vector<32x128xbf16>, vector<1x128xf32> -> vector<1x128xf32>
    %37 = arith.addf %34, %36 : vector<1x128xf32>
    %38 = arith.negf %37 : vector<1x128xf32>
    %39 = math.exp %38 : vector<1x128xf32>
    %cst_9 = arith.constant 1.000000e+00 : f32
    %40 = vector.broadcast %cst_9 : f32 to vector<1x128xf32>
    %41 = arith.addf %40, %39 : vector<1x128xf32>
    %42 = arith.divf %40, %41 : vector<1x128xf32>
    %43 = math.tanh %37 : vector<1x128xf32>
    %44 = vector.extract_strided_slice %42 {offsets = [0, 0], sizes = [1, 32], strides = [1, 1]} : vector<1x128xf32> to vector<1x32xf32>
    %45 = vector.extract_strided_slice %42 {offsets = [0, 32], sizes = [1, 32], strides = [1, 1]} : vector<1x128xf32> to vector<1x32xf32>
    %46 = vector.extract_strided_slice %43 {offsets = [0, 64], sizes = [1, 32], strides = [1, 1]} : vector<1x128xf32> to vector<1x32xf32>
    %47 = vector.extract_strided_slice %42 {offsets = [0, 96], sizes = [1, 32], strides = [1, 1]} : vector<1x128xf32> to vector<1x32xf32>
    %48 = arith.mulf %45, %31 : vector<1x32xf32>
    %49 = arith.mulf %44, %46 : vector<1x32xf32>
    %50 = arith.addf %48, %49 : vector<1x32xf32>
    %51 = math.tanh %50 : vector<1x32xf32>
    %52 = arith.mulf %47, %51 : vector<1x32xf32>
    %53 = vector.extract_strided_slice %11 {offsets = [2, 0], sizes = [1, 128], strides = [1, 1]} : vector<32x128xf32> to vector<1x128xf32>
    %54 = arith.truncf %52 : vector<1x32xf32> to vector<1x32xbf16>
    %cst_10 = arith.constant dense<0.000000e+00> : vector<1x128xf32>
    %55 = tpu.matmul %54, %12, %cst_10 {dimension_numbers = #tpu.dot_dimension_numbers<[1], [0], [0], [1], [0, 0, 1, 1], [], []>} : vector<1x32xbf16>, vector<32x128xbf16>, vector<1x128xf32> -> vector<1x128xf32>
    %56 = arith.addf %53, %55 : vector<1x128xf32>
    %57 = arith.negf %56 : vector<1x128xf32>
    %58 = math.exp %57 : vector<1x128xf32>
    %cst_11 = arith.constant 1.000000e+00 : f32
    %59 = vector.broadcast %cst_11 : f32 to vector<1x128xf32>
    %60 = arith.addf %59, %58 : vector<1x128xf32>
    %61 = arith.divf %59, %60 : vector<1x128xf32>
    %62 = math.tanh %56 : vector<1x128xf32>
    %63 = vector.extract_strided_slice %61 {offsets = [0, 0], sizes = [1, 32], strides = [1, 1]} : vector<1x128xf32> to vector<1x32xf32>
    %64 = vector.extract_strided_slice %61 {offsets = [0, 32], sizes = [1, 32], strides = [1, 1]} : vector<1x128xf32> to vector<1x32xf32>
    %65 = vector.extract_strided_slice %62 {offsets = [0, 64], sizes = [1, 32], strides = [1, 1]} : vector<1x128xf32> to vector<1x32xf32>
    %66 = vector.extract_strided_slice %61 {offsets = [0, 96], sizes = [1, 32], strides = [1, 1]} : vector<1x128xf32> to vector<1x32xf32>
    %67 = arith.mulf %64, %50 : vector<1x32xf32>
    %68 = arith.mulf %63, %65 : vector<1x32xf32>
    %69 = arith.addf %67, %68 : vector<1x32xf32>
    %70 = math.tanh %69 : vector<1x32xf32>
    %71 = arith.mulf %66, %70 : vector<1x32xf32>
    %72 = vector.extract_strided_slice %11 {offsets = [3, 0], sizes = [1, 128], strides = [1, 1]} : vector<32x128xf32> to vector<1x128xf32>
    %73 = arith.truncf %71 : vector<1x32xf32> to vector<1x32xbf16>
    %cst_12 = arith.constant dense<0.000000e+00> : vector<1x128xf32>
    %74 = tpu.matmul %73, %12, %cst_12 {dimension_numbers = #tpu.dot_dimension_numbers<[1], [0], [0], [1], [0, 0, 1, 1], [], []>} : vector<1x32xbf16>, vector<32x128xbf16>, vector<1x128xf32> -> vector<1x128xf32>
    %75 = arith.addf %72, %74 : vector<1x128xf32>
    %76 = arith.negf %75 : vector<1x128xf32>
    %77 = math.exp %76 : vector<1x128xf32>
    %cst_13 = arith.constant 1.000000e+00 : f32
    %78 = vector.broadcast %cst_13 : f32 to vector<1x128xf32>
    %79 = arith.addf %78, %77 : vector<1x128xf32>
    %80 = arith.divf %78, %79 : vector<1x128xf32>
    %81 = math.tanh %75 : vector<1x128xf32>
    %82 = vector.extract_strided_slice %80 {offsets = [0, 0], sizes = [1, 32], strides = [1, 1]} : vector<1x128xf32> to vector<1x32xf32>
    %83 = vector.extract_strided_slice %80 {offsets = [0, 32], sizes = [1, 32], strides = [1, 1]} : vector<1x128xf32> to vector<1x32xf32>
    %84 = vector.extract_strided_slice %81 {offsets = [0, 64], sizes = [1, 32], strides = [1, 1]} : vector<1x128xf32> to vector<1x32xf32>
    %85 = vector.extract_strided_slice %80 {offsets = [0, 96], sizes = [1, 32], strides = [1, 1]} : vector<1x128xf32> to vector<1x32xf32>
    %86 = arith.mulf %83, %69 : vector<1x32xf32>
    %87 = arith.mulf %82, %84 : vector<1x32xf32>
    %88 = arith.addf %86, %87 : vector<1x32xf32>
    %89 = math.tanh %88 : vector<1x32xf32>
    %90 = arith.mulf %85, %89 : vector<1x32xf32>
    %91 = vector.extract_strided_slice %11 {offsets = [4, 0], sizes = [1, 128], strides = [1, 1]} : vector<32x128xf32> to vector<1x128xf32>
    %92 = arith.truncf %90 : vector<1x32xf32> to vector<1x32xbf16>
    %cst_14 = arith.constant dense<0.000000e+00> : vector<1x128xf32>
    %93 = tpu.matmul %92, %12, %cst_14 {dimension_numbers = #tpu.dot_dimension_numbers<[1], [0], [0], [1], [0, 0, 1, 1], [], []>} : vector<1x32xbf16>, vector<32x128xbf16>, vector<1x128xf32> -> vector<1x128xf32>
    %94 = arith.addf %91, %93 : vector<1x128xf32>
    %95 = arith.negf %94 : vector<1x128xf32>
    %96 = math.exp %95 : vector<1x128xf32>
    %cst_15 = arith.constant 1.000000e+00 : f32
    %97 = vector.broadcast %cst_15 : f32 to vector<1x128xf32>
    %98 = arith.addf %97, %96 : vector<1x128xf32>
    %99 = arith.divf %97, %98 : vector<1x128xf32>
    %100 = math.tanh %94 : vector<1x128xf32>
    %101 = vector.extract_strided_slice %99 {offsets = [0, 0], sizes = [1, 32], strides = [1, 1]} : vector<1x128xf32> to vector<1x32xf32>
    %102 = vector.extract_strided_slice %99 {offsets = [0, 32], sizes = [1, 32], strides = [1, 1]} : vector<1x128xf32> to vector<1x32xf32>
    %103 = vector.extract_strided_slice %100 {offsets = [0, 64], sizes = [1, 32], strides = [1, 1]} : vector<1x128xf32> to vector<1x32xf32>
    %104 = vector.extract_strided_slice %99 {offsets = [0, 96], sizes = [1, 32], strides = [1, 1]} : vector<1x128xf32> to vector<1x32xf32>
    %105 = arith.mulf %102, %88 : vector<1x32xf32>
    %106 = arith.mulf %101, %103 : vector<1x32xf32>
    %107 = arith.addf %105, %106 : vector<1x32xf32>
    %108 = math.tanh %107 : vector<1x32xf32>
    %109 = arith.mulf %104, %108 : vector<1x32xf32>
    %110 = vector.extract_strided_slice %11 {offsets = [5, 0], sizes = [1, 128], strides = [1, 1]} : vector<32x128xf32> to vector<1x128xf32>
    %111 = arith.truncf %109 : vector<1x32xf32> to vector<1x32xbf16>
    %cst_16 = arith.constant dense<0.000000e+00> : vector<1x128xf32>
    %112 = tpu.matmul %111, %12, %cst_16 {dimension_numbers = #tpu.dot_dimension_numbers<[1], [0], [0], [1], [0, 0, 1, 1], [], []>} : vector<1x32xbf16>, vector<32x128xbf16>, vector<1x128xf32> -> vector<1x128xf32>
    %113 = arith.addf %110, %112 : vector<1x128xf32>
    %114 = arith.negf %113 : vector<1x128xf32>
    %115 = math.exp %114 : vector<1x128xf32>
    %cst_17 = arith.constant 1.000000e+00 : f32
    %116 = vector.broadcast %cst_17 : f32 to vector<1x128xf32>
    %117 = arith.addf %116, %115 : vector<1x128xf32>
    %118 = arith.divf %116, %117 : vector<1x128xf32>
    %119 = math.tanh %113 : vector<1x128xf32>
    %120 = vector.extract_strided_slice %118 {offsets = [0, 0], sizes = [1, 32], strides = [1, 1]} : vector<1x128xf32> to vector<1x32xf32>
    %121 = vector.extract_strided_slice %118 {offsets = [0, 32], sizes = [1, 32], strides = [1, 1]} : vector<1x128xf32> to vector<1x32xf32>
    %122 = vector.extract_strided_slice %119 {offsets = [0, 64], sizes = [1, 32], strides = [1, 1]} : vector<1x128xf32> to vector<1x32xf32>
    %123 = vector.extract_strided_slice %118 {offsets = [0, 96], sizes = [1, 32], strides = [1, 1]} : vector<1x128xf32> to vector<1x32xf32>
    %124 = arith.mulf %121, %107 : vector<1x32xf32>
    %125 = arith.mulf %120, %122 : vector<1x32xf32>
    %126 = arith.addf %124, %125 : vector<1x32xf32>
    %127 = math.tanh %126 : vector<1x32xf32>
    %128 = arith.mulf %123, %127 : vector<1x32xf32>
    %129 = vector.extract_strided_slice %11 {offsets = [6, 0], sizes = [1, 128], strides = [1, 1]} : vector<32x128xf32> to vector<1x128xf32>
    %130 = arith.truncf %128 : vector<1x32xf32> to vector<1x32xbf16>
    %cst_18 = arith.constant dense<0.000000e+00> : vector<1x128xf32>
    %131 = tpu.matmul %130, %12, %cst_18 {dimension_numbers = #tpu.dot_dimension_numbers<[1], [0], [0], [1], [0, 0, 1, 1], [], []>} : vector<1x32xbf16>, vector<32x128xbf16>, vector<1x128xf32> -> vector<1x128xf32>
    %132 = arith.addf %129, %131 : vector<1x128xf32>
    %133 = arith.negf %132 : vector<1x128xf32>
    %134 = math.exp %133 : vector<1x128xf32>
    %cst_19 = arith.constant 1.000000e+00 : f32
    %135 = vector.broadcast %cst_19 : f32 to vector<1x128xf32>
    %136 = arith.addf %135, %134 : vector<1x128xf32>
    %137 = arith.divf %135, %136 : vector<1x128xf32>
    %138 = math.tanh %132 : vector<1x128xf32>
    %139 = vector.extract_strided_slice %137 {offsets = [0, 0], sizes = [1, 32], strides = [1, 1]} : vector<1x128xf32> to vector<1x32xf32>
    %140 = vector.extract_strided_slice %137 {offsets = [0, 32], sizes = [1, 32], strides = [1, 1]} : vector<1x128xf32> to vector<1x32xf32>
    %141 = vector.extract_strided_slice %138 {offsets = [0, 64], sizes = [1, 32], strides = [1, 1]} : vector<1x128xf32> to vector<1x32xf32>
    %142 = vector.extract_strided_slice %137 {offsets = [0, 96], sizes = [1, 32], strides = [1, 1]} : vector<1x128xf32> to vector<1x32xf32>
    %143 = arith.mulf %140, %126 : vector<1x32xf32>
    %144 = arith.mulf %139, %141 : vector<1x32xf32>
    %145 = arith.addf %143, %144 : vector<1x32xf32>
    %146 = math.tanh %145 : vector<1x32xf32>
    %147 = arith.mulf %142, %146 : vector<1x32xf32>
    %148 = vector.extract_strided_slice %11 {offsets = [7, 0], sizes = [1, 128], strides = [1, 1]} : vector<32x128xf32> to vector<1x128xf32>
    %149 = arith.truncf %147 : vector<1x32xf32> to vector<1x32xbf16>
    %cst_20 = arith.constant dense<0.000000e+00> : vector<1x128xf32>
    %150 = tpu.matmul %149, %12, %cst_20 {dimension_numbers = #tpu.dot_dimension_numbers<[1], [0], [0], [1], [0, 0, 1, 1], [], []>} : vector<1x32xbf16>, vector<32x128xbf16>, vector<1x128xf32> -> vector<1x128xf32>
    %151 = arith.addf %148, %150 : vector<1x128xf32>
    %152 = arith.negf %151 : vector<1x128xf32>
    %153 = math.exp %152 : vector<1x128xf32>
    %cst_21 = arith.constant 1.000000e+00 : f32
    %154 = vector.broadcast %cst_21 : f32 to vector<1x128xf32>
    %155 = arith.addf %154, %153 : vector<1x128xf32>
    %156 = arith.divf %154, %155 : vector<1x128xf32>
    %157 = math.tanh %151 : vector<1x128xf32>
    %158 = vector.extract_strided_slice %156 {offsets = [0, 0], sizes = [1, 32], strides = [1, 1]} : vector<1x128xf32> to vector<1x32xf32>
    %159 = vector.extract_strided_slice %156 {offsets = [0, 32], sizes = [1, 32], strides = [1, 1]} : vector<1x128xf32> to vector<1x32xf32>
    %160 = vector.extract_strided_slice %157 {offsets = [0, 64], sizes = [1, 32], strides = [1, 1]} : vector<1x128xf32> to vector<1x32xf32>
    %161 = vector.extract_strided_slice %156 {offsets = [0, 96], sizes = [1, 32], strides = [1, 1]} : vector<1x128xf32> to vector<1x32xf32>
    %162 = arith.mulf %159, %145 : vector<1x32xf32>
    %163 = arith.mulf %158, %160 : vector<1x32xf32>
    %164 = arith.addf %162, %163 : vector<1x32xf32>
    %165 = math.tanh %164 : vector<1x32xf32>
    %166 = arith.mulf %161, %165 : vector<1x32xf32>
    %167 = vector.extract_strided_slice %11 {offsets = [8, 0], sizes = [1, 128], strides = [1, 1]} : vector<32x128xf32> to vector<1x128xf32>
    %168 = arith.truncf %166 : vector<1x32xf32> to vector<1x32xbf16>
    %cst_22 = arith.constant dense<0.000000e+00> : vector<1x128xf32>
    %169 = tpu.matmul %168, %12, %cst_22 {dimension_numbers = #tpu.dot_dimension_numbers<[1], [0], [0], [1], [0, 0, 1, 1], [], []>} : vector<1x32xbf16>, vector<32x128xbf16>, vector<1x128xf32> -> vector<1x128xf32>
    %170 = arith.addf %167, %169 : vector<1x128xf32>
    %171 = arith.negf %170 : vector<1x128xf32>
    %172 = math.exp %171 : vector<1x128xf32>
    %cst_23 = arith.constant 1.000000e+00 : f32
    %173 = vector.broadcast %cst_23 : f32 to vector<1x128xf32>
    %174 = arith.addf %173, %172 : vector<1x128xf32>
    %175 = arith.divf %173, %174 : vector<1x128xf32>
    %176 = math.tanh %170 : vector<1x128xf32>
    %177 = vector.extract_strided_slice %175 {offsets = [0, 0], sizes = [1, 32], strides = [1, 1]} : vector<1x128xf32> to vector<1x32xf32>
    %178 = vector.extract_strided_slice %175 {offsets = [0, 32], sizes = [1, 32], strides = [1, 1]} : vector<1x128xf32> to vector<1x32xf32>
    %179 = vector.extract_strided_slice %176 {offsets = [0, 64], sizes = [1, 32], strides = [1, 1]} : vector<1x128xf32> to vector<1x32xf32>
    %180 = vector.extract_strided_slice %175 {offsets = [0, 96], sizes = [1, 32], strides = [1, 1]} : vector<1x128xf32> to vector<1x32xf32>
    %181 = arith.mulf %178, %164 : vector<1x32xf32>
    %182 = arith.mulf %177, %179 : vector<1x32xf32>
    %183 = arith.addf %181, %182 : vector<1x32xf32>
    %184 = math.tanh %183 : vector<1x32xf32>
    %185 = arith.mulf %180, %184 : vector<1x32xf32>
    %186 = vector.extract_strided_slice %11 {offsets = [9, 0], sizes = [1, 128], strides = [1, 1]} : vector<32x128xf32> to vector<1x128xf32>
    %187 = arith.truncf %185 : vector<1x32xf32> to vector<1x32xbf16>
    %cst_24 = arith.constant dense<0.000000e+00> : vector<1x128xf32>
    %188 = tpu.matmul %187, %12, %cst_24 {dimension_numbers = #tpu.dot_dimension_numbers<[1], [0], [0], [1], [0, 0, 1, 1], [], []>} : vector<1x32xbf16>, vector<32x128xbf16>, vector<1x128xf32> -> vector<1x128xf32>
    %189 = arith.addf %186, %188 : vector<1x128xf32>
    %190 = arith.negf %189 : vector<1x128xf32>
    %191 = math.exp %190 : vector<1x128xf32>
    %cst_25 = arith.constant 1.000000e+00 : f32
    %192 = vector.broadcast %cst_25 : f32 to vector<1x128xf32>
    %193 = arith.addf %192, %191 : vector<1x128xf32>
    %194 = arith.divf %192, %193 : vector<1x128xf32>
    %195 = math.tanh %189 : vector<1x128xf32>
    %196 = vector.extract_strided_slice %194 {offsets = [0, 0], sizes = [1, 32], strides = [1, 1]} : vector<1x128xf32> to vector<1x32xf32>
    %197 = vector.extract_strided_slice %194 {offsets = [0, 32], sizes = [1, 32], strides = [1, 1]} : vector<1x128xf32> to vector<1x32xf32>
    %198 = vector.extract_strided_slice %195 {offsets = [0, 64], sizes = [1, 32], strides = [1, 1]} : vector<1x128xf32> to vector<1x32xf32>
    %199 = vector.extract_strided_slice %194 {offsets = [0, 96], sizes = [1, 32], strides = [1, 1]} : vector<1x128xf32> to vector<1x32xf32>
    %200 = arith.mulf %197, %183 : vector<1x32xf32>
    %201 = arith.mulf %196, %198 : vector<1x32xf32>
    %202 = arith.addf %200, %201 : vector<1x32xf32>
    %203 = math.tanh %202 : vector<1x32xf32>
    %204 = arith.mulf %199, %203 : vector<1x32xf32>
    %205 = vector.extract_strided_slice %11 {offsets = [10, 0], sizes = [1, 128], strides = [1, 1]} : vector<32x128xf32> to vector<1x128xf32>
    %206 = arith.truncf %204 : vector<1x32xf32> to vector<1x32xbf16>
    %cst_26 = arith.constant dense<0.000000e+00> : vector<1x128xf32>
    %207 = tpu.matmul %206, %12, %cst_26 {dimension_numbers = #tpu.dot_dimension_numbers<[1], [0], [0], [1], [0, 0, 1, 1], [], []>} : vector<1x32xbf16>, vector<32x128xbf16>, vector<1x128xf32> -> vector<1x128xf32>
    %208 = arith.addf %205, %207 : vector<1x128xf32>
    %209 = arith.negf %208 : vector<1x128xf32>
    %210 = math.exp %209 : vector<1x128xf32>
    %cst_27 = arith.constant 1.000000e+00 : f32
    %211 = vector.broadcast %cst_27 : f32 to vector<1x128xf32>
    %212 = arith.addf %211, %210 : vector<1x128xf32>
    %213 = arith.divf %211, %212 : vector<1x128xf32>
    %214 = math.tanh %208 : vector<1x128xf32>
    %215 = vector.extract_strided_slice %213 {offsets = [0, 0], sizes = [1, 32], strides = [1, 1]} : vector<1x128xf32> to vector<1x32xf32>
    %216 = vector.extract_strided_slice %213 {offsets = [0, 32], sizes = [1, 32], strides = [1, 1]} : vector<1x128xf32> to vector<1x32xf32>
    %217 = vector.extract_strided_slice %214 {offsets = [0, 64], sizes = [1, 32], strides = [1, 1]} : vector<1x128xf32> to vector<1x32xf32>
    %218 = vector.extract_strided_slice %213 {offsets = [0, 96], sizes = [1, 32], strides = [1, 1]} : vector<1x128xf32> to vector<1x32xf32>
    %219 = arith.mulf %216, %202 : vector<1x32xf32>
    %220 = arith.mulf %215, %217 : vector<1x32xf32>
    %221 = arith.addf %219, %220 : vector<1x32xf32>
    %222 = math.tanh %221 : vector<1x32xf32>
    %223 = arith.mulf %218, %222 : vector<1x32xf32>
    %224 = vector.extract_strided_slice %11 {offsets = [11, 0], sizes = [1, 128], strides = [1, 1]} : vector<32x128xf32> to vector<1x128xf32>
    %225 = arith.truncf %223 : vector<1x32xf32> to vector<1x32xbf16>
    %cst_28 = arith.constant dense<0.000000e+00> : vector<1x128xf32>
    %226 = tpu.matmul %225, %12, %cst_28 {dimension_numbers = #tpu.dot_dimension_numbers<[1], [0], [0], [1], [0, 0, 1, 1], [], []>} : vector<1x32xbf16>, vector<32x128xbf16>, vector<1x128xf32> -> vector<1x128xf32>
    %227 = arith.addf %224, %226 : vector<1x128xf32>
    %228 = arith.negf %227 : vector<1x128xf32>
    %229 = math.exp %228 : vector<1x128xf32>
    %cst_29 = arith.constant 1.000000e+00 : f32
    %230 = vector.broadcast %cst_29 : f32 to vector<1x128xf32>
    %231 = arith.addf %230, %229 : vector<1x128xf32>
    %232 = arith.divf %230, %231 : vector<1x128xf32>
    %233 = math.tanh %227 : vector<1x128xf32>
    %234 = vector.extract_strided_slice %232 {offsets = [0, 0], sizes = [1, 32], strides = [1, 1]} : vector<1x128xf32> to vector<1x32xf32>
    %235 = vector.extract_strided_slice %232 {offsets = [0, 32], sizes = [1, 32], strides = [1, 1]} : vector<1x128xf32> to vector<1x32xf32>
    %236 = vector.extract_strided_slice %233 {offsets = [0, 64], sizes = [1, 32], strides = [1, 1]} : vector<1x128xf32> to vector<1x32xf32>
    %237 = vector.extract_strided_slice %232 {offsets = [0, 96], sizes = [1, 32], strides = [1, 1]} : vector<1x128xf32> to vector<1x32xf32>
    %238 = arith.mulf %235, %221 : vector<1x32xf32>
    %239 = arith.mulf %234, %236 : vector<1x32xf32>
    %240 = arith.addf %238, %239 : vector<1x32xf32>
    %241 = math.tanh %240 : vector<1x32xf32>
    %242 = arith.mulf %237, %241 : vector<1x32xf32>
    %243 = vector.extract_strided_slice %11 {offsets = [12, 0], sizes = [1, 128], strides = [1, 1]} : vector<32x128xf32> to vector<1x128xf32>
    %244 = arith.truncf %242 : vector<1x32xf32> to vector<1x32xbf16>
    %cst_30 = arith.constant dense<0.000000e+00> : vector<1x128xf32>
    %245 = tpu.matmul %244, %12, %cst_30 {dimension_numbers = #tpu.dot_dimension_numbers<[1], [0], [0], [1], [0, 0, 1, 1], [], []>} : vector<1x32xbf16>, vector<32x128xbf16>, vector<1x128xf32> -> vector<1x128xf32>
    %246 = arith.addf %243, %245 : vector<1x128xf32>
    %247 = arith.negf %246 : vector<1x128xf32>
    %248 = math.exp %247 : vector<1x128xf32>
    %cst_31 = arith.constant 1.000000e+00 : f32
    %249 = vector.broadcast %cst_31 : f32 to vector<1x128xf32>
    %250 = arith.addf %249, %248 : vector<1x128xf32>
    %251 = arith.divf %249, %250 : vector<1x128xf32>
    %252 = math.tanh %246 : vector<1x128xf32>
    %253 = vector.extract_strided_slice %251 {offsets = [0, 0], sizes = [1, 32], strides = [1, 1]} : vector<1x128xf32> to vector<1x32xf32>
    %254 = vector.extract_strided_slice %251 {offsets = [0, 32], sizes = [1, 32], strides = [1, 1]} : vector<1x128xf32> to vector<1x32xf32>
    %255 = vector.extract_strided_slice %252 {offsets = [0, 64], sizes = [1, 32], strides = [1, 1]} : vector<1x128xf32> to vector<1x32xf32>
    %256 = vector.extract_strided_slice %251 {offsets = [0, 96], sizes = [1, 32], strides = [1, 1]} : vector<1x128xf32> to vector<1x32xf32>
    %257 = arith.mulf %254, %240 : vector<1x32xf32>
    %258 = arith.mulf %253, %255 : vector<1x32xf32>
    %259 = arith.addf %257, %258 : vector<1x32xf32>
    %260 = math.tanh %259 : vector<1x32xf32>
    %261 = arith.mulf %256, %260 : vector<1x32xf32>
    %262 = vector.extract_strided_slice %11 {offsets = [13, 0], sizes = [1, 128], strides = [1, 1]} : vector<32x128xf32> to vector<1x128xf32>
    %263 = arith.truncf %261 : vector<1x32xf32> to vector<1x32xbf16>
    %cst_32 = arith.constant dense<0.000000e+00> : vector<1x128xf32>
    %264 = tpu.matmul %263, %12, %cst_32 {dimension_numbers = #tpu.dot_dimension_numbers<[1], [0], [0], [1], [0, 0, 1, 1], [], []>} : vector<1x32xbf16>, vector<32x128xbf16>, vector<1x128xf32> -> vector<1x128xf32>
    %265 = arith.addf %262, %264 : vector<1x128xf32>
    %266 = arith.negf %265 : vector<1x128xf32>
    %267 = math.exp %266 : vector<1x128xf32>
    %cst_33 = arith.constant 1.000000e+00 : f32
    %268 = vector.broadcast %cst_33 : f32 to vector<1x128xf32>
    %269 = arith.addf %268, %267 : vector<1x128xf32>
    %270 = arith.divf %268, %269 : vector<1x128xf32>
    %271 = math.tanh %265 : vector<1x128xf32>
    %272 = vector.extract_strided_slice %270 {offsets = [0, 0], sizes = [1, 32], strides = [1, 1]} : vector<1x128xf32> to vector<1x32xf32>
    %273 = vector.extract_strided_slice %270 {offsets = [0, 32], sizes = [1, 32], strides = [1, 1]} : vector<1x128xf32> to vector<1x32xf32>
    %274 = vector.extract_strided_slice %271 {offsets = [0, 64], sizes = [1, 32], strides = [1, 1]} : vector<1x128xf32> to vector<1x32xf32>
    %275 = vector.extract_strided_slice %270 {offsets = [0, 96], sizes = [1, 32], strides = [1, 1]} : vector<1x128xf32> to vector<1x32xf32>
    %276 = arith.mulf %273, %259 : vector<1x32xf32>
    %277 = arith.mulf %272, %274 : vector<1x32xf32>
    %278 = arith.addf %276, %277 : vector<1x32xf32>
    %279 = math.tanh %278 : vector<1x32xf32>
    %280 = arith.mulf %275, %279 : vector<1x32xf32>
    %281 = vector.extract_strided_slice %11 {offsets = [14, 0], sizes = [1, 128], strides = [1, 1]} : vector<32x128xf32> to vector<1x128xf32>
    %282 = arith.truncf %280 : vector<1x32xf32> to vector<1x32xbf16>
    %cst_34 = arith.constant dense<0.000000e+00> : vector<1x128xf32>
    %283 = tpu.matmul %282, %12, %cst_34 {dimension_numbers = #tpu.dot_dimension_numbers<[1], [0], [0], [1], [0, 0, 1, 1], [], []>} : vector<1x32xbf16>, vector<32x128xbf16>, vector<1x128xf32> -> vector<1x128xf32>
    %284 = arith.addf %281, %283 : vector<1x128xf32>
    %285 = arith.negf %284 : vector<1x128xf32>
    %286 = math.exp %285 : vector<1x128xf32>
    %cst_35 = arith.constant 1.000000e+00 : f32
    %287 = vector.broadcast %cst_35 : f32 to vector<1x128xf32>
    %288 = arith.addf %287, %286 : vector<1x128xf32>
    %289 = arith.divf %287, %288 : vector<1x128xf32>
    %290 = math.tanh %284 : vector<1x128xf32>
    %291 = vector.extract_strided_slice %289 {offsets = [0, 0], sizes = [1, 32], strides = [1, 1]} : vector<1x128xf32> to vector<1x32xf32>
    %292 = vector.extract_strided_slice %289 {offsets = [0, 32], sizes = [1, 32], strides = [1, 1]} : vector<1x128xf32> to vector<1x32xf32>
    %293 = vector.extract_strided_slice %290 {offsets = [0, 64], sizes = [1, 32], strides = [1, 1]} : vector<1x128xf32> to vector<1x32xf32>
    %294 = vector.extract_strided_slice %289 {offsets = [0, 96], sizes = [1, 32], strides = [1, 1]} : vector<1x128xf32> to vector<1x32xf32>
    %295 = arith.mulf %292, %278 : vector<1x32xf32>
    %296 = arith.mulf %291, %293 : vector<1x32xf32>
    %297 = arith.addf %295, %296 : vector<1x32xf32>
    %298 = math.tanh %297 : vector<1x32xf32>
    %299 = arith.mulf %294, %298 : vector<1x32xf32>
    %300 = vector.extract_strided_slice %11 {offsets = [15, 0], sizes = [1, 128], strides = [1, 1]} : vector<32x128xf32> to vector<1x128xf32>
    %301 = arith.truncf %299 : vector<1x32xf32> to vector<1x32xbf16>
    %cst_36 = arith.constant dense<0.000000e+00> : vector<1x128xf32>
    %302 = tpu.matmul %301, %12, %cst_36 {dimension_numbers = #tpu.dot_dimension_numbers<[1], [0], [0], [1], [0, 0, 1, 1], [], []>} : vector<1x32xbf16>, vector<32x128xbf16>, vector<1x128xf32> -> vector<1x128xf32>
    %303 = arith.addf %300, %302 : vector<1x128xf32>
    %304 = arith.negf %303 : vector<1x128xf32>
    %305 = math.exp %304 : vector<1x128xf32>
    %cst_37 = arith.constant 1.000000e+00 : f32
    %306 = vector.broadcast %cst_37 : f32 to vector<1x128xf32>
    %307 = arith.addf %306, %305 : vector<1x128xf32>
    %308 = arith.divf %306, %307 : vector<1x128xf32>
    %309 = math.tanh %303 : vector<1x128xf32>
    %310 = vector.extract_strided_slice %308 {offsets = [0, 0], sizes = [1, 32], strides = [1, 1]} : vector<1x128xf32> to vector<1x32xf32>
    %311 = vector.extract_strided_slice %308 {offsets = [0, 32], sizes = [1, 32], strides = [1, 1]} : vector<1x128xf32> to vector<1x32xf32>
    %312 = vector.extract_strided_slice %309 {offsets = [0, 64], sizes = [1, 32], strides = [1, 1]} : vector<1x128xf32> to vector<1x32xf32>
    %313 = vector.extract_strided_slice %308 {offsets = [0, 96], sizes = [1, 32], strides = [1, 1]} : vector<1x128xf32> to vector<1x32xf32>
    %314 = arith.mulf %311, %297 : vector<1x32xf32>
    %315 = arith.mulf %310, %312 : vector<1x32xf32>
    %316 = arith.addf %314, %315 : vector<1x32xf32>
    %317 = math.tanh %316 : vector<1x32xf32>
    %318 = arith.mulf %313, %317 : vector<1x32xf32>
    %319 = vector.extract_strided_slice %11 {offsets = [16, 0], sizes = [1, 128], strides = [1, 1]} : vector<32x128xf32> to vector<1x128xf32>
    %320 = arith.truncf %318 : vector<1x32xf32> to vector<1x32xbf16>
    %cst_38 = arith.constant dense<0.000000e+00> : vector<1x128xf32>
    %321 = tpu.matmul %320, %12, %cst_38 {dimension_numbers = #tpu.dot_dimension_numbers<[1], [0], [0], [1], [0, 0, 1, 1], [], []>} : vector<1x32xbf16>, vector<32x128xbf16>, vector<1x128xf32> -> vector<1x128xf32>
    %322 = arith.addf %319, %321 : vector<1x128xf32>
    %323 = arith.negf %322 : vector<1x128xf32>
    %324 = math.exp %323 : vector<1x128xf32>
    %cst_39 = arith.constant 1.000000e+00 : f32
    %325 = vector.broadcast %cst_39 : f32 to vector<1x128xf32>
    %326 = arith.addf %325, %324 : vector<1x128xf32>
    %327 = arith.divf %325, %326 : vector<1x128xf32>
    %328 = math.tanh %322 : vector<1x128xf32>
    %329 = vector.extract_strided_slice %327 {offsets = [0, 0], sizes = [1, 32], strides = [1, 1]} : vector<1x128xf32> to vector<1x32xf32>
    %330 = vector.extract_strided_slice %327 {offsets = [0, 32], sizes = [1, 32], strides = [1, 1]} : vector<1x128xf32> to vector<1x32xf32>
    %331 = vector.extract_strided_slice %328 {offsets = [0, 64], sizes = [1, 32], strides = [1, 1]} : vector<1x128xf32> to vector<1x32xf32>
    %332 = vector.extract_strided_slice %327 {offsets = [0, 96], sizes = [1, 32], strides = [1, 1]} : vector<1x128xf32> to vector<1x32xf32>
    %333 = arith.mulf %330, %316 : vector<1x32xf32>
    %334 = arith.mulf %329, %331 : vector<1x32xf32>
    %335 = arith.addf %333, %334 : vector<1x32xf32>
    %336 = math.tanh %335 : vector<1x32xf32>
    %337 = arith.mulf %332, %336 : vector<1x32xf32>
    %338 = vector.extract_strided_slice %11 {offsets = [17, 0], sizes = [1, 128], strides = [1, 1]} : vector<32x128xf32> to vector<1x128xf32>
    %339 = arith.truncf %337 : vector<1x32xf32> to vector<1x32xbf16>
    %cst_40 = arith.constant dense<0.000000e+00> : vector<1x128xf32>
    %340 = tpu.matmul %339, %12, %cst_40 {dimension_numbers = #tpu.dot_dimension_numbers<[1], [0], [0], [1], [0, 0, 1, 1], [], []>} : vector<1x32xbf16>, vector<32x128xbf16>, vector<1x128xf32> -> vector<1x128xf32>
    %341 = arith.addf %338, %340 : vector<1x128xf32>
    %342 = arith.negf %341 : vector<1x128xf32>
    %343 = math.exp %342 : vector<1x128xf32>
    %cst_41 = arith.constant 1.000000e+00 : f32
    %344 = vector.broadcast %cst_41 : f32 to vector<1x128xf32>
    %345 = arith.addf %344, %343 : vector<1x128xf32>
    %346 = arith.divf %344, %345 : vector<1x128xf32>
    %347 = math.tanh %341 : vector<1x128xf32>
    %348 = vector.extract_strided_slice %346 {offsets = [0, 0], sizes = [1, 32], strides = [1, 1]} : vector<1x128xf32> to vector<1x32xf32>
    %349 = vector.extract_strided_slice %346 {offsets = [0, 32], sizes = [1, 32], strides = [1, 1]} : vector<1x128xf32> to vector<1x32xf32>
    %350 = vector.extract_strided_slice %347 {offsets = [0, 64], sizes = [1, 32], strides = [1, 1]} : vector<1x128xf32> to vector<1x32xf32>
    %351 = vector.extract_strided_slice %346 {offsets = [0, 96], sizes = [1, 32], strides = [1, 1]} : vector<1x128xf32> to vector<1x32xf32>
    %352 = arith.mulf %349, %335 : vector<1x32xf32>
    %353 = arith.mulf %348, %350 : vector<1x32xf32>
    %354 = arith.addf %352, %353 : vector<1x32xf32>
    %355 = math.tanh %354 : vector<1x32xf32>
    %356 = arith.mulf %351, %355 : vector<1x32xf32>
    %357 = vector.extract_strided_slice %11 {offsets = [18, 0], sizes = [1, 128], strides = [1, 1]} : vector<32x128xf32> to vector<1x128xf32>
    %358 = arith.truncf %356 : vector<1x32xf32> to vector<1x32xbf16>
    %cst_42 = arith.constant dense<0.000000e+00> : vector<1x128xf32>
    %359 = tpu.matmul %358, %12, %cst_42 {dimension_numbers = #tpu.dot_dimension_numbers<[1], [0], [0], [1], [0, 0, 1, 1], [], []>} : vector<1x32xbf16>, vector<32x128xbf16>, vector<1x128xf32> -> vector<1x128xf32>
    %360 = arith.addf %357, %359 : vector<1x128xf32>
    %361 = arith.negf %360 : vector<1x128xf32>
    %362 = math.exp %361 : vector<1x128xf32>
    %cst_43 = arith.constant 1.000000e+00 : f32
    %363 = vector.broadcast %cst_43 : f32 to vector<1x128xf32>
    %364 = arith.addf %363, %362 : vector<1x128xf32>
    %365 = arith.divf %363, %364 : vector<1x128xf32>
    %366 = math.tanh %360 : vector<1x128xf32>
    %367 = vector.extract_strided_slice %365 {offsets = [0, 0], sizes = [1, 32], strides = [1, 1]} : vector<1x128xf32> to vector<1x32xf32>
    %368 = vector.extract_strided_slice %365 {offsets = [0, 32], sizes = [1, 32], strides = [1, 1]} : vector<1x128xf32> to vector<1x32xf32>
    %369 = vector.extract_strided_slice %366 {offsets = [0, 64], sizes = [1, 32], strides = [1, 1]} : vector<1x128xf32> to vector<1x32xf32>
    %370 = vector.extract_strided_slice %365 {offsets = [0, 96], sizes = [1, 32], strides = [1, 1]} : vector<1x128xf32> to vector<1x32xf32>
    %371 = arith.mulf %368, %354 : vector<1x32xf32>
    %372 = arith.mulf %367, %369 : vector<1x32xf32>
    %373 = arith.addf %371, %372 : vector<1x32xf32>
    %374 = math.tanh %373 : vector<1x32xf32>
    %375 = arith.mulf %370, %374 : vector<1x32xf32>
    %376 = vector.extract_strided_slice %11 {offsets = [19, 0], sizes = [1, 128], strides = [1, 1]} : vector<32x128xf32> to vector<1x128xf32>
    %377 = arith.truncf %375 : vector<1x32xf32> to vector<1x32xbf16>
    %cst_44 = arith.constant dense<0.000000e+00> : vector<1x128xf32>
    %378 = tpu.matmul %377, %12, %cst_44 {dimension_numbers = #tpu.dot_dimension_numbers<[1], [0], [0], [1], [0, 0, 1, 1], [], []>} : vector<1x32xbf16>, vector<32x128xbf16>, vector<1x128xf32> -> vector<1x128xf32>
    %379 = arith.addf %376, %378 : vector<1x128xf32>
    %380 = arith.negf %379 : vector<1x128xf32>
    %381 = math.exp %380 : vector<1x128xf32>
    %cst_45 = arith.constant 1.000000e+00 : f32
    %382 = vector.broadcast %cst_45 : f32 to vector<1x128xf32>
    %383 = arith.addf %382, %381 : vector<1x128xf32>
    %384 = arith.divf %382, %383 : vector<1x128xf32>
    %385 = math.tanh %379 : vector<1x128xf32>
    %386 = vector.extract_strided_slice %384 {offsets = [0, 0], sizes = [1, 32], strides = [1, 1]} : vector<1x128xf32> to vector<1x32xf32>
    %387 = vector.extract_strided_slice %384 {offsets = [0, 32], sizes = [1, 32], strides = [1, 1]} : vector<1x128xf32> to vector<1x32xf32>
    %388 = vector.extract_strided_slice %385 {offsets = [0, 64], sizes = [1, 32], strides = [1, 1]} : vector<1x128xf32> to vector<1x32xf32>
    %389 = vector.extract_strided_slice %384 {offsets = [0, 96], sizes = [1, 32], strides = [1, 1]} : vector<1x128xf32> to vector<1x32xf32>
    %390 = arith.mulf %387, %373 : vector<1x32xf32>
    %391 = arith.mulf %386, %388 : vector<1x32xf32>
    %392 = arith.addf %390, %391 : vector<1x32xf32>
    %393 = math.tanh %392 : vector<1x32xf32>
    %394 = arith.mulf %389, %393 : vector<1x32xf32>
    %395 = vector.extract_strided_slice %11 {offsets = [20, 0], sizes = [1, 128], strides = [1, 1]} : vector<32x128xf32> to vector<1x128xf32>
    %396 = arith.truncf %394 : vector<1x32xf32> to vector<1x32xbf16>
    %cst_46 = arith.constant dense<0.000000e+00> : vector<1x128xf32>
    %397 = tpu.matmul %396, %12, %cst_46 {dimension_numbers = #tpu.dot_dimension_numbers<[1], [0], [0], [1], [0, 0, 1, 1], [], []>} : vector<1x32xbf16>, vector<32x128xbf16>, vector<1x128xf32> -> vector<1x128xf32>
    %398 = arith.addf %395, %397 : vector<1x128xf32>
    %399 = arith.negf %398 : vector<1x128xf32>
    %400 = math.exp %399 : vector<1x128xf32>
    %cst_47 = arith.constant 1.000000e+00 : f32
    %401 = vector.broadcast %cst_47 : f32 to vector<1x128xf32>
    %402 = arith.addf %401, %400 : vector<1x128xf32>
    %403 = arith.divf %401, %402 : vector<1x128xf32>
    %404 = math.tanh %398 : vector<1x128xf32>
    %405 = vector.extract_strided_slice %403 {offsets = [0, 0], sizes = [1, 32], strides = [1, 1]} : vector<1x128xf32> to vector<1x32xf32>
    %406 = vector.extract_strided_slice %403 {offsets = [0, 32], sizes = [1, 32], strides = [1, 1]} : vector<1x128xf32> to vector<1x32xf32>
    %407 = vector.extract_strided_slice %404 {offsets = [0, 64], sizes = [1, 32], strides = [1, 1]} : vector<1x128xf32> to vector<1x32xf32>
    %408 = vector.extract_strided_slice %403 {offsets = [0, 96], sizes = [1, 32], strides = [1, 1]} : vector<1x128xf32> to vector<1x32xf32>
    %409 = arith.mulf %406, %392 : vector<1x32xf32>
    %410 = arith.mulf %405, %407 : vector<1x32xf32>
    %411 = arith.addf %409, %410 : vector<1x32xf32>
    %412 = math.tanh %411 : vector<1x32xf32>
    %413 = arith.mulf %408, %412 : vector<1x32xf32>
    %414 = vector.extract_strided_slice %11 {offsets = [21, 0], sizes = [1, 128], strides = [1, 1]} : vector<32x128xf32> to vector<1x128xf32>
    %415 = arith.truncf %413 : vector<1x32xf32> to vector<1x32xbf16>
    %cst_48 = arith.constant dense<0.000000e+00> : vector<1x128xf32>
    %416 = tpu.matmul %415, %12, %cst_48 {dimension_numbers = #tpu.dot_dimension_numbers<[1], [0], [0], [1], [0, 0, 1, 1], [], []>} : vector<1x32xbf16>, vector<32x128xbf16>, vector<1x128xf32> -> vector<1x128xf32>
    %417 = arith.addf %414, %416 : vector<1x128xf32>
    %418 = arith.negf %417 : vector<1x128xf32>
    %419 = math.exp %418 : vector<1x128xf32>
    %cst_49 = arith.constant 1.000000e+00 : f32
    %420 = vector.broadcast %cst_49 : f32 to vector<1x128xf32>
    %421 = arith.addf %420, %419 : vector<1x128xf32>
    %422 = arith.divf %420, %421 : vector<1x128xf32>
    %423 = math.tanh %417 : vector<1x128xf32>
    %424 = vector.extract_strided_slice %422 {offsets = [0, 0], sizes = [1, 32], strides = [1, 1]} : vector<1x128xf32> to vector<1x32xf32>
    %425 = vector.extract_strided_slice %422 {offsets = [0, 32], sizes = [1, 32], strides = [1, 1]} : vector<1x128xf32> to vector<1x32xf32>
    %426 = vector.extract_strided_slice %423 {offsets = [0, 64], sizes = [1, 32], strides = [1, 1]} : vector<1x128xf32> to vector<1x32xf32>
    %427 = vector.extract_strided_slice %422 {offsets = [0, 96], sizes = [1, 32], strides = [1, 1]} : vector<1x128xf32> to vector<1x32xf32>
    %428 = arith.mulf %425, %411 : vector<1x32xf32>
    %429 = arith.mulf %424, %426 : vector<1x32xf32>
    %430 = arith.addf %428, %429 : vector<1x32xf32>
    %431 = math.tanh %430 : vector<1x32xf32>
    %432 = arith.mulf %427, %431 : vector<1x32xf32>
    %433 = vector.extract_strided_slice %11 {offsets = [22, 0], sizes = [1, 128], strides = [1, 1]} : vector<32x128xf32> to vector<1x128xf32>
    %434 = arith.truncf %432 : vector<1x32xf32> to vector<1x32xbf16>
    %cst_50 = arith.constant dense<0.000000e+00> : vector<1x128xf32>
    %435 = tpu.matmul %434, %12, %cst_50 {dimension_numbers = #tpu.dot_dimension_numbers<[1], [0], [0], [1], [0, 0, 1, 1], [], []>} : vector<1x32xbf16>, vector<32x128xbf16>, vector<1x128xf32> -> vector<1x128xf32>
    %436 = arith.addf %433, %435 : vector<1x128xf32>
    %437 = arith.negf %436 : vector<1x128xf32>
    %438 = math.exp %437 : vector<1x128xf32>
    %cst_51 = arith.constant 1.000000e+00 : f32
    %439 = vector.broadcast %cst_51 : f32 to vector<1x128xf32>
    %440 = arith.addf %439, %438 : vector<1x128xf32>
    %441 = arith.divf %439, %440 : vector<1x128xf32>
    %442 = math.tanh %436 : vector<1x128xf32>
    %443 = vector.extract_strided_slice %441 {offsets = [0, 0], sizes = [1, 32], strides = [1, 1]} : vector<1x128xf32> to vector<1x32xf32>
    %444 = vector.extract_strided_slice %441 {offsets = [0, 32], sizes = [1, 32], strides = [1, 1]} : vector<1x128xf32> to vector<1x32xf32>
    %445 = vector.extract_strided_slice %442 {offsets = [0, 64], sizes = [1, 32], strides = [1, 1]} : vector<1x128xf32> to vector<1x32xf32>
    %446 = vector.extract_strided_slice %441 {offsets = [0, 96], sizes = [1, 32], strides = [1, 1]} : vector<1x128xf32> to vector<1x32xf32>
    %447 = arith.mulf %444, %430 : vector<1x32xf32>
    %448 = arith.mulf %443, %445 : vector<1x32xf32>
    %449 = arith.addf %447, %448 : vector<1x32xf32>
    %450 = math.tanh %449 : vector<1x32xf32>
    %451 = arith.mulf %446, %450 : vector<1x32xf32>
    %452 = vector.extract_strided_slice %11 {offsets = [23, 0], sizes = [1, 128], strides = [1, 1]} : vector<32x128xf32> to vector<1x128xf32>
    %453 = arith.truncf %451 : vector<1x32xf32> to vector<1x32xbf16>
    %cst_52 = arith.constant dense<0.000000e+00> : vector<1x128xf32>
    %454 = tpu.matmul %453, %12, %cst_52 {dimension_numbers = #tpu.dot_dimension_numbers<[1], [0], [0], [1], [0, 0, 1, 1], [], []>} : vector<1x32xbf16>, vector<32x128xbf16>, vector<1x128xf32> -> vector<1x128xf32>
    %455 = arith.addf %452, %454 : vector<1x128xf32>
    %456 = arith.negf %455 : vector<1x128xf32>
    %457 = math.exp %456 : vector<1x128xf32>
    %cst_53 = arith.constant 1.000000e+00 : f32
    %458 = vector.broadcast %cst_53 : f32 to vector<1x128xf32>
    %459 = arith.addf %458, %457 : vector<1x128xf32>
    %460 = arith.divf %458, %459 : vector<1x128xf32>
    %461 = math.tanh %455 : vector<1x128xf32>
    %462 = vector.extract_strided_slice %460 {offsets = [0, 0], sizes = [1, 32], strides = [1, 1]} : vector<1x128xf32> to vector<1x32xf32>
    %463 = vector.extract_strided_slice %460 {offsets = [0, 32], sizes = [1, 32], strides = [1, 1]} : vector<1x128xf32> to vector<1x32xf32>
    %464 = vector.extract_strided_slice %461 {offsets = [0, 64], sizes = [1, 32], strides = [1, 1]} : vector<1x128xf32> to vector<1x32xf32>
    %465 = vector.extract_strided_slice %460 {offsets = [0, 96], sizes = [1, 32], strides = [1, 1]} : vector<1x128xf32> to vector<1x32xf32>
    %466 = arith.mulf %463, %449 : vector<1x32xf32>
    %467 = arith.mulf %462, %464 : vector<1x32xf32>
    %468 = arith.addf %466, %467 : vector<1x32xf32>
    %469 = math.tanh %468 : vector<1x32xf32>
    %470 = arith.mulf %465, %469 : vector<1x32xf32>
    %471 = vector.extract_strided_slice %11 {offsets = [24, 0], sizes = [1, 128], strides = [1, 1]} : vector<32x128xf32> to vector<1x128xf32>
    %472 = arith.truncf %470 : vector<1x32xf32> to vector<1x32xbf16>
    %cst_54 = arith.constant dense<0.000000e+00> : vector<1x128xf32>
    %473 = tpu.matmul %472, %12, %cst_54 {dimension_numbers = #tpu.dot_dimension_numbers<[1], [0], [0], [1], [0, 0, 1, 1], [], []>} : vector<1x32xbf16>, vector<32x128xbf16>, vector<1x128xf32> -> vector<1x128xf32>
    %474 = arith.addf %471, %473 : vector<1x128xf32>
    %475 = arith.negf %474 : vector<1x128xf32>
    %476 = math.exp %475 : vector<1x128xf32>
    %cst_55 = arith.constant 1.000000e+00 : f32
    %477 = vector.broadcast %cst_55 : f32 to vector<1x128xf32>
    %478 = arith.addf %477, %476 : vector<1x128xf32>
    %479 = arith.divf %477, %478 : vector<1x128xf32>
    %480 = math.tanh %474 : vector<1x128xf32>
    %481 = vector.extract_strided_slice %479 {offsets = [0, 0], sizes = [1, 32], strides = [1, 1]} : vector<1x128xf32> to vector<1x32xf32>
    %482 = vector.extract_strided_slice %479 {offsets = [0, 32], sizes = [1, 32], strides = [1, 1]} : vector<1x128xf32> to vector<1x32xf32>
    %483 = vector.extract_strided_slice %480 {offsets = [0, 64], sizes = [1, 32], strides = [1, 1]} : vector<1x128xf32> to vector<1x32xf32>
    %484 = vector.extract_strided_slice %479 {offsets = [0, 96], sizes = [1, 32], strides = [1, 1]} : vector<1x128xf32> to vector<1x32xf32>
    %485 = arith.mulf %482, %468 : vector<1x32xf32>
    %486 = arith.mulf %481, %483 : vector<1x32xf32>
    %487 = arith.addf %485, %486 : vector<1x32xf32>
    %488 = math.tanh %487 : vector<1x32xf32>
    %489 = arith.mulf %484, %488 : vector<1x32xf32>
    %490 = vector.extract_strided_slice %11 {offsets = [25, 0], sizes = [1, 128], strides = [1, 1]} : vector<32x128xf32> to vector<1x128xf32>
    %491 = arith.truncf %489 : vector<1x32xf32> to vector<1x32xbf16>
    %cst_56 = arith.constant dense<0.000000e+00> : vector<1x128xf32>
    %492 = tpu.matmul %491, %12, %cst_56 {dimension_numbers = #tpu.dot_dimension_numbers<[1], [0], [0], [1], [0, 0, 1, 1], [], []>} : vector<1x32xbf16>, vector<32x128xbf16>, vector<1x128xf32> -> vector<1x128xf32>
    %493 = arith.addf %490, %492 : vector<1x128xf32>
    %494 = arith.negf %493 : vector<1x128xf32>
    %495 = math.exp %494 : vector<1x128xf32>
    %cst_57 = arith.constant 1.000000e+00 : f32
    %496 = vector.broadcast %cst_57 : f32 to vector<1x128xf32>
    %497 = arith.addf %496, %495 : vector<1x128xf32>
    %498 = arith.divf %496, %497 : vector<1x128xf32>
    %499 = math.tanh %493 : vector<1x128xf32>
    %500 = vector.extract_strided_slice %498 {offsets = [0, 0], sizes = [1, 32], strides = [1, 1]} : vector<1x128xf32> to vector<1x32xf32>
    %501 = vector.extract_strided_slice %498 {offsets = [0, 32], sizes = [1, 32], strides = [1, 1]} : vector<1x128xf32> to vector<1x32xf32>
    %502 = vector.extract_strided_slice %499 {offsets = [0, 64], sizes = [1, 32], strides = [1, 1]} : vector<1x128xf32> to vector<1x32xf32>
    %503 = vector.extract_strided_slice %498 {offsets = [0, 96], sizes = [1, 32], strides = [1, 1]} : vector<1x128xf32> to vector<1x32xf32>
    %504 = arith.mulf %501, %487 : vector<1x32xf32>
    %505 = arith.mulf %500, %502 : vector<1x32xf32>
    %506 = arith.addf %504, %505 : vector<1x32xf32>
    %507 = math.tanh %506 : vector<1x32xf32>
    %508 = arith.mulf %503, %507 : vector<1x32xf32>
    %509 = vector.extract_strided_slice %11 {offsets = [26, 0], sizes = [1, 128], strides = [1, 1]} : vector<32x128xf32> to vector<1x128xf32>
    %510 = arith.truncf %508 : vector<1x32xf32> to vector<1x32xbf16>
    %cst_58 = arith.constant dense<0.000000e+00> : vector<1x128xf32>
    %511 = tpu.matmul %510, %12, %cst_58 {dimension_numbers = #tpu.dot_dimension_numbers<[1], [0], [0], [1], [0, 0, 1, 1], [], []>} : vector<1x32xbf16>, vector<32x128xbf16>, vector<1x128xf32> -> vector<1x128xf32>
    %512 = arith.addf %509, %511 : vector<1x128xf32>
    %513 = arith.negf %512 : vector<1x128xf32>
    %514 = math.exp %513 : vector<1x128xf32>
    %cst_59 = arith.constant 1.000000e+00 : f32
    %515 = vector.broadcast %cst_59 : f32 to vector<1x128xf32>
    %516 = arith.addf %515, %514 : vector<1x128xf32>
    %517 = arith.divf %515, %516 : vector<1x128xf32>
    %518 = math.tanh %512 : vector<1x128xf32>
    %519 = vector.extract_strided_slice %517 {offsets = [0, 0], sizes = [1, 32], strides = [1, 1]} : vector<1x128xf32> to vector<1x32xf32>
    %520 = vector.extract_strided_slice %517 {offsets = [0, 32], sizes = [1, 32], strides = [1, 1]} : vector<1x128xf32> to vector<1x32xf32>
    %521 = vector.extract_strided_slice %518 {offsets = [0, 64], sizes = [1, 32], strides = [1, 1]} : vector<1x128xf32> to vector<1x32xf32>
    %522 = vector.extract_strided_slice %517 {offsets = [0, 96], sizes = [1, 32], strides = [1, 1]} : vector<1x128xf32> to vector<1x32xf32>
    %523 = arith.mulf %520, %506 : vector<1x32xf32>
    %524 = arith.mulf %519, %521 : vector<1x32xf32>
    %525 = arith.addf %523, %524 : vector<1x32xf32>
    %526 = math.tanh %525 : vector<1x32xf32>
    %527 = arith.mulf %522, %526 : vector<1x32xf32>
    %528 = vector.extract_strided_slice %11 {offsets = [27, 0], sizes = [1, 128], strides = [1, 1]} : vector<32x128xf32> to vector<1x128xf32>
    %529 = arith.truncf %527 : vector<1x32xf32> to vector<1x32xbf16>
    %cst_60 = arith.constant dense<0.000000e+00> : vector<1x128xf32>
    %530 = tpu.matmul %529, %12, %cst_60 {dimension_numbers = #tpu.dot_dimension_numbers<[1], [0], [0], [1], [0, 0, 1, 1], [], []>} : vector<1x32xbf16>, vector<32x128xbf16>, vector<1x128xf32> -> vector<1x128xf32>
    %531 = arith.addf %528, %530 : vector<1x128xf32>
    %532 = arith.negf %531 : vector<1x128xf32>
    %533 = math.exp %532 : vector<1x128xf32>
    %cst_61 = arith.constant 1.000000e+00 : f32
    %534 = vector.broadcast %cst_61 : f32 to vector<1x128xf32>
    %535 = arith.addf %534, %533 : vector<1x128xf32>
    %536 = arith.divf %534, %535 : vector<1x128xf32>
    %537 = math.tanh %531 : vector<1x128xf32>
    %538 = vector.extract_strided_slice %536 {offsets = [0, 0], sizes = [1, 32], strides = [1, 1]} : vector<1x128xf32> to vector<1x32xf32>
    %539 = vector.extract_strided_slice %536 {offsets = [0, 32], sizes = [1, 32], strides = [1, 1]} : vector<1x128xf32> to vector<1x32xf32>
    %540 = vector.extract_strided_slice %537 {offsets = [0, 64], sizes = [1, 32], strides = [1, 1]} : vector<1x128xf32> to vector<1x32xf32>
    %541 = vector.extract_strided_slice %536 {offsets = [0, 96], sizes = [1, 32], strides = [1, 1]} : vector<1x128xf32> to vector<1x32xf32>
    %542 = arith.mulf %539, %525 : vector<1x32xf32>
    %543 = arith.mulf %538, %540 : vector<1x32xf32>
    %544 = arith.addf %542, %543 : vector<1x32xf32>
    %545 = math.tanh %544 : vector<1x32xf32>
    %546 = arith.mulf %541, %545 : vector<1x32xf32>
    %547 = vector.extract_strided_slice %11 {offsets = [28, 0], sizes = [1, 128], strides = [1, 1]} : vector<32x128xf32> to vector<1x128xf32>
    %548 = arith.truncf %546 : vector<1x32xf32> to vector<1x32xbf16>
    %cst_62 = arith.constant dense<0.000000e+00> : vector<1x128xf32>
    %549 = tpu.matmul %548, %12, %cst_62 {dimension_numbers = #tpu.dot_dimension_numbers<[1], [0], [0], [1], [0, 0, 1, 1], [], []>} : vector<1x32xbf16>, vector<32x128xbf16>, vector<1x128xf32> -> vector<1x128xf32>
    %550 = arith.addf %547, %549 : vector<1x128xf32>
    %551 = arith.negf %550 : vector<1x128xf32>
    %552 = math.exp %551 : vector<1x128xf32>
    %cst_63 = arith.constant 1.000000e+00 : f32
    %553 = vector.broadcast %cst_63 : f32 to vector<1x128xf32>
    %554 = arith.addf %553, %552 : vector<1x128xf32>
    %555 = arith.divf %553, %554 : vector<1x128xf32>
    %556 = math.tanh %550 : vector<1x128xf32>
    %557 = vector.extract_strided_slice %555 {offsets = [0, 0], sizes = [1, 32], strides = [1, 1]} : vector<1x128xf32> to vector<1x32xf32>
    %558 = vector.extract_strided_slice %555 {offsets = [0, 32], sizes = [1, 32], strides = [1, 1]} : vector<1x128xf32> to vector<1x32xf32>
    %559 = vector.extract_strided_slice %556 {offsets = [0, 64], sizes = [1, 32], strides = [1, 1]} : vector<1x128xf32> to vector<1x32xf32>
    %560 = vector.extract_strided_slice %555 {offsets = [0, 96], sizes = [1, 32], strides = [1, 1]} : vector<1x128xf32> to vector<1x32xf32>
    %561 = arith.mulf %558, %544 : vector<1x32xf32>
    %562 = arith.mulf %557, %559 : vector<1x32xf32>
    %563 = arith.addf %561, %562 : vector<1x32xf32>
    %564 = math.tanh %563 : vector<1x32xf32>
    %565 = arith.mulf %560, %564 : vector<1x32xf32>
    %566 = vector.extract_strided_slice %11 {offsets = [29, 0], sizes = [1, 128], strides = [1, 1]} : vector<32x128xf32> to vector<1x128xf32>
    %567 = arith.truncf %565 : vector<1x32xf32> to vector<1x32xbf16>
    %cst_64 = arith.constant dense<0.000000e+00> : vector<1x128xf32>
    %568 = tpu.matmul %567, %12, %cst_64 {dimension_numbers = #tpu.dot_dimension_numbers<[1], [0], [0], [1], [0, 0, 1, 1], [], []>} : vector<1x32xbf16>, vector<32x128xbf16>, vector<1x128xf32> -> vector<1x128xf32>
    %569 = arith.addf %566, %568 : vector<1x128xf32>
    %570 = arith.negf %569 : vector<1x128xf32>
    %571 = math.exp %570 : vector<1x128xf32>
    %cst_65 = arith.constant 1.000000e+00 : f32
    %572 = vector.broadcast %cst_65 : f32 to vector<1x128xf32>
    %573 = arith.addf %572, %571 : vector<1x128xf32>
    %574 = arith.divf %572, %573 : vector<1x128xf32>
    %575 = math.tanh %569 : vector<1x128xf32>
    %576 = vector.extract_strided_slice %574 {offsets = [0, 0], sizes = [1, 32], strides = [1, 1]} : vector<1x128xf32> to vector<1x32xf32>
    %577 = vector.extract_strided_slice %574 {offsets = [0, 32], sizes = [1, 32], strides = [1, 1]} : vector<1x128xf32> to vector<1x32xf32>
    %578 = vector.extract_strided_slice %575 {offsets = [0, 64], sizes = [1, 32], strides = [1, 1]} : vector<1x128xf32> to vector<1x32xf32>
    %579 = vector.extract_strided_slice %574 {offsets = [0, 96], sizes = [1, 32], strides = [1, 1]} : vector<1x128xf32> to vector<1x32xf32>
    %580 = arith.mulf %577, %563 : vector<1x32xf32>
    %581 = arith.mulf %576, %578 : vector<1x32xf32>
    %582 = arith.addf %580, %581 : vector<1x32xf32>
    %583 = math.tanh %582 : vector<1x32xf32>
    %584 = arith.mulf %579, %583 : vector<1x32xf32>
    %585 = vector.extract_strided_slice %11 {offsets = [30, 0], sizes = [1, 128], strides = [1, 1]} : vector<32x128xf32> to vector<1x128xf32>
    %586 = arith.truncf %584 : vector<1x32xf32> to vector<1x32xbf16>
    %cst_66 = arith.constant dense<0.000000e+00> : vector<1x128xf32>
    %587 = tpu.matmul %586, %12, %cst_66 {dimension_numbers = #tpu.dot_dimension_numbers<[1], [0], [0], [1], [0, 0, 1, 1], [], []>} : vector<1x32xbf16>, vector<32x128xbf16>, vector<1x128xf32> -> vector<1x128xf32>
    %588 = arith.addf %585, %587 : vector<1x128xf32>
    %589 = arith.negf %588 : vector<1x128xf32>
    %590 = math.exp %589 : vector<1x128xf32>
    %cst_67 = arith.constant 1.000000e+00 : f32
    %591 = vector.broadcast %cst_67 : f32 to vector<1x128xf32>
    %592 = arith.addf %591, %590 : vector<1x128xf32>
    %593 = arith.divf %591, %592 : vector<1x128xf32>
    %594 = math.tanh %588 : vector<1x128xf32>
    %595 = vector.extract_strided_slice %593 {offsets = [0, 0], sizes = [1, 32], strides = [1, 1]} : vector<1x128xf32> to vector<1x32xf32>
    %596 = vector.extract_strided_slice %593 {offsets = [0, 32], sizes = [1, 32], strides = [1, 1]} : vector<1x128xf32> to vector<1x32xf32>
    %597 = vector.extract_strided_slice %594 {offsets = [0, 64], sizes = [1, 32], strides = [1, 1]} : vector<1x128xf32> to vector<1x32xf32>
    %598 = vector.extract_strided_slice %593 {offsets = [0, 96], sizes = [1, 32], strides = [1, 1]} : vector<1x128xf32> to vector<1x32xf32>
    %599 = arith.mulf %596, %582 : vector<1x32xf32>
    %600 = arith.mulf %595, %597 : vector<1x32xf32>
    %601 = arith.addf %599, %600 : vector<1x32xf32>
    %602 = math.tanh %601 : vector<1x32xf32>
    %603 = arith.mulf %598, %602 : vector<1x32xf32>
    %604 = vector.extract_strided_slice %11 {offsets = [31, 0], sizes = [1, 128], strides = [1, 1]} : vector<32x128xf32> to vector<1x128xf32>
    %605 = arith.truncf %603 : vector<1x32xf32> to vector<1x32xbf16>
    %cst_68 = arith.constant dense<0.000000e+00> : vector<1x128xf32>
    %606 = tpu.matmul %605, %12, %cst_68 {dimension_numbers = #tpu.dot_dimension_numbers<[1], [0], [0], [1], [0, 0, 1, 1], [], []>} : vector<1x32xbf16>, vector<32x128xbf16>, vector<1x128xf32> -> vector<1x128xf32>
    %607 = arith.addf %604, %606 : vector<1x128xf32>
    %608 = arith.negf %607 : vector<1x128xf32>
    %609 = math.exp %608 : vector<1x128xf32>
    %cst_69 = arith.constant 1.000000e+00 : f32
    %610 = vector.broadcast %cst_69 : f32 to vector<1x128xf32>
    %611 = arith.addf %610, %609 : vector<1x128xf32>
    %612 = arith.divf %610, %611 : vector<1x128xf32>
    %613 = math.tanh %607 : vector<1x128xf32>
    %614 = vector.extract_strided_slice %612 {offsets = [0, 0], sizes = [1, 32], strides = [1, 1]} : vector<1x128xf32> to vector<1x32xf32>
    %615 = vector.extract_strided_slice %612 {offsets = [0, 32], sizes = [1, 32], strides = [1, 1]} : vector<1x128xf32> to vector<1x32xf32>
    %616 = vector.extract_strided_slice %613 {offsets = [0, 64], sizes = [1, 32], strides = [1, 1]} : vector<1x128xf32> to vector<1x32xf32>
    %617 = vector.extract_strided_slice %612 {offsets = [0, 96], sizes = [1, 32], strides = [1, 1]} : vector<1x128xf32> to vector<1x32xf32>
    %618 = arith.mulf %615, %601 : vector<1x32xf32>
    %619 = arith.mulf %614, %616 : vector<1x32xf32>
    %620 = arith.addf %618, %619 : vector<1x32xf32>
    %621 = math.tanh %620 : vector<1x32xf32>
    %622 = arith.mulf %617, %621 : vector<1x32xf32>
    %623 = arith.mulf %622, %622 : vector<1x32xf32>
    %cst_70 = arith.constant dense<0.000000e+00> : vector<1xf32>
    %624 = vector.multi_reduction <add>, %623, %cst_70 [1] : vector<1x32xf32> to vector<1xf32>
    %625 = vector.shape_cast %624 : vector<1xf32> to vector<1x1xf32>
    %626 = math.sqrt %625 : vector<1x1xf32>
    %cst_71 = arith.constant 9.99999996E-13 : f32
    %627 = vector.broadcast %cst_71 : f32 to vector<1x1xf32>
    %628 = arith.maximumf %626, %627 : vector<1x1xf32>
    %629 = vector.broadcast %628 : vector<1x1xf32> to vector<1x32xf32>
    %630 = arith.divf %622, %629 : vector<1x32xf32>
    %c112 = arith.constant 112 : index
    %c0_72 = arith.constant 0 : index
    %631 = vector.load %arg4[%c112, %c0_72] : memref<160x32xbf16, #tpu.memory_space<vmem>>, vector<32x32xbf16>
    %c144 = arith.constant 144 : index
    %c0_73 = arith.constant 0 : index
    %632 = vector.load %arg4[%c144, %c0_73] : memref<160x32xbf16, #tpu.memory_space<vmem>>, vector<1x32xbf16>
    %633 = arith.extf %632 : vector<1x32xbf16> to vector<1x32xf32>
    %634 = arith.truncf %622 : vector<1x32xf32> to vector<1x32xbf16>
    %cst_74 = arith.constant dense<0.000000e+00> : vector<1x32xf32>
    %635 = tpu.matmul %634, %631, %cst_74 {dimension_numbers = #tpu.dot_dimension_numbers<[1], [0], [0], [1], [0, 0, 1, 1], [], []>} : vector<1x32xbf16>, vector<32x32xbf16>, vector<1x32xf32> -> vector<1x32xf32>
    %636 = arith.addf %635, %633 : vector<1x32xf32>
    %637 = tpu.iota {dimensions = array<i32: 1>} : vector<1x32xi32>
    %c3_i32 = arith.constant 3 : i32
    %638 = vector.broadcast %c3_i32 : i32 to vector<1x32xi32>
    %639 = arith.cmpi slt, %637, %638 : vector<1x32xi32>
    %cst_75 = arith.constant -1.000000e+30 : f32
    %640 = vector.broadcast %cst_75 : f32 to vector<1x32xf32>
    %641 = arith.select %639, %636, %640 : vector<1x32xi1>, vector<1x32xf32>
    %cst_76 = arith.constant dense<0xFF800000> : vector<1xf32>
    %642 = vector.multi_reduction <maximumf>, %641, %cst_76 [1] : vector<1x32xf32> to vector<1xf32>
    %643 = vector.shape_cast %642 : vector<1xf32> to vector<1x1xf32>
    %644 = vector.broadcast %643 : vector<1x1xf32> to vector<1x32xf32>
    %645 = arith.subf %641, %644 : vector<1x32xf32>
    %646 = math.exp %645 : vector<1x32xf32>
    %cst_77 = arith.constant dense<0.000000e+00> : vector<1xf32>
    %647 = vector.multi_reduction <add>, %646, %cst_77 [1] : vector<1x32xf32> to vector<1xf32>
    %648 = vector.shape_cast %647 : vector<1xf32> to vector<1x1xf32>
    %649 = vector.broadcast %648 : vector<1x1xf32> to vector<1x32xf32>
    %650 = arith.divf %646, %649 : vector<1x32xf32>
    %651 = tpu.iota {dimensions = array<i32: 1>} : vector<16x48xi32>
    %c0_78 = arith.constant 0 : index
    %c0_79 = arith.constant 0 : index
    %652 = vector.load %arg1[%c0_78, %c0_79] : memref<16x3xi32, #tpu.memory_space<vmem>>, vector<16x1xi32>
    %653 = vector.broadcast %652 : vector<16x1xi32> to vector<16x48xi32>
    %654 = arith.cmpi eq, %651, %653 : vector<16x48xi32>
    %c0_80 = arith.constant 0 : index
    %c1 = arith.constant 1 : index
    %655 = vector.load %arg1[%c0_80, %c1] : memref<16x3xi32, #tpu.memory_space<vmem>>, vector<16x1xi32>
    %656 = vector.broadcast %655 : vector<16x1xi32> to vector<16x48xi32>
    %657 = arith.cmpi eq, %651, %656 : vector<16x48xi32>
    %658 = arith.ori %654, %657 : vector<16x48xi1>
    %c0_81 = arith.constant 0 : index
    %c2 = arith.constant 2 : index
    %659 = vector.load %arg1[%c0_81, %c2] : memref<16x3xi32, #tpu.memory_space<vmem>>, vector<16x1xi32>
    %660 = vector.broadcast %659 : vector<16x1xi32> to vector<16x48xi32>
    %661 = arith.cmpi eq, %651, %660 : vector<16x48xi32>
    %662 = arith.ori %658, %661 : vector<16x48xi1>
    %663 = arith.extui %662 : vector<16x48xi1> to vector<16x48xi32>
    %664 = arith.sitofp %663 : vector<16x48xi32> to vector<16x48xf32>
    %665 = arith.truncf %664 : vector<16x48xf32> to vector<16x48xbf16>
    %c0_82 = arith.constant 0 : index
    %c0_83 = arith.constant 0 : index
    %666 = vector.load %arg4[%c0_82, %c0_83] : memref<160x32xbf16, #tpu.memory_space<vmem>>, vector<48x32xbf16>
    %cst_84 = arith.constant dense<0.000000e+00> : vector<16x32xf32>
    %667 = tpu.matmul %665, %666, %cst_84 {dimension_numbers = #tpu.dot_dimension_numbers<[1], [0], [0], [1], [0, 0, 1, 1], [], []>} : vector<16x48xbf16>, vector<48x32xbf16>, vector<16x32xf32> -> vector<16x32xf32>
    %cst_85 = arith.constant dense<0.000000e+00> : vector<32xf32>
    %668 = vector.multi_reduction <add>, %667, %cst_85 [0] : vector<16x32xf32> to vector<32xf32>
    %669 = vector.shape_cast %668 : vector<32xf32> to vector<1x32xf32>
    %cst_86 = arith.constant 1.600000e+01 : f32
    %670 = vector.broadcast %cst_86 : f32 to vector<1x32xf32>
    %671 = arith.divf %669, %670 : vector<1x32xf32>
    %672 = vector.broadcast %671 : vector<1x32xf32> to vector<16x32xf32>
    %673 = arith.subf %667, %672 : vector<16x32xf32>
    %674 = arith.mulf %673, %673 : vector<16x32xf32>
    %cst_87 = arith.constant dense<0.000000e+00> : vector<32xf32>
    %675 = vector.multi_reduction <add>, %674, %cst_87 [0] : vector<16x32xf32> to vector<32xf32>
    %676 = vector.shape_cast %675 : vector<32xf32> to vector<1x32xf32>
    %cst_88 = arith.constant 1.600000e+01 : f32
    %677 = vector.broadcast %cst_88 : f32 to vector<1x32xf32>
    %678 = arith.divf %676, %677 : vector<1x32xf32>
    %679 = vector.broadcast %671 : vector<1x32xf32> to vector<16x32xf32>
    %680 = arith.subf %667, %679 : vector<16x32xf32>
    %cst_89 = arith.constant 9.99999974E-6 : f32
    %681 = vector.broadcast %cst_89 : f32 to vector<1x32xf32>
    %682 = arith.addf %678, %681 : vector<1x32xf32>
    %683 = math.rsqrt %682 : vector<1x32xf32>
    %684 = vector.broadcast %683 : vector<1x32xf32> to vector<16x32xf32>
    %685 = arith.mulf %680, %684 : vector<16x32xf32>
    %686 = tpu.iota {dimensions = array<i32: 0>} : vector<16x16xi32>
    %687 = tpu.iota {dimensions = array<i32: 1>} : vector<16x16xi32>
    %c0_90 = arith.constant 0 : index
    %c0_91 = arith.constant 0 : index
    %688 = vector.load %arg2[%c0_90, %c0_91] : memref<16x16xf32, #tpu.memory_space<vmem>>, vector<16x16xf32>
    %689 = arith.cmpi eq, %686, %687 : vector<16x16xi32>
    %690 = arith.extui %689 : vector<16x16xi1> to vector<16x16xi32>
    %691 = arith.sitofp %690 : vector<16x16xi32> to vector<16x16xf32>
    %692 = arith.addf %688, %691 : vector<16x16xf32>
    %cst_92 = arith.constant dense<0.000000e+00> : vector<16xf32>
    %693 = vector.multi_reduction <add>, %692, %cst_92 [1] : vector<16x16xf32> to vector<16xf32>
    %694 = vector.shape_cast %693 : vector<16xf32> to vector<16x1xf32>
    %695 = math.rsqrt %694 : vector<16x1xf32>
    %696 = arith.truncf %692 : vector<16x16xf32> to vector<16x16xbf16>
    %c48 = arith.constant 48 : index
    %c0_93 = arith.constant 0 : index
    %697 = vector.load %arg4[%c48, %c0_93] : memref<160x32xbf16, #tpu.memory_space<vmem>>, vector<32x32xbf16>
    %c80 = arith.constant 80 : index
    %c0_94 = arith.constant 0 : index
    %698 = vector.load %arg4[%c80, %c0_94] : memref<160x32xbf16, #tpu.memory_space<vmem>>, vector<32x32xbf16>
    %699 = vector.broadcast %695 : vector<16x1xf32> to vector<16x32xf32>
    %700 = arith.mulf %699, %685 : vector<16x32xf32>
    %701 = arith.truncf %700 : vector<16x32xf32> to vector<16x32xbf16>
    %cst_95 = arith.constant dense<0.000000e+00> : vector<16x32xf32>
    %702 = tpu.matmul %696, %701, %cst_95 {dimension_numbers = #tpu.dot_dimension_numbers<[1], [0], [0], [1], [0, 0, 1, 1], [], []>} : vector<16x16xbf16>, vector<16x32xbf16>, vector<16x32xf32> -> vector<16x32xf32>
    %703 = vector.broadcast %695 : vector<16x1xf32> to vector<16x32xf32>
    %704 = arith.mulf %703, %702 : vector<16x32xf32>
    %705 = arith.truncf %704 : vector<16x32xf32> to vector<16x32xbf16>
    %cst_96 = arith.constant dense<0.000000e+00> : vector<16x32xf32>
    %706 = tpu.matmul %705, %697, %cst_96 {dimension_numbers = #tpu.dot_dimension_numbers<[1], [0], [0], [1], [0, 0, 1, 1], [], []>} : vector<16x32xbf16>, vector<32x32xbf16>, vector<16x32xf32> -> vector<16x32xf32>
    %cst_97 = arith.constant 0.000000e+00 : f32
    %707 = vector.broadcast %cst_97 : f32 to vector<16x32xf32>
    %708 = arith.maximumf %706, %707 : vector<16x32xf32>
    %709 = vector.broadcast %695 : vector<16x1xf32> to vector<16x32xf32>
    %710 = arith.mulf %709, %708 : vector<16x32xf32>
    %711 = arith.truncf %710 : vector<16x32xf32> to vector<16x32xbf16>
    %cst_98 = arith.constant dense<0.000000e+00> : vector<16x32xf32>
    %712 = tpu.matmul %696, %711, %cst_98 {dimension_numbers = #tpu.dot_dimension_numbers<[1], [0], [0], [1], [0, 0, 1, 1], [], []>} : vector<16x16xbf16>, vector<16x32xbf16>, vector<16x32xf32> -> vector<16x32xf32>
    %713 = vector.broadcast %695 : vector<16x1xf32> to vector<16x32xf32>
    %714 = arith.mulf %713, %712 : vector<16x32xf32>
    %715 = arith.truncf %714 : vector<16x32xf32> to vector<16x32xbf16>
    %cst_99 = arith.constant dense<0.000000e+00> : vector<16x32xf32>
    %716 = tpu.matmul %715, %698, %cst_99 {dimension_numbers = #tpu.dot_dimension_numbers<[1], [0], [0], [1], [0, 0, 1, 1], [], []>} : vector<16x32xbf16>, vector<32x32xbf16>, vector<16x32xf32> -> vector<16x32xf32>
    %717 = arith.mulf %716, %716 : vector<16x32xf32>
    %cst_100 = arith.constant dense<0.000000e+00> : vector<16xf32>
    %718 = vector.multi_reduction <add>, %717, %cst_100 [1] : vector<16x32xf32> to vector<16xf32>
    %719 = vector.shape_cast %718 : vector<16xf32> to vector<16x1xf32>
    %720 = math.sqrt %719 : vector<16x1xf32>
    %cst_101 = arith.constant 9.99999996E-13 : f32
    %721 = vector.broadcast %cst_101 : f32 to vector<16x1xf32>
    %722 = arith.maximumf %720, %721 : vector<16x1xf32>
    %723 = vector.broadcast %722 : vector<16x1xf32> to vector<16x32xf32>
    %724 = arith.divf %716, %723 : vector<16x32xf32>
    %cst_102 = arith.constant 0.000000e+00 : f32
    %725 = vector.broadcast %cst_102 : f32 to vector<16x96xf32>
    %726 = tpu.concatenate %724, %725 in 1 : vector<16x32xf32>, vector<16x96xf32> -> vector<16x128xf32>
    %cst_103 = arith.constant 0.000000e+00 : f32
    %727 = vector.broadcast %cst_103 : f32 to vector<1x64xf32>
    %728 = tpu.concatenate %630, %650, %727 in 1 : vector<1x32xf32>, vector<1x32xf32>, vector<1x64xf32> -> vector<1x128xf32>
    %cst_104 = arith.constant 0.000000e+00 : f32
    %729 = vector.broadcast %cst_104 : f32 to vector<7x128xf32>
    %730 = tpu.concatenate %726, %728, %729 in 0 : vector<16x128xf32>, vector<1x128xf32>, vector<7x128xf32> -> vector<24x128xf32>
    %c0_105 = arith.constant 0 : index
    %c0_106 = arith.constant 0 : index
    %731 = vector.load %arg5[%c0_105, %c0_106] : memref<24x128xf32, #tpu.memory_space<vmem>>, vector<24x128xf32>
    tpu.vector_store %arg5[%c0_105, %c0_106], %730 {strides = array<i32>} : memref<24x128xf32, #tpu.memory_space<vmem>>, vector<24x128xf32>,
    return
  }
}

</mosaic_0001>

<llo_original>
// kernel: tpu_custom_call.1
$region0: #{tpu_custom_call.1}
  #allocation0 [shape = 'u32[]', space=smem, size = 0x4, offset = 0x4, fixed_abs, tag = 'smem constant byte address 0x4 - core index']
  #allocation1 [shape = 'u32[144,128]{1,0:T(1,128)}', space=vmem, size = 0x12000, scoped, tag = 'internal scratch']
  %s0 = inlined_call_operand.vmem [shape: s32[32,1], index: 0, kind: input, shape index: {}]
  %s1 = inlined_call_operand.vmem [shape: s32[16,3], index: 1, kind: input, shape index: {}]
  %s2 = inlined_call_operand.vmem [shape: f32[16,16], index: 2, kind: input, shape index: {}]
  %s3 = inlined_call_operand.vmem [shape: bf16[88,128], index: 3, kind: input, shape index: {}]
  %s4 = inlined_call_operand.vmem [shape: bf16[160,32], index: 4, kind: input, shape index: {}]
  %s5 = inlined_call_operand.hbm [shape: f32[24,128], index: 5, kind: output, shape index: {}]
  %s6 = sld [smem:[#allocation0]]
  $region30: #{tpu_custom_call.1} parent=0
    _
  %s8 = ssub.s32 1, %s6
  %s9 = scalar_select 0, %s8, %s6
  $region1: #{tpu_custom_call.1} parent=0
    #allocation2 [shape = 'u8[12288]{0}', space=vmem, size = 0x3000, scoped, tag = 'output window, operand 0, single buffered']
    #allocation3 [shape = 's32[1]{0}', space=sflag, size = 0x4, scoped, tag = 'scoped memory for tpu_custom_call.1']
    %10 = vsyncpa [#allocation3], 0
    // Predicated region
    $region2: #{tpu_custom_call.1} parent=1 // pred_check
      _
    $region3: #{tpu_custom_call.1} parent=1 // pred_check_branch
      %12 = sbr.rel (0) target = $region5
    $region4: #{tpu_custom_call.1} parent=1 // pred_region
      _
    $region5: #{tpu_custom_call.1} parent=1 // pred_fallthru
      _
    // Predicated region
    $region6: #{tpu_custom_call.1} parent=1 // pred_check
      _
    $region7: #{tpu_custom_call.1} parent=1 // pred_check_branch
      %14 = sbr.rel (0) target = $region9
    $region8: #{tpu_custom_call.1} parent=1 // pred_region
      _
    $region9: #{tpu_custom_call.1} parent=1 // pred_fallthru
      _
    // Predicated region
    $region10: #{tpu_custom_call.1} parent=1 // pred_check
      _
    $region11: #{tpu_custom_call.1} parent=1 // pred_check_branch
      %16 = sbr.rel (0) target = $region13
    $region12: #{tpu_custom_call.1} parent=1 // pred_region
      _
    $region13: #{tpu_custom_call.1} parent=1 // pred_fallthru
      _
    // Predicated region
    $region14: #{tpu_custom_call.1} parent=1 // pred_check
      _
    $region15: #{tpu_custom_call.1} parent=1 // pred_check_branch
      %18 = sbr.rel (0) target = $region17
    $region16: #{tpu_custom_call.1} parent=1 // pred_region
      _
    $region17: #{tpu_custom_call.1} parent=1 // pred_fallthru
      _
    // Predicated region
    $region18: #{tpu_custom_call.1} parent=1 // pred_check
      _
    $region19: #{tpu_custom_call.1} parent=1 // pred_check_branch
      %20 = sbr.rel (0) target = $region21
    $region20: #{tpu_custom_call.1} parent=1 // pred_region
      _
    $region21: #{tpu_custom_call.1} parent=1 // pred_fallthru
      _
    %v22 = vlaneseq
    %v23 = vand.u32 %v22, 127
    %v24 = vld [vmem:[%s0] sm:$0xff]
    %v25 = vld [vmem:[%s0 + $0x8] sm:$0xff]
    %v26 = vld [vmem:[%s0 + $0x10] sm:$0xff]
    %v27 = vld [vmem:[%s0 + $0x18] sm:$0xff]
    %28 = vset.pattern.permute.xlu0 0
    %29 = vperm.xlu0 %28, %v24
    %v30 = vpop.permute.xlu0 %29
    %31 = vset.pattern.permute.xlu0 0
    %32 = vperm.xlu0 %31, %v25
    %v33 = vpop.permute.xlu0 %32
    %34 = vset.pattern.permute.xlu0 0
    %35 = vperm.xlu0 %34, %v26
    %v36 = vpop.permute.xlu0 %35
    %37 = vset.pattern.permute.xlu0 0
    %38 = vperm.xlu0 %37, %v27
    %v39 = vpop.permute.xlu0 %38
    %vm40 = vcmp.eq.s32.totalorder %v23, %v30
    %vm41 = vcmp.eq.s32.totalorder %v23, %v33
    %vm42 = vcmp.eq.s32.totalorder %v23, %v36
    %vm43 = vcmp.eq.s32.totalorder %v23, %v39
    %vm44 = vcmp.eq.s32.totalorder %v23, 50
    %vm45 = vmor %vm40, %vm44
    %vm46 = vmor %vm41, %vm44
    %vm47 = vmor %vm42, %vm44
    %vm48 = vmor %vm43, %vm44
    %v49 = vsel %vm45, 1, 0
    %v50 = vsel %vm46, 1, 0
    %v51 = vsel %vm47, 1, 0
    %v52 = vsel %vm48, 1, 0
    %v53 = vcvt.s32.f32 %v49
    %v54 = vcvt.s32.f32 %v50
    %v55 = vcvt.s32.f32 %v51
    %v56 = vcvt.s32.f32 %v52
    %v57 = vpack.c.bf16 %v54, %v53
    %v58 = vpack.c.bf16 %v56, %v55
    %v59 = vld [vmem:[%s3] sm:$0xf]
    %v60 = vld [vmem:[%s3 + $0x4] sm:$0xf]
    %v61 = vld [vmem:[%s3 + $0x8] sm:$0xf]
    %v62 = vld [vmem:[%s3 + $0xc] sm:$0xf]
    %v63 = vld [vmem:[%s3 + $0x10] sm:$0xf]
    %v64 = vld [vmem:[%s3 + $0x14] sm:$0xf]
    %v65 = vld [vmem:[%s3 + $0x18] sm:$0xf]
    %v73 = vunpack.c.l.b16 %v59
    %v74 = vunpack.c.l.b16 %v60
    %v75 = vunpack.c.l.b16 %v61
    %v76 = vunpack.c.l.b16 %v62
    %v77 = vunpack.c.l.b16 %v63
    %v78 = vunpack.c.l.b16 %v64
    %v79 = vunpack.c.l.b16 %v65
    %v80 = vpack.c.b16 %v74, %v73
    %v81 = vpack.c.b16 %v76, %v75
    %v82 = vpack.c.b16 %v78, %v77
    %v83 = vpack.c.b16 %v79, %v79
    %vm87 = vcmask 457728
    %v89 = vsel %vm87, %v57, 0
    %v92 = vsel %vm87, %v58, 0
    %vm94 = vcmask 1043456
    %v96 = vsel %vm94, %v83, 0
    %98 = vmatprep.subr.bf16.mxu0 0
    %99 = vmatpush1.bf16.msra.mxu0 0
    %100 = vmatprep.subr.bf16.mxu0 0
    %101 = vmatpush1.bf16.msra.mxu0 0
    %102 = vmatprep.subr.bf16.mxu0 0
    %103 = vmatpush1.bf16.msra.mxu0 0
    %104 = vmatprep.subr.bf16.mxu0 0
    %105 = vmatpush1.bf16.msra.mxu0 0
    %106 = vmatprep.subr.bf16.mxu0 0
    %107 = vmatpush1.bf16.msra.mxu0 %v96
    %108 = vmatprep.subr.bf16.mxu0 0
    %109 = vmatpush1.bf16.msra.mxu0 %v82
    %110 = vmatprep.subr.bf16.mxu0 0
    %111 = vmatpush1.bf16.msra.mxu0 %v81
    %112 = vmatprep.subr.bf16.mxu0 0
    %113 = vmatpush1.bf16.msra.mxu0 %v80
    %114 = vmatprep.subr.bf16.mxu0 0
    %115 = vmatpush2.bf16.msra.mxu0 0
    %116 = vmatprep.subr.bf16.mxu0 0
    %117 = vmatpush2.bf16.msra.mxu0 0
    %118 = vmatprep.subr.bf16.mxu0 0
    %119 = vmatpush2.bf16.msra.mxu0 0
    %120 = vmatprep.subr.bf16.mxu0 0
    %121 = vmatpush2.bf16.msra.mxu0 0
    %122 = vmatprep.subr.bf16.mxu0 0
    %123 = vmatpush2.bf16.msra.mxu0 0
    %124 = vmatprep.subr.bf16.mxu0 0
    %125 = vmatpush2.bf16.msra.mxu0 0
    %126 = vmatprep.subr.bf16.mxu0 0
    %127 = vmatpush2.bf16.msra.mxu0 0
    %128 = vmatprep.subr.bf16.mxu0 0
    %129 = vmatpush2.bf16.msra.mxu0 0
    %130 = vmatprep.mubr.bf16.mxu0 0
    %131 = vmatmul.mubr.bf16.gmra.mxu0 %v89
    %v132 = vpop.f32.mrf.mxu0
    %v133 = vadd.f32 0.0, %v132
    %v134 = vpop.f32.mrf.mxu0
    %v135 = vpop.f32.mrf.mxu0
    %v136 = vadd.f32 0.0, %v135
    %v137 = vpop.f32.mrf.mxu0
    %138 = vmatprep.mubr.bf16.mxu0 0
    %139 = vmatmul.mubr.bf16.gmra.mxu0 %v92
    %v140 = vpop.f32.mrf.mxu0
    %v141 = vadd.f32 0.0, %v140
    %v142 = vpop.f32.mrf.mxu0
    %v143 = vpop.f32.mrf.mxu0
    %v144 = vadd.f32 0.0, %v143
    %v145 = vpop.f32.mrf.mxu0
    %146 = vdwg.mxu0
    %v147 = vld [vmem:[%s3 + $0x1c] sm:$0xf]
    %v148 = vld [vmem:[%s3 + $0x20] sm:$0xf]
    %v149 = vld [vmem:[%s3 + $0x24] sm:$0xf]
    %v150 = vld [vmem:[%s3 + $0x28] sm:$0xf]
    %v155 = vunpack.c.l.b16 %v147
    %v156 = vunpack.c.l.b16 %v148
    %v157 = vunpack.c.l.b16 %v149
    %v158 = vunpack.c.l.b16 %v150
    %v159 = vpack.c.b16 %v156, %v155
    %v160 = vpack.c.b16 %v158, %v157
    %vm163 = vcmask 261120
    %v165 = vsel %vm163, 0, 0
    %167 = vmatprep.subr.bf16.mxu0 0
    %168 = vmatpush1.bf16.msra.mxu0 0
    %169 = vmatprep.subr.bf16.mxu0 0
    %170 = vmatpush1.bf16.msra.mxu0 0
    %171 = vmatprep.subr.bf16.mxu0 0
    %172 = vmatpush1.bf16.msra.mxu0 0
    %173 = vmatprep.subr.bf16.mxu0 0
    %174 = vmatpush1.bf16.msra.mxu0 0
    %175 = vmatprep.subr.bf16.mxu0 0
    %176 = vmatpush1.bf16.msra.mxu0 0
    %177 = vmatprep.subr.bf16.mxu0 0
    %178 = vmatpush1.bf16.msra.mxu0 0
    %179 = vmatprep.subr.bf16.mxu0 0
    %180 = vmatpush1.bf16.msra.mxu0 %v160
    %181 = vmatprep.subr.bf16.mxu0 0
    %182 = vmatpush1.bf16.msra.mxu0 %v159
    %183 = vmatprep.subr.bf16.mxu0 0
    %184 = vmatpush2.bf16.msra.mxu0 0
    %185 = vmatprep.subr.bf16.mxu0 0
    %186 = vmatpush2.bf16.msra.mxu0 0
    %187 = vmatprep.subr.bf16.mxu0 0
    %188 = vmatpush2.bf16.msra.mxu0 0
    %189 = vmatprep.subr.bf16.mxu0 0
    %190 = vmatpush2.bf16.msra.mxu0 0
    %191 = vmatprep.subr.bf16.mxu0 0
    %192 = vmatpush2.bf16.msra.mxu0 0
    %193 = vmatprep.subr.bf16.mxu0 0
    %194 = vmatpush2.bf16.msra.mxu0 0
    %195 = vmatprep.subr.bf16.mxu0 0
    %196 = vmatpush2.bf16.msra.mxu0 0
    %197 = vmatprep.subr.bf16.mxu0 0
    %198 = vmatpush2.bf16.msra.mxu0 0
    %199 = vmatprep.mubr.bf16.mxu0 0
    %200 = vmatmul.mubr.bf16.gmra.mxu0 %v165
    %v201 = vpop.f32.mrf.mxu0
    %v202 = vadd.f32 0.0, %v201
    %v203 = vpop.f32.mrf.mxu0
    %v204 = vpop.f32.mrf.mxu0
    %v205 = vpop.f32.mrf.mxu0
    %206 = vdwg.mxu0
    %v207 = vadd.f32 %v133, %v202
    %v208 = vxor.u32 %v207, 2147483648
    %v209 = vmul.f32 %v208, 1.442695
    %v210 = vpow.pop %v209
    %v211 = vadd.f32 %v210, 1.0
    %v212 = vrcp.pop %v211
    %v213 = vmul.f32 1.0, %v212
    %v214 = vtanh.pop %v207
    %v215 = vmul.f32 %v213, 0.0
    %217 = vrot.lane.b32.xlu0 %v214, 64
    %v218 = vpop.permute.xlu0 %217
    %v220 = vmul.f32 %v213, %v218
    %222 = vrot.lane.b32.xlu0 %v220, 32
    %v223 = vpop.permute.xlu0 %222
    %v225 = vadd.f32 %v215, %v223
    %v226 = vtanh.pop %v225
    %228 = vrot.lane.b32.xlu0 %v226, 64
    %v229 = vpop.permute.xlu0 %228
    %v231 = vmul.f32 %v213, %v229
    %v232 = vpack.c.bf16 %v231, %v231
    %234 = vrot.lane.b32.xlu0 %v232, 32
    %v235 = vpop.permute.xlu0 %234
    %v237 = vsel %vm163, %v235, 0
    %239 = vmatprep.subr.bf16.mxu0 0
    %240 = vmatpush1.bf16.msra.mxu0 0
    %241 = vmatprep.subr.bf16.mxu0 0
    %242 = vmatpush1.bf16.msra.mxu0 0
    %243 = vmatprep.subr.bf16.mxu0 0
    %244 = vmatpush1.bf16.msra.mxu0 0
    %245 = vmatprep.subr.bf16.mxu0 0
    %246 = vmatpush1.bf16.msra.mxu0 0
    %247 = vmatprep.subr.bf16.mxu0 0
    %248 = vmatpush1.bf16.msra.mxu0 0
    %249 = vmatprep.subr.bf16.mxu0 0
    %250 = vmatpush1.bf16.msra.mxu0 0
    %251 = vmatprep.subr.bf16.mxu0 0
    %252 = vmatpush1.bf16.msra.mxu0 %v160
    %253 = vmatprep.subr.bf16.mxu0 0
    %254 = vmatpush1.bf16.msra.mxu0 %v159
    %255 = vmatprep.subr.bf16.mxu0 0
    %256 = vmatpush2.bf16.msra.mxu0 0
    %257 = vmatprep.subr.bf16.mxu0 0
    %258 = vmatpush2.bf16.msra.mxu0 0
    %259 = vmatprep.subr.bf16.mxu0 0
    %260 = vmatpush2.bf16.msra.mxu0 0
    %261 = vmatprep.subr.bf16.mxu0 0
    %262 = vmatpush2.bf16.msra.mxu0 0
    %263 = vmatprep.subr.bf16.mxu0 0
    %264 = vmatpush2.bf16.msra.mxu0 0
    %265 = vmatprep.subr.bf16.mxu0 0
    %266 = vmatpush2.bf16.msra.mxu0 0
    %267 = vmatprep.subr.bf16.mxu0 0
    %268 = vmatpush2.bf16.msra.mxu0 0
    %269 = vmatprep.subr.bf16.mxu0 0
    %270 = vmatpush2.bf16.msra.mxu0 0
    %271 = vmatprep.mubr.bf16.mxu0 0
    %272 = vmatmul.mubr.bf16.gmra.mxu0 %v237
    %v273 = vpop.f32.mrf.mxu0
    %v274 = vadd.f32 0.0, %v273
    %v275 = vpop.f32.mrf.mxu0
    %v276 = vpop.f32.mrf.mxu0
    %v277 = vpop.f32.mrf.mxu0
    %278 = vdwg.mxu0
    %v280 = vrot.slane %v274, 7
    %v282 = vadd.f32 %v133, %v280
    %v283 = vxor.u32 %v282, 2147483648
    %v284 = vmul.f32 %v283, 1.442695
    %v285 = vpow.pop %v284
    %v286 = vadd.f32 %v285, 1.0
    %v287 = vrcp.pop %v286
    %v288 = vmul.f32 1.0, %v287
    %v289 = vtanh.pop %v282
    %v291 = vrot.slane %v225, 7
    %v293 = vmul.f32 %v288, %v291
    %295 = vrot.lane.b32.xlu0 %v289, 64
    %v296 = vpop.permute.xlu0 %295
    %v298 = vmul.f32 %v288, %v296
    %300 = vrot.lane.b32.xlu0 %v298, 32
    %v301 = vpop.permute.xlu0 %300
    %v303 = vadd.f32 %v293, %v301
    %v304 = vtanh.pop %v303
    %306 = vrot.lane.b32.xlu0 %v304, 64
    %v307 = vpop.permute.xlu0 %306
    %v309 = vmul.f32 %v288, %v307
    %v310 = vpack.c.bf16 %v309, %v309
    %v312 = vshrl.u32 %v310, 16
    %314 = vrot.lane.b32.xlu0 %v312, 32
    %v315 = vpop.permute.xlu0 %314
    %v317 = vsel %vm163, %v315, 0
    %319 = vmatprep.subr.bf16.mxu0 0
    %320 = vmatpush1.bf16.msra.mxu0 0
    %321 = vmatprep.subr.bf16.mxu0 0
    %322 = vmatpush1.bf16.msra.mxu0 0
    %323 = vmatprep.subr.bf16.mxu0 0
    %324 = vmatpush1.bf16.msra.mxu0 0
    %325 = vmatprep.subr.bf16.mxu0 0
    %326 = vmatpush1.bf16.msra.mxu0 0
    %327 = vmatprep.subr.bf16.mxu0 0
    %328 = vmatpush1.bf16.msra.mxu0 0
    %329 = vmatprep.subr.bf16.mxu0 0
    %330 = vmatpush1.bf16.msra.mxu0 0
    %331 = vmatprep.subr.bf16.mxu0 0
    %332 = vmatpush1.bf16.msra.mxu0 %v160
    %333 = vmatprep.subr.bf16.mxu0 0
    %334 = vmatpush1.bf16.msra.mxu0 %v159
    %335 = vmatprep.subr.bf16.mxu0 0
    %336 = vmatpush2.bf16.msra.mxu0 0
    %337 = vmatprep.subr.bf16.mxu0 0
    %338 = vmatpush2.bf16.msra.mxu0 0
    %339 = vmatprep.subr.bf16.mxu0 0
    %340 = vmatpush2.bf16.msra.mxu0 0
    %341 = vmatprep.subr.bf16.mxu0 0
    %342 = vmatpush2.bf16.msra.mxu0 0
    %343 = vmatprep.subr.bf16.mxu0 0
    %344 = vmatpush2.bf16.msra.mxu0 0
    %345 = vmatprep.subr.bf16.mxu0 0
    %346 = vmatpush2.bf16.msra.mxu0 0
    %347 = vmatprep.subr.bf16.mxu0 0
    %348 = vmatpush2.bf16.msra.mxu0 0
    %349 = vmatprep.subr.bf16.mxu0 0
    %350 = vmatpush2.bf16.msra.mxu0 0
    %351 = vmatprep.mubr.bf16.mxu0 0
    %352 = vmatmul.mubr.bf16.gmra.mxu0 %v317
    %v353 = vpop.f32.mrf.mxu0
    %v354 = vadd.f32 0.0, %v353
    %v355 = vpop.f32.mrf.mxu0
    %v356 = vpop.f32.mrf.mxu0
    %v357 = vpop.f32.mrf.mxu0
    %358 = vdwg.mxu0
    %v360 = vrot.slane %v354, 6
    %v362 = vadd.f32 %v133, %v360
    %v363 = vxor.u32 %v362, 2147483648
    %v364 = vmul.f32 %v363, 1.442695
    %v365 = vpow.pop %v364
    %v366 = vadd.f32 %v365, 1.0
    %v367 = vrcp.pop %v366
    %v368 = vmul.f32 1.0, %v367
    %v369 = vtanh.pop %v362
    %v371 = vrot.slane %v303, 7
    %v373 = vmul.f32 %v368, %v371
    %375 = vrot.lane.b32.xlu0 %v369, 64
    %v376 = vpop.permute.xlu0 %375
    %v378 = vmul.f32 %v368, %v376
    %380 = vrot.lane.b32.xlu0 %v378, 32
    %v381 = vpop.permute.xlu0 %380
    %v383 = vadd.f32 %v373, %v381
    %v384 = vtanh.pop %v383
    %386 = vrot.lane.b32.xlu0 %v384, 64
    %v387 = vpop.permute.xlu0 %386
    %v389 = vmul.f32 %v368, %v387
    %v390 = vpack.c.bf16 %v389, %v389
    %v392 = vrot.slane %v390, 1
    %393 = vrot.lane.b32.xlu0 %v392, 32
    %v394 = vpop.permute.xlu0 %393
    %v396 = vsel %vm163, %v394, 0
    %398 = vmatprep.subr.bf16.mxu0 0
    %399 = vmatpush1.bf16.msra.mxu0 0
    %400 = vmatprep.subr.bf16.mxu0 0
    %401 = vmatpush1.bf16.msra.mxu0 0
    %402 = vmatprep.subr.bf16.mxu0 0
    %403 = vmatpush1.bf16.msra.mxu0 0
    %404 = vmatprep.subr.bf16.mxu0 0
    %405 = vmatpush1.bf16.msra.mxu0 0
    %406 = vmatprep.subr.bf16.mxu0 0
    %407 = vmatpush1.bf16.msra.mxu0 0
    %408 = vmatprep.subr.bf16.mxu0 0
    %409 = vmatpush1.bf16.msra.mxu0 0
    %410 = vmatprep.subr.bf16.mxu0 0
    %411 = vmatpush1.bf16.msra.mxu0 %v160
    %412 = vmatprep.subr.bf16.mxu0 0
    %413 = vmatpush1.bf16.msra.mxu0 %v159
    %414 = vmatprep.subr.bf16.mxu0 0
    %415 = vmatpush2.bf16.msra.mxu0 0
    %416 = vmatprep.subr.bf16.mxu0 0
    %417 = vmatpush2.bf16.msra.mxu0 0
    %418 = vmatprep.subr.bf16.mxu0 0
    %419 = vmatpush2.bf16.msra.mxu0 0
    %420 = vmatprep.subr.bf16.mxu0 0
    %421 = vmatpush2.bf16.msra.mxu0 0
    %422 = vmatprep.subr.bf16.mxu0 0
    %423 = vmatpush2.bf16.msra.mxu0 0
    %424 = vmatprep.subr.bf16.mxu0 0
    %425 = vmatpush2.bf16.msra.mxu0 0
    %426 = vmatprep.subr.bf16.mxu0 0
    %427 = vmatpush2.bf16.msra.mxu0 0
    %428 = vmatprep.subr.bf16.mxu0 0
    %429 = vmatpush2.bf16.msra.mxu0 0
    %430 = vmatprep.mubr.bf16.mxu0 0
    %431 = vmatmul.mubr.bf16.gmra.mxu0 %v396
    %v432 = vpop.f32.mrf.mxu0
    %v433 = vadd.f32 0.0, %v432
    %v434 = vpop.f32.mrf.mxu0
    %v435 = vpop.f32.mrf.mxu0
    %v436 = vpop.f32.mrf.mxu0
    %437 = vdwg.mxu0
    %v439 = vrot.slane %v433, 5
    %v441 = vadd.f32 %v133, %v439
    %v442 = vxor.u32 %v441, 2147483648
    %v443 = vmul.f32 %v442, 1.442695
    %v444 = vpow.pop %v443
    %v445 = vadd.f32 %v444, 1.0
    %v446 = vrcp.pop %v445
    %v447 = vmul.f32 1.0, %v446
    %v448 = vtanh.pop %v441
    %v450 = vrot.slane %v383, 7
    %v452 = vmul.f32 %v447, %v450
    %454 = vrot.lane.b32.xlu0 %v448, 64
    %v455 = vpop.permute.xlu0 %454
    %v457 = vmul.f32 %v447, %v455
    %459 = vrot.lane.b32.xlu0 %v457, 32
    %v460 = vpop.permute.xlu0 %459
    %v462 = vadd.f32 %v452, %v460
    %v463 = vtanh.pop %v462
    %465 = vrot.lane.b32.xlu0 %v463, 64
    %v466 = vpop.permute.xlu0 %465
    %v468 = vmul.f32 %v447, %v466
    %v469 = vpack.c.bf16 %v468, %v468
    %v471 = vshrl.u32 %v469, 16
    %v473 = vrot.slane %v471, 1
    %474 = vrot.lane.b32.xlu0 %v473, 32
    %v475 = vpop.permute.xlu0 %474
    %v477 = vsel %vm163, %v475, 0
    %479 = vmatprep.subr.bf16.mxu0 0
    %480 = vmatpush1.bf16.msra.mxu0 0
    %481 = vmatprep.subr.bf16.mxu0 0
    %482 = vmatpush1.bf16.msra.mxu0 0
    %483 = vmatprep.subr.bf16.mxu0 0
    %484 = vmatpush1.bf16.msra.mxu0 0
    %485 = vmatprep.subr.bf16.mxu0 0
    %486 = vmatpush1.bf16.msra.mxu0 0
    %487 = vmatprep.subr.bf16.mxu0 0
    %488 = vmatpush1.bf16.msra.mxu0 0
    %489 = vmatprep.subr.bf16.mxu0 0
    %490 = vmatpush1.bf16.msra.mxu0 0
    %491 = vmatprep.subr.bf16.mxu0 0
    %492 = vmatpush1.bf16.msra.mxu0 %v160
    %493 = vmatprep.subr.bf16.mxu0 0
    %494 = vmatpush1.bf16.msra.mxu0 %v159
    %495 = vmatprep.subr.bf16.mxu0 0
    %496 = vmatpush2.bf16.msra.mxu0 0
    %497 = vmatprep.subr.bf16.mxu0 0
    %498 = vmatpush2.bf16.msra.mxu0 0
    %499 = vmatprep.subr.bf16.mxu0 0
    %500 = vmatpush2.bf16.msra.mxu0 0
    %501 = vmatprep.subr.bf16.mxu0 0
    %502 = vmatpush2.bf16.msra.mxu0 0
    %503 = vmatprep.subr.bf16.mxu0 0
    %504 = vmatpush2.bf16.msra.mxu0 0
    %505 = vmatprep.subr.bf16.mxu0 0
    %506 = vmatpush2.bf16.msra.mxu0 0
    %507 = vmatprep.subr.bf16.mxu0 0
    %508 = vmatpush2.bf16.msra.mxu0 0
    %509 = vmatprep.subr.bf16.mxu0 0
    %510 = vmatpush2.bf16.msra.mxu0 0
    %511 = vmatprep.mubr.bf16.mxu0 0
    %512 = vmatmul.mubr.bf16.gmra.mxu0 %v477
    %v513 = vpop.f32.mrf.mxu0
    %v514 = vadd.f32 0.0, %v513
    %v515 = vpop.f32.mrf.mxu0
    %v516 = vpop.f32.mrf.mxu0
    %v517 = vpop.f32.mrf.mxu0
    %518 = vdwg.mxu0
    %v520 = vrot.slane %v514, 4
    %v522 = vadd.f32 %v133, %v520
    %v523 = vxor.u32 %v522, 2147483648
    %v524 = vmul.f32 %v523, 1.442695
    %v525 = vpow.pop %v524
    %v526 = vadd.f32 %v525, 1.0
    %v527 = vrcp.pop %v526
    %v528 = vmul.f32 1.0, %v527
    %v529 = vtanh.pop %v522
    %v531 = vrot.slane %v462, 7
    %v533 = vmul.f32 %v528, %v531
    %535 = vrot.lane.b32.xlu0 %v529, 64
    %v536 = vpop.permute.xlu0 %535
    %v538 = vmul.f32 %v528, %v536
    %540 = vrot.lane.b32.xlu0 %v538, 32
    %v541 = vpop.permute.xlu0 %540
    %v543 = vadd.f32 %v533, %v541
    %v544 = vtanh.pop %v543
    %546 = vrot.lane.b32.xlu0 %v544, 64
    %v547 = vpop.permute.xlu0 %546
    %v549 = vmul.f32 %v528, %v547
    %v550 = vpack.c.bf16 %v549, %v549
    %v552 = vrot.slane %v550, 2
    %553 = vrot.lane.b32.xlu0 %v552, 32
    %v554 = vpop.permute.xlu0 %553
    %v556 = vsel %vm163, %v554, 0
    %558 = vmatprep.subr.bf16.mxu0 0
    %559 = vmatpush1.bf16.msra.mxu0 0
    %560 = vmatprep.subr.bf16.mxu0 0
    %561 = vmatpush1.bf16.msra.mxu0 0
    %562 = vmatprep.subr.bf16.mxu0 0
    %563 = vmatpush1.bf16.msra.mxu0 0
    %564 = vmatprep.subr.bf16.mxu0 0
    %565 = vmatpush1.bf16.msra.mxu0 0
    %566 = vmatprep.subr.bf16.mxu0 0
    %567 = vmatpush1.bf16.msra.mxu0 0
    %568 = vmatprep.subr.bf16.mxu0 0
    %569 = vmatpush1.bf16.msra.mxu0 0
    %570 = vmatprep.subr.bf16.mxu0 0
    %571 = vmatpush1.bf16.msra.mxu0 %v160
    %572 = vmatprep.subr.bf16.mxu0 0
    %573 = vmatpush1.bf16.msra.mxu0 %v159
    %574 = vmatprep.subr.bf16.mxu0 0
    %575 = vmatpush2.bf16.msra.mxu0 0
    %576 = vmatprep.subr.bf16.mxu0 0
    %577 = vmatpush2.bf16.msra.mxu0 0
    %578 = vmatprep.subr.bf16.mxu0 0
    %579 = vmatpush2.bf16.msra.mxu0 0
    %580 = vmatprep.subr.bf16.mxu0 0
    %581 = vmatpush2.bf16.msra.mxu0 0
    %582 = vmatprep.subr.bf16.mxu0 0
    %583 = vmatpush2.bf16.msra.mxu0 0
    %584 = vmatprep.subr.bf16.mxu0 0
    %585 = vmatpush2.bf16.msra.mxu0 0
    %586 = vmatprep.subr.bf16.mxu0 0
    %587 = vmatpush2.bf16.msra.mxu0 0
    %588 = vmatprep.subr.bf16.mxu0 0
    %589 = vmatpush2.bf16.msra.mxu0 0
    %590 = vmatprep.mubr.bf16.mxu0 0
    %591 = vmatmul.mubr.bf16.gmra.mxu0 %v556
    %v592 = vpop.f32.mrf.mxu0
    %v593 = vadd.f32 0.0, %v592
    %v594 = vpop.f32.mrf.mxu0
    %v595 = vpop.f32.mrf.mxu0
    %v596 = vpop.f32.mrf.mxu0
    %597 = vdwg.mxu0
    %v599 = vrot.slane %v593, 3
    %v601 = vadd.f32 %v133, %v599
    %v602 = vxor.u32 %v601, 2147483648
    %v603 = vmul.f32 %v602, 1.442695
    %v604 = vpow.pop %v603
    %v605 = vadd.f32 %v604, 1.0
    %v606 = vrcp.pop %v605
    %v607 = vmul.f32 1.0, %v606
    %v608 = vtanh.pop %v601
    %v610 = vrot.slane %v543, 7
    %v612 = vmul.f32 %v607, %v610
    %614 = vrot.lane.b32.xlu0 %v608, 64
    %v615 = vpop.permute.xlu0 %614
    %v617 = vmul.f32 %v607, %v615
    %619 = vrot.lane.b32.xlu0 %v617, 32
    %v620 = vpop.permute.xlu0 %619
    %v622 = vadd.f32 %v612, %v620
    %v623 = vtanh.pop %v622
    %625 = vrot.lane.b32.xlu0 %v623, 64
    %v626 = vpop.permute.xlu0 %625
    %v628 = vmul.f32 %v607, %v626
    %v629 = vpack.c.bf16 %v628, %v628
    %v631 = vshrl.u32 %v629, 16
    %v633 = vrot.slane %v631, 2
    %634 = vrot.lane.b32.xlu0 %v633, 32
    %v635 = vpop.permute.xlu0 %634
    %v637 = vsel %vm163, %v635, 0
    %639 = vmatprep.subr.bf16.mxu0 0
    %640 = vmatpush1.bf16.msra.mxu0 0
    %641 = vmatprep.subr.bf16.mxu0 0
    %642 = vmatpush1.bf16.msra.mxu0 0
    %643 = vmatprep.subr.bf16.mxu0 0
    %644 = vmatpush1.bf16.msra.mxu0 0
    %645 = vmatprep.subr.bf16.mxu0 0
    %646 = vmatpush1.bf16.msra.mxu0 0
    %647 = vmatprep.subr.bf16.mxu0 0
    %648 = vmatpush1.bf16.msra.mxu0 0
    %649 = vmatprep.subr.bf16.mxu0 0
    %650 = vmatpush1.bf16.msra.mxu0 0
    %651 = vmatprep.subr.bf16.mxu0 0
    %652 = vmatpush1.bf16.msra.mxu0 %v160
    %653 = vmatprep.subr.bf16.mxu0 0
    %654 = vmatpush1.bf16.msra.mxu0 %v159
    %655 = vmatprep.subr.bf16.mxu0 0
    %656 = vmatpush2.bf16.msra.mxu0 0
    %657 = vmatprep.subr.bf16.mxu0 0
    %658 = vmatpush2.bf16.msra.mxu0 0
    %659 = vmatprep.subr.bf16.mxu0 0
    %660 = vmatpush2.bf16.msra.mxu0 0
    %661 = vmatprep.subr.bf16.mxu0 0
    %662 = vmatpush2.bf16.msra.mxu0 0
    %663 = vmatprep.subr.bf16.mxu0 0
    %664 = vmatpush2.bf16.msra.mxu0 0
    %665 = vmatprep.subr.bf16.mxu0 0
    %666 = vmatpush2.bf16.msra.mxu0 0
    %667 = vmatprep.subr.bf16.mxu0 0
    %668 = vmatpush2.bf16.msra.mxu0 0
    %669 = vmatprep.subr.bf16.mxu0 0
    %670 = vmatpush2.bf16.msra.mxu0 0
    %671 = vmatprep.mubr.bf16.mxu0 0
    %672 = vmatmul.mubr.bf16.gmra.mxu0 %v637
    %v673 = vpop.f32.mrf.mxu0
    %v674 = vadd.f32 0.0, %v673
    %v675 = vpop.f32.mrf.mxu0
    %v676 = vpop.f32.mrf.mxu0
    %v677 = vpop.f32.mrf.mxu0
    %678 = vdwg.mxu0
    %v680 = vrot.slane %v674, 2
    %v682 = vadd.f32 %v133, %v680
    %v683 = vxor.u32 %v682, 2147483648
    %v684 = vmul.f32 %v683, 1.442695
    %v685 = vpow.pop %v684
    %v686 = vadd.f32 %v685, 1.0
    %v687 = vrcp.pop %v686
    %v688 = vmul.f32 1.0, %v687
    %v689 = vtanh.pop %v682
    %v691 = vrot.slane %v622, 7
    %v693 = vmul.f32 %v688, %v691
    %695 = vrot.lane.b32.xlu0 %v689, 64
    %v696 = vpop.permute.xlu0 %695
    %v698 = vmul.f32 %v688, %v696
    %700 = vrot.lane.b32.xlu0 %v698, 32
    %v701 = vpop.permute.xlu0 %700
    %v703 = vadd.f32 %v693, %v701
    %v704 = vtanh.pop %v703
    %706 = vrot.lane.b32.xlu0 %v704, 64
    %v707 = vpop.permute.xlu0 %706
    %v709 = vmul.f32 %v688, %v707
    %v710 = vpack.c.bf16 %v709, %v709
    %v712 = vrot.slane %v710, 3
    %713 = vrot.lane.b32.xlu0 %v712, 32
    %v714 = vpop.permute.xlu0 %713
    %v716 = vsel %vm163, %v714, 0
    %718 = vmatprep.subr.bf16.mxu0 0
    %719 = vmatpush1.bf16.msra.mxu0 0
    %720 = vmatprep.subr.bf16.mxu0 0
    %721 = vmatpush1.bf16.msra.mxu0 0
    %722 = vmatprep.subr.bf16.mxu0 0
    %723 = vmatpush1.bf16.msra.mxu0 0
    %724 = vmatprep.subr.bf16.mxu0 0
    %725 = vmatpush1.bf16.msra.mxu0 0
    %726 = vmatprep.subr.bf16.mxu0 0
    %727 = vmatpush1.bf16.msra.mxu0 0
    %728 = vmatprep.subr.bf16.mxu0 0
    %729 = vmatpush1.bf16.msra.mxu0 0
    %730 = vmatprep.subr.bf16.mxu0 0
    %731 = vmatpush1.bf16.msra.mxu0 %v160
    %732 = vmatprep.subr.bf16.mxu0 0
    %733 = vmatpush1.bf16.msra.mxu0 %v159
    %734 = vmatprep.subr.bf16.mxu0 0
    %735 = vmatpush2.bf16.msra.mxu0 0
    %736 = vmatprep.subr.bf16.mxu0 0
    %737 = vmatpush2.bf16.msra.mxu0 0
    %738 = vmatprep.subr.bf16.mxu0 0
    %739 = vmatpush2.bf16.msra.mxu0 0
    %740 = vmatprep.subr.bf16.mxu0 0
    %741 = vmatpush2.bf16.msra.mxu0 0
    %742 = vmatprep.subr.bf16.mxu0 0
    %743 = vmatpush2.bf16.msra.mxu0 0
    %744 = vmatprep.subr.bf16.mxu0 0
    %745 = vmatpush2.bf16.msra.mxu0 0
    %746 = vmatprep.subr.bf16.mxu0 0
    %747 = vmatpush2.bf16.msra.mxu0 0
    %748 = vmatprep.subr.bf16.mxu0 0
    %749 = vmatpush2.bf16.msra.mxu0 0
    %750 = vmatprep.mubr.bf16.mxu0 0
    %751 = vmatmul.mubr.bf16.gmra.mxu0 %v716
    %v752 = vpop.f32.mrf.mxu0
    %v753 = vadd.f32 0.0, %v752
    %v754 = vpop.f32.mrf.mxu0
    %v755 = vpop.f32.mrf.mxu0
    %v756 = vpop.f32.mrf.mxu0
    %757 = vdwg.mxu0
    %v759 = vrot.slane %v753, 1
    %v761 = vadd.f32 %v133, %v759
    %v762 = vxor.u32 %v761, 2147483648
    %v763 = vmul.f32 %v762, 1.442695
    %v764 = vpow.pop %v763
    %v765 = vadd.f32 %v764, 1.0
    %v766 = vrcp.pop %v765
    %v767 = vmul.f32 1.0, %v766
    %v768 = vtanh.pop %v761
    %v770 = vrot.slane %v703, 7
    %v772 = vmul.f32 %v767, %v770
    %774 = vrot.lane.b32.xlu0 %v768, 64
    %v775 = vpop.permute.xlu0 %774
    %v777 = vmul.f32 %v767, %v775
    %779 = vrot.lane.b32.xlu0 %v777, 32
    %v780 = vpop.permute.xlu0 %779
    %v782 = vadd.f32 %v772, %v780
    %v783 = vtanh.pop %v782
    %785 = vrot.lane.b32.xlu0 %v783, 64
    %v786 = vpop.permute.xlu0 %785
    %v788 = vmul.f32 %v767, %v786
    %v789 = vpack.c.bf16 %v788, %v788
    %v791 = vshrl.u32 %v789, 16
    %v793 = vrot.slane %v791, 3
    %794 = vrot.lane.b32.xlu0 %v793, 32
    %v795 = vpop.permute.xlu0 %794
    %v797 = vsel %vm163, %v795, 0
    %799 = vmatprep.subr.bf16.mxu0 0
    %800 = vmatpush1.bf16.msra.mxu0 0
    %801 = vmatprep.subr.bf16.mxu0 0
    %802 = vmatpush1.bf16.msra.mxu0 0
    %803 = vmatprep.subr.bf16.mxu0 0
    %804 = vmatpush1.bf16.msra.mxu0 0
    %805 = vmatprep.subr.bf16.mxu0 0
    %806 = vmatpush1.bf16.msra.mxu0 0
    %807 = vmatprep.subr.bf16.mxu0 0
    %808 = vmatpush1.bf16.msra.mxu0 0
    %809 = vmatprep.subr.bf16.mxu0 0
    %810 = vmatpush1.bf16.msra.mxu0 0
    %811 = vmatprep.subr.bf16.mxu0 0
    %812 = vmatpush1.bf16.msra.mxu0 %v160
    %813 = vmatprep.subr.bf16.mxu0 0
    %814 = vmatpush1.bf16.msra.mxu0 %v159
    %815 = vmatprep.subr.bf16.mxu0 0
    %816 = vmatpush2.bf16.msra.mxu0 0
    %817 = vmatprep.subr.bf16.mxu0 0
    %818 = vmatpush2.bf16.msra.mxu0 0
    %819 = vmatprep.subr.bf16.mxu0 0
    %820 = vmatpush2.bf16.msra.mxu0 0
    %821 = vmatprep.subr.bf16.mxu0 0
    %822 = vmatpush2.bf16.msra.mxu0 0
    %823 = vmatprep.subr.bf16.mxu0 0
    %824 = vmatpush2.bf16.msra.mxu0 0
    %825 = vmatprep.subr.bf16.mxu0 0
    %826 = vmatpush2.bf16.msra.mxu0 0
    %827 = vmatprep.subr.bf16.mxu0 0
    %828 = vmatpush2.bf16.msra.mxu0 0
    %829 = vmatprep.subr.bf16.mxu0 0
    %830 = vmatpush2.bf16.msra.mxu0 0
    %831 = vmatprep.mubr.bf16.mxu0 0
    %832 = vmatmul.mubr.bf16.gmra.mxu0 %v797
    %v833 = vpop.f32.mrf.mxu0
    %v834 = vadd.f32 0.0, %v833
    %v835 = vpop.f32.mrf.mxu0
    %v836 = vpop.f32.mrf.mxu0
    %v837 = vpop.f32.mrf.mxu0
    %838 = vdwg.mxu0
    %v839 = vadd.f32 %v136, %v834
    %v840 = vxor.u32 %v839, 2147483648
    %v841 = vmul.f32 %v840, 1.442695
    %v842 = vpow.pop %v841
    %v843 = vadd.f32 %v842, 1.0
    %v844 = vrcp.pop %v843
    %v845 = vmul.f32 1.0, %v844
    %v846 = vtanh.pop %v839
    %v848 = vrot.slane %v782, 7
    %v850 = vmul.f32 %v845, %v848
    %852 = vrot.lane.b32.xlu0 %v846, 64
    %v853 = vpop.permute.xlu0 %852
    %v855 = vmul.f32 %v845, %v853
    %857 = vrot.lane.b32.xlu0 %v855, 32
    %v858 = vpop.permute.xlu0 %857
    %v860 = vadd.f32 %v850, %v858
    %v861 = vtanh.pop %v860
    %863 = vrot.lane.b32.xlu0 %v861, 64
    %v864 = vpop.permute.xlu0 %863
    %v866 = vmul.f32 %v845, %v864
    %v867 = vpack.c.bf16 %v866, %v866
    %869 = vrot.lane.b32.xlu0 %v867, 32
    %v870 = vpop.permute.xlu0 %869
    %v872 = vsel %vm163, %v870, 0
    %874 = vmatprep.subr.bf16.mxu0 0
    %875 = vmatpush1.bf16.msra.mxu0 0
    %876 = vmatprep.subr.bf16.mxu0 0
    %877 = vmatpush1.bf16.msra.mxu0 0
    %878 = vmatprep.subr.bf16.mxu0 0
    %879 = vmatpush1.bf16.msra.mxu0 0
    %880 = vmatprep.subr.bf16.mxu0 0
    %881 = vmatpush1.bf16.msra.mxu0 0
    %882 = vmatprep.subr.bf16.mxu0 0
    %883 = vmatpush1.bf16.msra.mxu0 0
    %884 = vmatprep.subr.bf16.mxu0 0
    %885 = vmatpush1.bf16.msra.mxu0 0
    %886 = vmatprep.subr.bf16.mxu0 0
    %887 = vmatpush1.bf16.msra.mxu0 %v160
    %888 = vmatprep.subr.bf16.mxu0 0
    %889 = vmatpush1.bf16.msra.mxu0 %v159
    %890 = vmatprep.subr.bf16.mxu0 0
    %891 = vmatpush2.bf16.msra.mxu0 0
    %892 = vmatprep.subr.bf16.mxu0 0
    %893 = vmatpush2.bf16.msra.mxu0 0
    %894 = vmatprep.subr.bf16.mxu0 0
    %895 = vmatpush2.bf16.msra.mxu0 0
    %896 = vmatprep.subr.bf16.mxu0 0
    %897 = vmatpush2.bf16.msra.mxu0 0
    %898 = vmatprep.subr.bf16.mxu0 0
    %899 = vmatpush2.bf16.msra.mxu0 0
    %900 = vmatprep.subr.bf16.mxu0 0
    %901 = vmatpush2.bf16.msra.mxu0 0
    %902 = vmatprep.subr.bf16.mxu0 0
    %903 = vmatpush2.bf16.msra.mxu0 0
    %904 = vmatprep.subr.bf16.mxu0 0
    %905 = vmatpush2.bf16.msra.mxu0 0
    %906 = vmatprep.mubr.bf16.mxu0 0
    %907 = vmatmul.mubr.bf16.gmra.mxu0 %v872
    %v908 = vpop.f32.mrf.mxu0
    %v909 = vadd.f32 0.0, %v908
    %v910 = vpop.f32.mrf.mxu0
    %v911 = vpop.f32.mrf.mxu0
    %v912 = vpop.f32.mrf.mxu0
    %913 = vdwg.mxu0
    %v915 = vrot.slane %v909, 7
    %v917 = vadd.f32 %v136, %v915
    %v918 = vxor.u32 %v917, 2147483648
    %v919 = vmul.f32 %v918, 1.442695
    %v920 = vpow.pop %v919
    %v921 = vadd.f32 %v920, 1.0
    %v922 = vrcp.pop %v921
    %v923 = vmul.f32 1.0, %v922
    %v924 = vtanh.pop %v917
    %v926 = vrot.slane %v860, 7
    %v928 = vmul.f32 %v923, %v926
    %930 = vrot.lane.b32.xlu0 %v924, 64
    %v931 = vpop.permute.xlu0 %930
    %v933 = vmul.f32 %v923, %v931
    %935 = vrot.lane.b32.xlu0 %v933, 32
    %v936 = vpop.permute.xlu0 %935
    %v938 = vadd.f32 %v928, %v936
    %v939 = vtanh.pop %v938
    %941 = vrot.lane.b32.xlu0 %v939, 64
    %v942 = vpop.permute.xlu0 %941
    %v944 = vmul.f32 %v923, %v942
    %v945 = vpack.c.bf16 %v944, %v944
    %v947 = vshrl.u32 %v945, 16
    %949 = vrot.lane.b32.xlu0 %v947, 32
    %v950 = vpop.permute.xlu0 %949
    %v952 = vsel %vm163, %v950, 0
    %954 = vmatprep.subr.bf16.mxu0 0
    %955 = vmatpush1.bf16.msra.mxu0 0
    %956 = vmatprep.subr.bf16.mxu0 0
    %957 = vmatpush1.bf16.msra.mxu0 0
    %958 = vmatprep.subr.bf16.mxu0 0
    %959 = vmatpush1.bf16.msra.mxu0 0
    %960 = vmatprep.subr.bf16.mxu0 0
    %961 = vmatpush1.bf16.msra.mxu0 0
    %962 = vmatprep.subr.bf16.mxu0 0
    %963 = vmatpush1.bf16.msra.mxu0 0
    %964 = vmatprep.subr.bf16.mxu0 0
    %965 = vmatpush1.bf16.msra.mxu0 0
    %966 = vmatprep.subr.bf16.mxu0 0
    %967 = vmatpush1.bf16.msra.mxu0 %v160
    %968 = vmatprep.subr.bf16.mxu0 0
    %969 = vmatpush1.bf16.msra.mxu0 %v159
    %970 = vmatprep.subr.bf16.mxu0 0
    %971 = vmatpush2.bf16.msra.mxu0 0
    %972 = vmatprep.subr.bf16.mxu0 0
    %973 = vmatpush2.bf16.msra.mxu0 0
    %974 = vmatprep.subr.bf16.mxu0 0
    %975 = vmatpush2.bf16.msra.mxu0 0
    %976 = vmatprep.subr.bf16.mxu0 0
    %977 = vmatpush2.bf16.msra.mxu0 0
    %978 = vmatprep.subr.bf16.mxu0 0
    %979 = vmatpush2.bf16.msra.mxu0 0
    %980 = vmatprep.subr.bf16.mxu0 0
    %981 = vmatpush2.bf16.msra.mxu0 0
    %982 = vmatprep.subr.bf16.mxu0 0
    %983 = vmatpush2.bf16.msra.mxu0 0
    %984 = vmatprep.subr.bf16.mxu0 0
    %985 = vmatpush2.bf16.msra.mxu0 0
    %986 = vmatprep.mubr.bf16.mxu0 0
    %987 = vmatmul.mubr.bf16.gmra.mxu0 %v952
    %v988 = vpop.f32.mrf.mxu0
    %v989 = vadd.f32 0.0, %v988
    %v990 = vpop.f32.mrf.mxu0
    %v991 = vpop.f32.mrf.mxu0
    %v992 = vpop.f32.mrf.mxu0
    %993 = vdwg.mxu0
    %v995 = vrot.slane %v989, 6
    %v997 = vadd.f32 %v136, %v995
    %v998 = vxor.u32 %v997, 2147483648
    %v999 = vmul.f32 %v998, 1.442695
    %v1000 = vpow.pop %v999
    %v1001 = vadd.f32 %v1000, 1.0
    %v1002 = vrcp.pop %v1001
    %v1003 = vmul.f32 1.0, %v1002
    %v1004 = vtanh.pop %v997
    %v1006 = vrot.slane %v938, 7
    %v1008 = vmul.f32 %v1003, %v1006
    %1010 = vrot.lane.b32.xlu0 %v1004, 64
    %v1011 = vpop.permute.xlu0 %1010
    %v1013 = vmul.f32 %v1003, %v1011
    %1015 = vrot.lane.b32.xlu0 %v1013, 32
    %v1016 = vpop.permute.xlu0 %1015
    %v1018 = vadd.f32 %v1008, %v1016
    %v1019 = vtanh.pop %v1018
    %1021 = vrot.lane.b32.xlu0 %v1019, 64
    %v1022 = vpop.permute.xlu0 %1021
    %v1024 = vmul.f32 %v1003, %v1022
    %v1025 = vpack.c.bf16 %v1024, %v1024
    %v1027 = vrot.slane %v1025, 1
    %1028 = vrot.lane.b32.xlu0 %v1027, 32
    %v1029 = vpop.permute.xlu0 %1028
    %v1031 = vsel %vm163, %v1029, 0
    %1033 = vmatprep.subr.bf16.mxu0 0
    %1034 = vmatpush1.bf16.msra.mxu0 0
    %1035 = vmatprep.subr.bf16.mxu0 0
    %1036 = vmatpush1.bf16.msra.mxu0 0
    %1037 = vmatprep.subr.bf16.mxu0 0
    %1038 = vmatpush1.bf16.msra.mxu0 0
    %1039 = vmatprep.subr.bf16.mxu0 0
    %1040 = vmatpush1.bf16.msra.mxu0 0
    %1041 = vmatprep.subr.bf16.mxu0 0
    %1042 = vmatpush1.bf16.msra.mxu0 0
    %1043 = vmatprep.subr.bf16.mxu0 0
    %1044 = vmatpush1.bf16.msra.mxu0 0
    %1045 = vmatprep.subr.bf16.mxu0 0
    %1046 = vmatpush1.bf16.msra.mxu0 %v160
    %1047 = vmatprep.subr.bf16.mxu0 0
    %1048 = vmatpush1.bf16.msra.mxu0 %v159
    %1049 = vmatprep.subr.bf16.mxu0 0
    %1050 = vmatpush2.bf16.msra.mxu0 0
    %1051 = vmatprep.subr.bf16.mxu0 0
    %1052 = vmatpush2.bf16.msra.mxu0 0
    %1053 = vmatprep.subr.bf16.mxu0 0
    %1054 = vmatpush2.bf16.msra.mxu0 0
    %1055 = vmatprep.subr.bf16.mxu0 0
    %1056 = vmatpush2.bf16.msra.mxu0 0
    %1057 = vmatprep.subr.bf16.mxu0 0
    %1058 = vmatpush2.bf16.msra.mxu0 0
    %1059 = vmatprep.subr.bf16.mxu0 0
    %1060 = vmatpush2.bf16.msra.mxu0 0
    %1061 = vmatprep.subr.bf16.mxu0 0
    %1062 = vmatpush2.bf16.msra.mxu0 0
    %1063 = vmatprep.subr.bf16.mxu0 0
    %1064 = vmatpush2.bf16.msra.mxu0 0
    %1065 = vmatprep.mubr.bf16.mxu0 0
    %1066 = vmatmul.mubr.bf16.gmra.mxu0 %v1031
    %v1067 = vpop.f32.mrf.mxu0
    %v1068 = vadd.f32 0.0, %v1067
    %v1069 = vpop.f32.mrf.mxu0
    %v1070 = vpop.f32.mrf.mxu0
    %v1071 = vpop.f32.mrf.mxu0
    %1072 = vdwg.mxu0
    %v1074 = vrot.slane %v1068, 5
    %v1076 = vadd.f32 %v136, %v1074
    %v1077 = vxor.u32 %v1076, 2147483648
    %v1078 = vmul.f32 %v1077, 1.442695
    %v1079 = vpow.pop %v1078
    %v1080 = vadd.f32 %v1079, 1.0
    %v1081 = vrcp.pop %v1080
    %v1082 = vmul.f32 1.0, %v1081
    %v1083 = vtanh.pop %v1076
    %v1085 = vrot.slane %v1018, 7
    %v1087 = vmul.f32 %v1082, %v1085
    %1089 = vrot.lane.b32.xlu0 %v1083, 64
    %v1090 = vpop.permute.xlu0 %1089
    %v1092 = vmul.f32 %v1082, %v1090
    %1094 = vrot.lane.b32.xlu0 %v1092, 32
    %v1095 = vpop.permute.xlu0 %1094
    %v1097 = vadd.f32 %v1087, %v1095
    %v1098 = vtanh.pop %v1097
    %1100 = vrot.lane.b32.xlu0 %v1098, 64
    %v1101 = vpop.permute.xlu0 %1100
    %v1103 = vmul.f32 %v1082, %v1101
    %v1104 = vpack.c.bf16 %v1103, %v1103
    %v1106 = vshrl.u32 %v1104, 16
    %v1108 = vrot.slane %v1106, 1
    %1109 = vrot.lane.b32.xlu0 %v1108, 32
    %v1110 = vpop.permute.xlu0 %1109
    %v1112 = vsel %vm163, %v1110, 0
    %1114 = vmatprep.subr.bf16.mxu0 0
    %1115 = vmatpush1.bf16.msra.mxu0 0
    %1116 = vmatprep.subr.bf16.mxu0 0
    %1117 = vmatpush1.bf16.msra.mxu0 0
    %1118 = vmatprep.subr.bf16.mxu0 0
    %1119 = vmatpush1.bf16.msra.mxu0 0
    %1120 = vmatprep.subr.bf16.mxu0 0
    %1121 = vmatpush1.bf16.msra.mxu0 0
    %1122 = vmatprep.subr.bf16.mxu0 0
    %1123 = vmatpush1.bf16.msra.mxu0 0
    %1124 = vmatprep.subr.bf16.mxu0 0
    %1125 = vmatpush1.bf16.msra.mxu0 0
    %1126 = vmatprep.subr.bf16.mxu0 0
    %1127 = vmatpush1.bf16.msra.mxu0 %v160
    %1128 = vmatprep.subr.bf16.mxu0 0
    %1129 = vmatpush1.bf16.msra.mxu0 %v159
    %1130 = vmatprep.subr.bf16.mxu0 0
    %1131 = vmatpush2.bf16.msra.mxu0 0
    %1132 = vmatprep.subr.bf16.mxu0 0
    %1133 = vmatpush2.bf16.msra.mxu0 0
    %1134 = vmatprep.subr.bf16.mxu0 0
    %1135 = vmatpush2.bf16.msra.mxu0 0
    %1136 = vmatprep.subr.bf16.mxu0 0
    %1137 = vmatpush2.bf16.msra.mxu0 0
    %1138 = vmatprep.subr.bf16.mxu0 0
    %1139 = vmatpush2.bf16.msra.mxu0 0
    %1140 = vmatprep.subr.bf16.mxu0 0
    %1141 = vmatpush2.bf16.msra.mxu0 0
    %1142 = vmatprep.subr.bf16.mxu0 0
    %1143 = vmatpush2.bf16.msra.mxu0 0
    %1144 = vmatprep.subr.bf16.mxu0 0
    %1145 = vmatpush2.bf16.msra.mxu0 0
    %1146 = vmatprep.mubr.bf16.mxu0 0
    %1147 = vmatmul.mubr.bf16.gmra.mxu0 %v1112
    %v1148 = vpop.f32.mrf.mxu0
    %v1149 = vadd.f32 0.0, %v1148
    %v1150 = vpop.f32.mrf.mxu0
    %v1151 = vpop.f32.mrf.mxu0
    %v1152 = vpop.f32.mrf.mxu0
    %1153 = vdwg.mxu0
    %v1155 = vrot.slane %v1149, 4
    %v1157 = vadd.f32 %v136, %v1155
    %v1158 = vxor.u32 %v1157, 2147483648
    %v1159 = vmul.f32 %v1158, 1.442695
    %v1160 = vpow.pop %v1159
    %v1161 = vadd.f32 %v1160, 1.0
    %v1162 = vrcp.pop %v1161
    %v1163 = vmul.f32 1.0, %v1162
    %v1164 = vtanh.pop %v1157
    %v1166 = vrot.slane %v1097, 7
    %v1168 = vmul.f32 %v1163, %v1166
    %1170 = vrot.lane.b32.xlu0 %v1164, 64
    %v1171 = vpop.permute.xlu0 %1170
    %v1173 = vmul.f32 %v1163, %v1171
    %1175 = vrot.lane.b32.xlu0 %v1173, 32
    %v1176 = vpop.permute.xlu0 %1175
    %v1178 = vadd.f32 %v1168, %v1176
    %v1179 = vtanh.pop %v1178
    %1181 = vrot.lane.b32.xlu0 %v1179, 64
    %v1182 = vpop.permute.xlu0 %1181
    %v1184 = vmul.f32 %v1163, %v1182
    %v1185 = vpack.c.bf16 %v1184, %v1184
    %v1187 = vrot.slane %v1185, 2
    %1188 = vrot.lane.b32.xlu0 %v1187, 32
    %v1189 = vpop.permute.xlu0 %1188
    %v1191 = vsel %vm163, %v1189, 0
    %1193 = vmatprep.subr.bf16.mxu0 0
    %1194 = vmatpush1.bf16.msra.mxu0 0
    %1195 = vmatprep.subr.bf16.mxu0 0
    %1196 = vmatpush1.bf16.msra.mxu0 0
    %1197 = vmatprep.subr.bf16.mxu0 0
    %1198 = vmatpush1.bf16.msra.mxu0 0
    %1199 = vmatprep.subr.bf16.mxu0 0
    %1200 = vmatpush1.bf16.msra.mxu0 0
    %1201 = vmatprep.subr.bf16.mxu0 0
    %1202 = vmatpush1.bf16.msra.mxu0 0
    %1203 = vmatprep.subr.bf16.mxu0 0
    %1204 = vmatpush1.bf16.msra.mxu0 0
    %1205 = vmatprep.subr.bf16.mxu0 0
    %1206 = vmatpush1.bf16.msra.mxu0 %v160
    %1207 = vmatprep.subr.bf16.mxu0 0
    %1208 = vmatpush1.bf16.msra.mxu0 %v159
    %1209 = vmatprep.subr.bf16.mxu0 0
    %1210 = vmatpush2.bf16.msra.mxu0 0
    %1211 = vmatprep.subr.bf16.mxu0 0
    %1212 = vmatpush2.bf16.msra.mxu0 0
    %1213 = vmatprep.subr.bf16.mxu0 0
    %1214 = vmatpush2.bf16.msra.mxu0 0
    %1215 = vmatprep.subr.bf16.mxu0 0
    %1216 = vmatpush2.bf16.msra.mxu0 0
    %1217 = vmatprep.subr.bf16.mxu0 0
    %1218 = vmatpush2.bf16.msra.mxu0 0
    %1219 = vmatprep.subr.bf16.mxu0 0
    %1220 = vmatpush2.bf16.msra.mxu0 0
    %1221 = vmatprep.subr.bf16.mxu0 0
    %1222 = vmatpush2.bf16.msra.mxu0 0
    %1223 = vmatprep.subr.bf16.mxu0 0
    %1224 = vmatpush2.bf16.msra.mxu0 0
    %1225 = vmatprep.mubr.bf16.mxu0 0
    %1226 = vmatmul.mubr.bf16.gmra.mxu0 %v1191
    %v1227 = vpop.f32.mrf.mxu0
    %v1228 = vadd.f32 0.0, %v1227
    %v1229 = vpop.f32.mrf.mxu0
    %v1230 = vpop.f32.mrf.mxu0
    %v1231 = vpop.f32.mrf.mxu0
    %1232 = vdwg.mxu0
    %v1234 = vrot.slane %v1228, 3
    %v1236 = vadd.f32 %v136, %v1234
    %v1237 = vxor.u32 %v1236, 2147483648
    %v1238 = vmul.f32 %v1237, 1.442695
    %v1239 = vpow.pop %v1238
    %v1240 = vadd.f32 %v1239, 1.0
    %v1241 = vrcp.pop %v1240
    %v1242 = vmul.f32 1.0, %v1241
    %v1243 = vtanh.pop %v1236
    %v1245 = vrot.slane %v1178, 7
    %v1247 = vmul.f32 %v1242, %v1245
    %1249 = vrot.lane.b32.xlu0 %v1243, 64
    %v1250 = vpop.permute.xlu0 %1249
    %v1252 = vmul.f32 %v1242, %v1250
    %1254 = vrot.lane.b32.xlu0 %v1252, 32
    %v1255 = vpop.permute.xlu0 %1254
    %v1257 = vadd.f32 %v1247, %v1255
    %v1258 = vtanh.pop %v1257
    %1260 = vrot.lane.b32.xlu0 %v1258, 64
    %v1261 = vpop.permute.xlu0 %1260
    %v1263 = vmul.f32 %v1242, %v1261
    %v1264 = vpack.c.bf16 %v1263, %v1263
    %v1266 = vshrl.u32 %v1264, 16
    %v1268 = vrot.slane %v1266, 2
    %1269 = vrot.lane.b32.xlu0 %v1268, 32
    %v1270 = vpop.permute.xlu0 %1269
    %v1272 = vsel %vm163, %v1270, 0
    %1274 = vmatprep.subr.bf16.mxu0 0
    %1275 = vmatpush1.bf16.msra.mxu0 0
    %1276 = vmatprep.subr.bf16.mxu0 0
    %1277 = vmatpush1.bf16.msra.mxu0 0
    %1278 = vmatprep.subr.bf16.mxu0 0
    %1279 = vmatpush1.bf16.msra.mxu0 0
    %1280 = vmatprep.subr.bf16.mxu0 0
    %1281 = vmatpush1.bf16.msra.mxu0 0
    %1282 = vmatprep.subr.bf16.mxu0 0
    %1283 = vmatpush1.bf16.msra.mxu0 0
    %1284 = vmatprep.subr.bf16.mxu0 0
    %1285 = vmatpush1.bf16.msra.mxu0 0
    %1286 = vmatprep.subr.bf16.mxu0 0
    %1287 = vmatpush1.bf16.msra.mxu0 %v160
    %1288 = vmatprep.subr.bf16.mxu0 0
    %1289 = vmatpush1.bf16.msra.mxu0 %v159
    %1290 = vmatprep.subr.bf16.mxu0 0
    %1291 = vmatpush2.bf16.msra.mxu0 0
    %1292 = vmatprep.subr.bf16.mxu0 0
    %1293 = vmatpush2.bf16.msra.mxu0 0
    %1294 = vmatprep.subr.bf16.mxu0 0
    %1295 = vmatpush2.bf16.msra.mxu0 0
    %1296 = vmatprep.subr.bf16.mxu0 0
    %1297 = vmatpush2.bf16.msra.mxu0 0
    %1298 = vmatprep.subr.bf16.mxu0 0
    %1299 = vmatpush2.bf16.msra.mxu0 0
    %1300 = vmatprep.subr.bf16.mxu0 0
    %1301 = vmatpush2.bf16.msra.mxu0 0
    %1302 = vmatprep.subr.bf16.mxu0 0
    %1303 = vmatpush2.bf16.msra.mxu0 0
    %1304 = vmatprep.subr.bf16.mxu0 0
    %1305 = vmatpush2.bf16.msra.mxu0 0
    %1306 = vmatprep.mubr.bf16.mxu0 0
    %1307 = vmatmul.mubr.bf16.gmra.mxu0 %v1272
    %v1308 = vpop.f32.mrf.mxu0
    %v1309 = vadd.f32 0.0, %v1308
    %v1310 = vpop.f32.mrf.mxu0
    %v1311 = vpop.f32.mrf.mxu0
    %v1312 = vpop.f32.mrf.mxu0
    %1313 = vdwg.mxu0
    %v1315 = vrot.slane %v1309, 2
    %v1317 = vadd.f32 %v136, %v1315
    %v1318 = vxor.u32 %v1317, 2147483648
    %v1319 = vmul.f32 %v1318, 1.442695
    %v1320 = vpow.pop %v1319
    %v1321 = vadd.f32 %v1320, 1.0
    %v1322 = vrcp.pop %v1321
    %v1323 = vmul.f32 1.0, %v1322
    %v1324 = vtanh.pop %v1317
    %v1326 = vrot.slane %v1257, 7
    %v1328 = vmul.f32 %v1323, %v1326
    %1330 = vrot.lane.b32.xlu0 %v1324, 64
    %v1331 = vpop.permute.xlu0 %1330
    %v1333 = vmul.f32 %v1323, %v1331
    %1335 = vrot.lane.b32.xlu0 %v1333, 32
    %v1336 = vpop.permute.xlu0 %1335
    %v1338 = vadd.f32 %v1328, %v1336
    %v1339 = vtanh.pop %v1338
    %1341 = vrot.lane.b32.xlu0 %v1339, 64
    %v1342 = vpop.permute.xlu0 %1341
    %v1344 = vmul.f32 %v1323, %v1342
    %v1345 = vpack.c.bf16 %v1344, %v1344
    %v1347 = vrot.slane %v1345, 3
    %1348 = vrot.lane.b32.xlu0 %v1347, 32
    %v1349 = vpop.permute.xlu0 %1348
    %v1351 = vsel %vm163, %v1349, 0
    %1353 = vmatprep.subr.bf16.mxu0 0
    %1354 = vmatpush1.bf16.msra.mxu0 0
    %1355 = vmatprep.subr.bf16.mxu0 0
    %1356 = vmatpush1.bf16.msra.mxu0 0
    %1357 = vmatprep.subr.bf16.mxu0 0
    %1358 = vmatpush1.bf16.msra.mxu0 0
    %1359 = vmatprep.subr.bf16.mxu0 0
    %1360 = vmatpush1.bf16.msra.mxu0 0
    %1361 = vmatprep.subr.bf16.mxu0 0
    %1362 = vmatpush1.bf16.msra.mxu0 0
    %1363 = vmatprep.subr.bf16.mxu0 0
    %1364 = vmatpush1.bf16.msra.mxu0 0
    %1365 = vmatprep.subr.bf16.mxu0 0
    %1366 = vmatpush1.bf16.msra.mxu0 %v160
    %1367 = vmatprep.subr.bf16.mxu0 0
    %1368 = vmatpush1.bf16.msra.mxu0 %v159
    %1369 = vmatprep.subr.bf16.mxu0 0
    %1370 = vmatpush2.bf16.msra.mxu0 0
    %1371 = vmatprep.subr.bf16.mxu0 0
    %1372 = vmatpush2.bf16.msra.mxu0 0
    %1373 = vmatprep.subr.bf16.mxu0 0
    %1374 = vmatpush2.bf16.msra.mxu0 0
    %1375 = vmatprep.subr.bf16.mxu0 0
    %1376 = vmatpush2.bf16.msra.mxu0 0
    %1377 = vmatprep.subr.bf16.mxu0 0
    %1378 = vmatpush2.bf16.msra.mxu0 0
    %1379 = vmatprep.subr.bf16.mxu0 0
    %1380 = vmatpush2.bf16.msra.mxu0 0
    %1381 = vmatprep.subr.bf16.mxu0 0
    %1382 = vmatpush2.bf16.msra.mxu0 0
    %1383 = vmatprep.subr.bf16.mxu0 0
    %1384 = vmatpush2.bf16.msra.mxu0 0
    %1385 = vmatprep.mubr.bf16.mxu0 0
    %1386 = vmatmul.mubr.bf16.gmra.mxu0 %v1351
    %v1387 = vpop.f32.mrf.mxu0
    %v1388 = vadd.f32 0.0, %v1387
    %v1389 = vpop.f32.mrf.mxu0
    %v1390 = vpop.f32.mrf.mxu0
    %v1391 = vpop.f32.mrf.mxu0
    %1392 = vdwg.mxu0
    %v1394 = vrot.slane %v1388, 1
    %v1396 = vadd.f32 %v136, %v1394
    %v1397 = vxor.u32 %v1396, 2147483648
    %v1398 = vmul.f32 %v1397, 1.442695
    %v1399 = vpow.pop %v1398
    %v1400 = vadd.f32 %v1399, 1.0
    %v1401 = vrcp.pop %v1400
    %v1402 = vmul.f32 1.0, %v1401
    %v1403 = vtanh.pop %v1396
    %v1405 = vrot.slane %v1338, 7
    %v1407 = vmul.f32 %v1402, %v1405
    %1409 = vrot.lane.b32.xlu0 %v1403, 64
    %v1410 = vpop.permute.xlu0 %1409
    %v1412 = vmul.f32 %v1402, %v1410
    %1414 = vrot.lane.b32.xlu0 %v1412, 32
    %v1415 = vpop.permute.xlu0 %1414
    %v1417 = vadd.f32 %v1407, %v1415
    %v1418 = vtanh.pop %v1417
    %1420 = vrot.lane.b32.xlu0 %v1418, 64
    %v1421 = vpop.permute.xlu0 %1420
    %v1423 = vmul.f32 %v1402, %v1421
    %v1424 = vpack.c.bf16 %v1423, %v1423
    %v1426 = vshrl.u32 %v1424, 16
    %v1428 = vrot.slane %v1426, 3
    %1429 = vrot.lane.b32.xlu0 %v1428, 32
    %v1430 = vpop.permute.xlu0 %1429
    %v1432 = vsel %vm163, %v1430, 0
    %1434 = vmatprep.subr.bf16.mxu0 0
    %1435 = vmatpush1.bf16.msra.mxu0 0
    %1436 = vmatprep.subr.bf16.mxu0 0
    %1437 = vmatpush1.bf16.msra.mxu0 0
    %1438 = vmatprep.subr.bf16.mxu0 0
    %1439 = vmatpush1.bf16.msra.mxu0 0
    %1440 = vmatprep.subr.bf16.mxu0 0
    %1441 = vmatpush1.bf16.msra.mxu0 0
    %1442 = vmatprep.subr.bf16.mxu0 0
    %1443 = vmatpush1.bf16.msra.mxu0 0
    %1444 = vmatprep.subr.bf16.mxu0 0
    %1445 = vmatpush1.bf16.msra.mxu0 0
    %1446 = vmatprep.subr.bf16.mxu0 0
    %1447 = vmatpush1.bf16.msra.mxu0 %v160
    %1448 = vmatprep.subr.bf16.mxu0 0
    %1449 = vmatpush1.bf16.msra.mxu0 %v159
    %1450 = vmatprep.subr.bf16.mxu0 0
    %1451 = vmatpush2.bf16.msra.mxu0 0
    %1452 = vmatprep.subr.bf16.mxu0 0
    %1453 = vmatpush2.bf16.msra.mxu0 0
    %1454 = vmatprep.subr.bf16.mxu0 0
    %1455 = vmatpush2.bf16.msra.mxu0 0
    %1456 = vmatprep.subr.bf16.mxu0 0
    %1457 = vmatpush2.bf16.msra.mxu0 0
    %1458 = vmatprep.subr.bf16.mxu0 0
    %1459 = vmatpush2.bf16.msra.mxu0 0
    %1460 = vmatprep.subr.bf16.mxu0 0
    %1461 = vmatpush2.bf16.msra.mxu0 0
    %1462 = vmatprep.subr.bf16.mxu0 0
    %1463 = vmatpush2.bf16.msra.mxu0 0
    %1464 = vmatprep.subr.bf16.mxu0 0
    %1465 = vmatpush2.bf16.msra.mxu0 0
    %1466 = vmatprep.mubr.bf16.mxu0 0
    %1467 = vmatmul.mubr.bf16.gmra.mxu0 %v1432
    %v1468 = vpop.f32.mrf.mxu0
    %v1469 = vadd.f32 0.0, %v1468
    %v1470 = vpop.f32.mrf.mxu0
    %v1471 = vpop.f32.mrf.mxu0
    %v1472 = vpop.f32.mrf.mxu0
    %1473 = vdwg.mxu0
    %v1474 = vadd.f32 %v141, %v1469
    %v1475 = vxor.u32 %v1474, 2147483648
    %v1476 = vmul.f32 %v1475, 1.442695
    %v1477 = vpow.pop %v1476
    %v1478 = vadd.f32 %v1477, 1.0
    %v1479 = vrcp.pop %v1478
    %v1480 = vmul.f32 1.0, %v1479
    %v1481 = vtanh.pop %v1474
    %v1483 = vrot.slane %v1417, 7
    %v1485 = vmul.f32 %v1480, %v1483
    %1487 = vrot.lane.b32.xlu0 %v1481, 64
    %v1488 = vpop.permute.xlu0 %1487
    %v1490 = vmul.f32 %v1480, %v1488
    %1492 = vrot.lane.b32.xlu0 %v1490, 32
    %v1493 = vpop.permute.xlu0 %1492
    %v1495 = vadd.f32 %v1485, %v1493
    %v1496 = vtanh.pop %v1495
    %1498 = vrot.lane.b32.xlu0 %v1496, 64
    %v1499 = vpop.permute.xlu0 %1498
    %v1501 = vmul.f32 %v1480, %v1499
    %v1502 = vpack.c.bf16 %v1501, %v1501
    %1504 = vrot.lane.b32.xlu0 %v1502, 32
    %v1505 = vpop.permute.xlu0 %1504
    %v1507 = vsel %vm163, %v1505, 0
    %1509 = vmatprep.subr.bf16.mxu0 0
    %1510 = vmatpush1.bf16.msra.mxu0 0
    %1511 = vmatprep.subr.bf16.mxu0 0
    %1512 = vmatpush1.bf16.msra.mxu0 0
    %1513 = vmatprep.subr.bf16.mxu0 0
    %1514 = vmatpush1.bf16.msra.mxu0 0
    %1515 = vmatprep.subr.bf16.mxu0 0
    %1516 = vmatpush1.bf16.msra.mxu0 0
    %1517 = vmatprep.subr.bf16.mxu0 0
    %1518 = vmatpush1.bf16.msra.mxu0 0
    %1519 = vmatprep.subr.bf16.mxu0 0
    %1520 = vmatpush1.bf16.msra.mxu0 0
    %1521 = vmatprep.subr.bf16.mxu0 0
    %1522 = vmatpush1.bf16.msra.mxu0 %v160
    %1523 = vmatprep.subr.bf16.mxu0 0
    %1524 = vmatpush1.bf16.msra.mxu0 %v159
    %1525 = vmatprep.subr.bf16.mxu0 0
    %1526 = vmatpush2.bf16.msra.mxu0 0
    %1527 = vmatprep.subr.bf16.mxu0 0
    %1528 = vmatpush2.bf16.msra.mxu0 0
    %1529 = vmatprep.subr.bf16.mxu0 0
    %1530 = vmatpush2.bf16.msra.mxu0 0
    %1531 = vmatprep.subr.bf16.mxu0 0
    %1532 = vmatpush2.bf16.msra.mxu0 0
    %1533 = vmatprep.subr.bf16.mxu0 0
    %1534 = vmatpush2.bf16.msra.mxu0 0
    %1535 = vmatprep.subr.bf16.mxu0 0
    %1536 = vmatpush2.bf16.msra.mxu0 0
    %1537 = vmatprep.subr.bf16.mxu0 0
    %1538 = vmatpush2.bf16.msra.mxu0 0
    %1539 = vmatprep.subr.bf16.mxu0 0
    %1540 = vmatpush2.bf16.msra.mxu0 0
    %1541 = vmatprep.mubr.bf16.mxu0 0
    %1542 = vmatmul.mubr.bf16.gmra.mxu0 %v1507
    %v1543 = vpop.f32.mrf.mxu0
    %v1544 = vadd.f32 0.0, %v1543
    %v1545 = vpop.f32.mrf.mxu0
    %v1546 = vpop.f32.mrf.mxu0
    %v1547 = vpop.f32.mrf.mxu0
    %1548 = vdwg.mxu0
    %v1550 = vrot.slane %v1544, 7
    %v1552 = vadd.f32 %v141, %v1550
    %v1553 = vxor.u32 %v1552, 2147483648
    %v1554 = vmul.f32 %v1553, 1.442695
    %v1555 = vpow.pop %v1554
    %v1556 = vadd.f32 %v1555, 1.0
    %v1557 = vrcp.pop %v1556
    %v1558 = vmul.f32 1.0, %v1557
    %v1559 = vtanh.pop %v1552
    %v1561 = vrot.slane %v1495, 7
    %v1563 = vmul.f32 %v1558, %v1561
    %1565 = vrot.lane.b32.xlu0 %v1559, 64
    %v1566 = vpop.permute.xlu0 %1565
    %v1568 = vmul.f32 %v1558, %v1566
    %1570 = vrot.lane.b32.xlu0 %v1568, 32
    %v1571 = vpop.permute.xlu0 %1570
    %v1573 = vadd.f32 %v1563, %v1571
    %v1574 = vtanh.pop %v1573
    %1576 = vrot.lane.b32.xlu0 %v1574, 64
    %v1577 = vpop.permute.xlu0 %1576
    %v1579 = vmul.f32 %v1558, %v1577
    %v1580 = vpack.c.bf16 %v1579, %v1579
    %v1582 = vshrl.u32 %v1580, 16
    %1584 = vrot.lane.b32.xlu0 %v1582, 32
    %v1585 = vpop.permute.xlu0 %1584
    %v1587 = vsel %vm163, %v1585, 0
    %1589 = vmatprep.subr.bf16.mxu0 0
    %1590 = vmatpush1.bf16.msra.mxu0 0
    %1591 = vmatprep.subr.bf16.mxu0 0
    %1592 = vmatpush1.bf16.msra.mxu0 0
    %1593 = vmatprep.subr.bf16.mxu0 0
    %1594 = vmatpush1.bf16.msra.mxu0 0
    %1595 = vmatprep.subr.bf16.mxu0 0
    %1596 = vmatpush1.bf16.msra.mxu0 0
    %1597 = vmatprep.subr.bf16.mxu0 0
    %1598 = vmatpush1.bf16.msra.mxu0 0
    %1599 = vmatprep.subr.bf16.mxu0 0
    %1600 = vmatpush1.bf16.msra.mxu0 0
    %1601 = vmatprep.subr.bf16.mxu0 0
    %1602 = vmatpush1.bf16.msra.mxu0 %v160
    %1603 = vmatprep.subr.bf16.mxu0 0
    %1604 = vmatpush1.bf16.msra.mxu0 %v159
    %1605 = vmatprep.subr.bf16.mxu0 0
    %1606 = vmatpush2.bf16.msra.mxu0 0
    %1607 = vmatprep.subr.bf16.mxu0 0
    %1608 = vmatpush2.bf16.msra.mxu0 0
    %1609 = vmatprep.subr.bf16.mxu0 0
    %1610 = vmatpush2.bf16.msra.mxu0 0
    %1611 = vmatprep.subr.bf16.mxu0 0
    %1612 = vmatpush2.bf16.msra.mxu0 0
    %1613 = vmatprep.subr.bf16.mxu0 0
    %1614 = vmatpush2.bf16.msra.mxu0 0
    %1615 = vmatprep.subr.bf16.mxu0 0
    %1616 = vmatpush2.bf16.msra.mxu0 0
    %1617 = vmatprep.subr.bf16.mxu0 0
    %1618 = vmatpush2.bf16.msra.mxu0 0
    %1619 = vmatprep.subr.bf16.mxu0 0
    %1620 = vmatpush2.bf16.msra.mxu0 0
    %1621 = vmatprep.mubr.bf16.mxu0 0
    %1622 = vmatmul.mubr.bf16.gmra.mxu0 %v1587
    %v1623 = vpop.f32.mrf.mxu0
    %v1624 = vadd.f32 0.0, %v1623
    %v1625 = vpop.f32.mrf.mxu0
    %v1626 = vpop.f32.mrf.mxu0
    %v1627 = vpop.f32.mrf.mxu0
    %1628 = vdwg.mxu0
    %v1630 = vrot.slane %v1624, 6
    %v1632 = vadd.f32 %v141, %v1630
    %v1633 = vxor.u32 %v1632, 2147483648
    %v1634 = vmul.f32 %v1633, 1.442695
    %v1635 = vpow.pop %v1634
    %v1636 = vadd.f32 %v1635, 1.0
    %v1637 = vrcp.pop %v1636
    %v1638 = vmul.f32 1.0, %v1637
    %v1639 = vtanh.pop %v1632
    %v1641 = vrot.slane %v1573, 7
    %v1643 = vmul.f32 %v1638, %v1641
    %1645 = vrot.lane.b32.xlu0 %v1639, 64
    %v1646 = vpop.permute.xlu0 %1645
    %v1648 = vmul.f32 %v1638, %v1646
    %1650 = vrot.lane.b32.xlu0 %v1648, 32
    %v1651 = vpop.permute.xlu0 %1650
    %v1653 = vadd.f32 %v1643, %v1651
    %v1654 = vtanh.pop %v1653
    %1656 = vrot.lane.b32.xlu0 %v1654, 64
    %v1657 = vpop.permute.xlu0 %1656
    %v1659 = vmul.f32 %v1638, %v1657
    %v1660 = vpack.c.bf16 %v1659, %v1659
    %v1662 = vrot.slane %v1660, 1
    %1663 = vrot.lane.b32.xlu0 %v1662, 32
    %v1664 = vpop.permute.xlu0 %1663
    %v1666 = vsel %vm163, %v1664, 0
    %1668 = vmatprep.subr.bf16.mxu0 0
    %1669 = vmatpush1.bf16.msra.mxu0 0
    %1670 = vmatprep.subr.bf16.mxu0 0
    %1671 = vmatpush1.bf16.msra.mxu0 0
    %1672 = vmatprep.subr.bf16.mxu0 0
    %1673 = vmatpush1.bf16.msra.mxu0 0
    %1674 = vmatprep.subr.bf16.mxu0 0
    %1675 = vmatpush1.bf16.msra.mxu0 0
    %1676 = vmatprep.subr.bf16.mxu0 0
    %1677 = vmatpush1.bf16.msra.mxu0 0
    %1678 = vmatprep.subr.bf16.mxu0 0
    %1679 = vmatpush1.bf16.msra.mxu0 0
    %1680 = vmatprep.subr.bf16.mxu0 0
    %1681 = vmatpush1.bf16.msra.mxu0 %v160
    %1682 = vmatprep.subr.bf16.mxu0 0
    %1683 = vmatpush1.bf16.msra.mxu0 %v159
    %1684 = vmatprep.subr.bf16.mxu0 0
    %1685 = vmatpush2.bf16.msra.mxu0 0
    %1686 = vmatprep.subr.bf16.mxu0 0
    %1687 = vmatpush2.bf16.msra.mxu0 0
    %1688 = vmatprep.subr.bf16.mxu0 0
    %1689 = vmatpush2.bf16.msra.mxu0 0
    %1690 = vmatprep.subr.bf16.mxu0 0
    %1691 = vmatpush2.bf16.msra.mxu0 0
    %1692 = vmatprep.subr.bf16.mxu0 0
    %1693 = vmatpush2.bf16.msra.mxu0 0
    %1694 = vmatprep.subr.bf16.mxu0 0
    %1695 = vmatpush2.bf16.msra.mxu0 0
    %1696 = vmatprep.subr.bf16.mxu0 0
    %1697 = vmatpush2.bf16.msra.mxu0 0
    %1698 = vmatprep.subr.bf16.mxu0 0
    %1699 = vmatpush2.bf16.msra.mxu0 0
    %1700 = vmatprep.mubr.bf16.mxu0 0
    %1701 = vmatmul.mubr.bf16.gmra.mxu0 %v1666
    %v1702 = vpop.f32.mrf.mxu0
    %v1703 = vadd.f32 0.0, %v1702
    %v1704 = vpop.f32.mrf.mxu0
    %v1705 = vpop.f32.mrf.mxu0
    %v1706 = vpop.f32.mrf.mxu0
    %1707 = vdwg.mxu0
    %v1709 = vrot.slane %v1703, 5
    %v1711 = vadd.f32 %v141, %v1709
    %v1712 = vxor.u32 %v1711, 2147483648
    %v1713 = vmul.f32 %v1712, 1.442695
    %v1714 = vpow.pop %v1713
    %v1715 = vadd.f32 %v1714, 1.0
    %v1716 = vrcp.pop %v1715
    %v1717 = vmul.f32 1.0, %v1716
    %v1718 = vtanh.pop %v1711
    %v1720 = vrot.slane %v1653, 7
    %v1722 = vmul.f32 %v1717, %v1720
    %1724 = vrot.lane.b32.xlu0 %v1718, 64
    %v1725 = vpop.permute.xlu0 %1724
    %v1727 = vmul.f32 %v1717, %v1725
    %1729 = vrot.lane.b32.xlu0 %v1727, 32
    %v1730 = vpop.permute.xlu0 %1729
    %v1732 = vadd.f32 %v1722, %v1730
    %v1733 = vtanh.pop %v1732
    %1735 = vrot.lane.b32.xlu0 %v1733, 64
    %v1736 = vpop.permute.xlu0 %1735
    %v1738 = vmul.f32 %v1717, %v1736
    %v1739 = vpack.c.bf16 %v1738, %v1738
    %v1741 = vshrl.u32 %v1739, 16
    %v1743 = vrot.slane %v1741, 1
    %1744 = vrot.lane.b32.xlu0 %v1743, 32
    %v1745 = vpop.permute.xlu0 %1744
    %v1747 = vsel %vm163, %v1745, 0
    %1749 = vmatprep.subr.bf16.mxu0 0
    %1750 = vmatpush1.bf16.msra.mxu0 0
    %1751 = vmatprep.subr.bf16.mxu0 0
    %1752 = vmatpush1.bf16.msra.mxu0 0
    %1753 = vmatprep.subr.bf16.mxu0 0
    %1754 = vmatpush1.bf16.msra.mxu0 0
    %1755 = vmatprep.subr.bf16.mxu0 0
    %1756 = vmatpush1.bf16.msra.mxu0 0
    %1757 = vmatprep.subr.bf16.mxu0 0
    %1758 = vmatpush1.bf16.msra.mxu0 0
    %1759 = vmatprep.subr.bf16.mxu0 0
    %1760 = vmatpush1.bf16.msra.mxu0 0
    %1761 = vmatprep.subr.bf16.mxu0 0
    %1762 = vmatpush1.bf16.msra.mxu0 %v160
    %1763 = vmatprep.subr.bf16.mxu0 0
    %1764 = vmatpush1.bf16.msra.mxu0 %v159
    %1765 = vmatprep.subr.bf16.mxu0 0
    %1766 = vmatpush2.bf16.msra.mxu0 0
    %1767 = vmatprep.subr.bf16.mxu0 0
    %1768 = vmatpush2.bf16.msra.mxu0 0
    %1769 = vmatprep.subr.bf16.mxu0 0
    %1770 = vmatpush2.bf16.msra.mxu0 0
    %1771 = vmatprep.subr.bf16.mxu0 0
    %1772 = vmatpush2.bf16.msra.mxu0 0
    %1773 = vmatprep.subr.bf16.mxu0 0
    %1774 = vmatpush2.bf16.msra.mxu0 0
    %1775 = vmatprep.subr.bf16.mxu0 0
    %1776 = vmatpush2.bf16.msra.mxu0 0
    %1777 = vmatprep.subr.bf16.mxu0 0
    %1778 = vmatpush2.bf16.msra.mxu0 0
    %1779 = vmatprep.subr.bf16.mxu0 0
    %1780 = vmatpush2.bf16.msra.mxu0 0
    %1781 = vmatprep.mubr.bf16.mxu0 0
    %1782 = vmatmul.mubr.bf16.gmra.mxu0 %v1747
    %v1783 = vpop.f32.mrf.mxu0
    %v1784 = vadd.f32 0.0, %v1783
    %v1785 = vpop.f32.mrf.mxu0
    %v1786 = vpop.f32.mrf.mxu0
    %v1787 = vpop.f32.mrf.mxu0
    %1788 = vdwg.mxu0
    %v1790 = vrot.slane %v1784, 4
    %v1792 = vadd.f32 %v141, %v1790
    %v1793 = vxor.u32 %v1792, 2147483648
    %v1794 = vmul.f32 %v1793, 1.442695
    %v1795 = vpow.pop %v1794
    %v1796 = vadd.f32 %v1795, 1.0
    %v1797 = vrcp.pop %v1796
    %v1798 = vmul.f32 1.0, %v1797
    %v1799 = vtanh.pop %v1792
    %v1801 = vrot.slane %v1732, 7
    %v1803 = vmul.f32 %v1798, %v1801
    %1805 = vrot.lane.b32.xlu0 %v1799, 64
    %v1806 = vpop.permute.xlu0 %1805
    %v1808 = vmul.f32 %v1798, %v1806
    %1810 = vrot.lane.b32.xlu0 %v1808, 32
    %v1811 = vpop.permute.xlu0 %1810
    %v1813 = vadd.f32 %v1803, %v1811
    %v1814 = vtanh.pop %v1813
    %1816 = vrot.lane.b32.xlu0 %v1814, 64
    %v1817 = vpop.permute.xlu0 %1816
    %v1819 = vmul.f32 %v1798, %v1817
    %v1820 = vpack.c.bf16 %v1819, %v1819
    %v1822 = vrot.slane %v1820, 2
    %1823 = vrot.lane.b32.xlu0 %v1822, 32
    %v1824 = vpop.permute.xlu0 %1823
    %v1826 = vsel %vm163, %v1824, 0
    %1828 = vmatprep.subr.bf16.mxu0 0
    %1829 = vmatpush1.bf16.msra.mxu0 0
    %1830 = vmatprep.subr.bf16.mxu0 0
    %1831 = vmatpush1.bf16.msra.mxu0 0
    %1832 = vmatprep.subr.bf16.mxu0 0
    %1833 = vmatpush1.bf16.msra.mxu0 0
    %1834 = vmatprep.subr.bf16.mxu0 0
    %1835 = vmatpush1.bf16.msra.mxu0 0
    %1836 = vmatprep.subr.bf16.mxu0 0
    %1837 = vmatpush1.bf16.msra.mxu0 0
    %1838 = vmatprep.subr.bf16.mxu0 0
    %1839 = vmatpush1.bf16.msra.mxu0 0
    %1840 = vmatprep.subr.bf16.mxu0 0
    %1841 = vmatpush1.bf16.msra.mxu0 %v160
    %1842 = vmatprep.subr.bf16.mxu0 0
    %1843 = vmatpush1.bf16.msra.mxu0 %v159
    %1844 = vmatprep.subr.bf16.mxu0 0
    %1845 = vmatpush2.bf16.msra.mxu0 0
    %1846 = vmatprep.subr.bf16.mxu0 0
    %1847 = vmatpush2.bf16.msra.mxu0 0
    %1848 = vmatprep.subr.bf16.mxu0 0
    %1849 = vmatpush2.bf16.msra.mxu0 0
    %1850 = vmatprep.subr.bf16.mxu0 0
    %1851 = vmatpush2.bf16.msra.mxu0 0
    %1852 = vmatprep.subr.bf16.mxu0 0
    %1853 = vmatpush2.bf16.msra.mxu0 0
    %1854 = vmatprep.subr.bf16.mxu0 0
    %1855 = vmatpush2.bf16.msra.mxu0 0
    %1856 = vmatprep.subr.bf16.mxu0 0
    %1857 = vmatpush2.bf16.msra.mxu0 0
    %1858 = vmatprep.subr.bf16.mxu0 0
    %1859 = vmatpush2.bf16.msra.mxu0 0
    %1860 = vmatprep.mubr.bf16.mxu0 0
    %1861 = vmatmul.mubr.bf16.gmra.mxu0 %v1826
    %v1862 = vpop.f32.mrf.mxu0
    %v1863 = vadd.f32 0.0, %v1862
    %v1864 = vpop.f32.mrf.mxu0
    %v1865 = vpop.f32.mrf.mxu0
    %v1866 = vpop.f32.mrf.mxu0
    %1867 = vdwg.mxu0
    %v1869 = vrot.slane %v1863, 3
    %v1871 = vadd.f32 %v141, %v1869
    %v1872 = vxor.u32 %v1871, 2147483648
    %v1873 = vmul.f32 %v1872, 1.442695
    %v1874 = vpow.pop %v1873
    %v1875 = vadd.f32 %v1874, 1.0
    %v1876 = vrcp.pop %v1875
    %v1877 = vmul.f32 1.0, %v1876
    %v1878 = vtanh.pop %v1871
    %v1880 = vrot.slane %v1813, 7
    %v1882 = vmul.f32 %v1877, %v1880
    %1884 = vrot.lane.b32.xlu0 %v1878, 64
    %v1885 = vpop.permute.xlu0 %1884
    %v1887 = vmul.f32 %v1877, %v1885
    %1889 = vrot.lane.b32.xlu0 %v1887, 32
    %v1890 = vpop.permute.xlu0 %1889
    %v1892 = vadd.f32 %v1882, %v1890
    %v1893 = vtanh.pop %v1892
    %1895 = vrot.lane.b32.xlu0 %v1893, 64
    %v1896 = vpop.permute.xlu0 %1895
    %v1898 = vmul.f32 %v1877, %v1896
    %v1899 = vpack.c.bf16 %v1898, %v1898
    %v1901 = vshrl.u32 %v1899, 16
    %v1903 = vrot.slane %v1901, 2
    %1904 = vrot.lane.b32.xlu0 %v1903, 32
    %v1905 = vpop.permute.xlu0 %1904
    %v1907 = vsel %vm163, %v1905, 0
    %1909 = vmatprep.subr.bf16.mxu0 0
    %1910 = vmatpush1.bf16.msra.mxu0 0
    %1911 = vmatprep.subr.bf16.mxu0 0
    %1912 = vmatpush1.bf16.msra.mxu0 0
    %1913 = vmatprep.subr.bf16.mxu0 0
    %1914 = vmatpush1.bf16.msra.mxu0 0
    %1915 = vmatprep.subr.bf16.mxu0 0
    %1916 = vmatpush1.bf16.msra.mxu0 0
    %1917 = vmatprep.subr.bf16.mxu0 0
    %1918 = vmatpush1.bf16.msra.mxu0 0
    %1919 = vmatprep.subr.bf16.mxu0 0
    %1920 = vmatpush1.bf16.msra.mxu0 0
    %1921 = vmatprep.subr.bf16.mxu0 0
    %1922 = vmatpush1.bf16.msra.mxu0 %v160
    %1923 = vmatprep.subr.bf16.mxu0 0
    %1924 = vmatpush1.bf16.msra.mxu0 %v159
    %1925 = vmatprep.subr.bf16.mxu0 0
    %1926 = vmatpush2.bf16.msra.mxu0 0
    %1927 = vmatprep.subr.bf16.mxu0 0
    %1928 = vmatpush2.bf16.msra.mxu0 0
    %1929 = vmatprep.subr.bf16.mxu0 0
    %1930 = vmatpush2.bf16.msra.mxu0 0
    %1931 = vmatprep.subr.bf16.mxu0 0
    %1932 = vmatpush2.bf16.msra.mxu0 0
    %1933 = vmatprep.subr.bf16.mxu0 0
    %1934 = vmatpush2.bf16.msra.mxu0 0
    %1935 = vmatprep.subr.bf16.mxu0 0
    %1936 = vmatpush2.bf16.msra.mxu0 0
    %1937 = vmatprep.subr.bf16.mxu0 0
    %1938 = vmatpush2.bf16.msra.mxu0 0
    %1939 = vmatprep.subr.bf16.mxu0 0
    %1940 = vmatpush2.bf16.msra.mxu0 0
    %1941 = vmatprep.mubr.bf16.mxu0 0
    %1942 = vmatmul.mubr.bf16.gmra.mxu0 %v1907
    %v1943 = vpop.f32.mrf.mxu0
    %v1944 = vadd.f32 0.0, %v1943
    %v1945 = vpop.f32.mrf.mxu0
    %v1946 = vpop.f32.mrf.mxu0
    %v1947 = vpop.f32.mrf.mxu0
    %1948 = vdwg.mxu0
    %v1950 = vrot.slane %v1944, 2
    %v1952 = vadd.f32 %v141, %v1950
    %v1953 = vxor.u32 %v1952, 2147483648
    %v1954 = vmul.f32 %v1953, 1.442695
    %v1955 = vpow.pop %v1954
    %v1956 = vadd.f32 %v1955, 1.0
    %v1957 = vrcp.pop %v1956
    %v1958 = vmul.f32 1.0, %v1957
    %v1959 = vtanh.pop %v1952
    %v1961 = vrot.slane %v1892, 7
    %v1963 = vmul.f32 %v1958, %v1961
    %1965 = vrot.lane.b32.xlu0 %v1959, 64
    %v1966 = vpop.permute.xlu0 %1965
    %v1968 = vmul.f32 %v1958, %v1966
    %1970 = vrot.lane.b32.xlu0 %v1968, 32
    %v1971 = vpop.permute.xlu0 %1970
    %v1973 = vadd.f32 %v1963, %v1971
    %v1974 = vtanh.pop %v1973
    %1976 = vrot.lane.b32.xlu0 %v1974, 64
    %v1977 = vpop.permute.xlu0 %1976
    %v1979 = vmul.f32 %v1958, %v1977
    %v1980 = vpack.c.bf16 %v1979, %v1979
    %v1982 = vrot.slane %v1980, 3
    %1983 = vrot.lane.b32.xlu0 %v1982, 32
    %v1984 = vpop.permute.xlu0 %1983
    %v1986 = vsel %vm163, %v1984, 0
    %1988 = vmatprep.subr.bf16.mxu0 0
    %1989 = vmatpush1.bf16.msra.mxu0 0
    %1990 = vmatprep.subr.bf16.mxu0 0
    %1991 = vmatpush1.bf16.msra.mxu0 0
    %1992 = vmatprep.subr.bf16.mxu0 0
    %1993 = vmatpush1.bf16.msra.mxu0 0
    %1994 = vmatprep.subr.bf16.mxu0 0
    %1995 = vmatpush1.bf16.msra.mxu0 0
    %1996 = vmatprep.subr.bf16.mxu0 0
    %1997 = vmatpush1.bf16.msra.mxu0 0
    %1998 = vmatprep.subr.bf16.mxu0 0
    %1999 = vmatpush1.bf16.msra.mxu0 0
    %2000 = vmatprep.subr.bf16.mxu0 0
    %2001 = vmatpush1.bf16.msra.mxu0 %v160
    %2002 = vmatprep.subr.bf16.mxu0 0
    %2003 = vmatpush1.bf16.msra.mxu0 %v159
    %2004 = vmatprep.subr.bf16.mxu0 0
    %2005 = vmatpush2.bf16.msra.mxu0 0
    %2006 = vmatprep.subr.bf16.mxu0 0
    %2007 = vmatpush2.bf16.msra.mxu0 0
    %2008 = vmatprep.subr.bf16.mxu0 0
    %2009 = vmatpush2.bf16.msra.mxu0 0
    %2010 = vmatprep.subr.bf16.mxu0 0
    %2011 = vmatpush2.bf16.msra.mxu0 0
    %2012 = vmatprep.subr.bf16.mxu0 0
    %2013 = vmatpush2.bf16.msra.mxu0 0
    %2014 = vmatprep.subr.bf16.mxu0 0
    %2015 = vmatpush2.bf16.msra.mxu0 0
    %2016 = vmatprep.subr.bf16.mxu0 0
    %2017 = vmatpush2.bf16.msra.mxu0 0
    %2018 = vmatprep.subr.bf16.mxu0 0
    %2019 = vmatpush2.bf16.msra.mxu0 0
    %2020 = vmatprep.mubr.bf16.mxu0 0
    %2021 = vmatmul.mubr.bf16.gmra.mxu0 %v1986
    %v2022 = vpop.f32.mrf.mxu0
    %v2023 = vadd.f32 0.0, %v2022
    %v2024 = vpop.f32.mrf.mxu0
    %v2025 = vpop.f32.mrf.mxu0
    %v2026 = vpop.f32.mrf.mxu0
    %2027 = vdwg.mxu0
    %v2029 = vrot.slane %v2023, 1
    %v2031 = vadd.f32 %v141, %v2029
    %v2032 = vxor.u32 %v2031, 2147483648
    %v2033 = vmul.f32 %v2032, 1.442695
    %v2034 = vpow.pop %v2033
    %v2035 = vadd.f32 %v2034, 1.0
    %v2036 = vrcp.pop %v2035
    %v2037 = vmul.f32 1.0, %v2036
    %v2038 = vtanh.pop %v2031
    %v2040 = vrot.slane %v1973, 7
    %v2042 = vmul.f32 %v2037, %v2040
    %2044 = vrot.lane.b32.xlu0 %v2038, 64
    %v2045 = vpop.permute.xlu0 %2044
    %v2047 = vmul.f32 %v2037, %v2045
    %2049 = vrot.lane.b32.xlu0 %v2047, 32
    %v2050 = vpop.permute.xlu0 %2049
    %v2052 = vadd.f32 %v2042, %v2050
    %v2053 = vtanh.pop %v2052
    %2055 = vrot.lane.b32.xlu0 %v2053, 64
    %v2056 = vpop.permute.xlu0 %2055
    %v2058 = vmul.f32 %v2037, %v2056
    %v2059 = vpack.c.bf16 %v2058, %v2058
    %v2061 = vshrl.u32 %v2059, 16
    %v2063 = vrot.slane %v2061, 3
    %2064 = vrot.lane.b32.xlu0 %v2063, 32
    %v2065 = vpop.permute.xlu0 %2064
    %v2067 = vsel %vm163, %v2065, 0
    %2069 = vmatprep.subr.bf16.mxu0 0
    %2070 = vmatpush1.bf16.msra.mxu0 0
    %2071 = vmatprep.subr.bf16.mxu0 0
    %2072 = vmatpush1.bf16.msra.mxu0 0
    %2073 = vmatprep.subr.bf16.mxu0 0
    %2074 = vmatpush1.bf16.msra.mxu0 0
    %2075 = vmatprep.subr.bf16.mxu0 0
    %2076 = vmatpush1.bf16.msra.mxu0 0
    %2077 = vmatprep.subr.bf16.mxu0 0
    %2078 = vmatpush1.bf16.msra.mxu0 0
    %2079 = vmatprep.subr.bf16.mxu0 0
    %2080 = vmatpush1.bf16.msra.mxu0 0
    %2081 = vmatprep.subr.bf16.mxu0 0
    %2082 = vmatpush1.bf16.msra.mxu0 %v160
    %2083 = vmatprep.subr.bf16.mxu0 0
    %2084 = vmatpush1.bf16.msra.mxu0 %v159
    %2085 = vmatprep.subr.bf16.mxu0 0
    %2086 = vmatpush2.bf16.msra.mxu0 0
    %2087 = vmatprep.subr.bf16.mxu0 0
    %2088 = vmatpush2.bf16.msra.mxu0 0
    %2089 = vmatprep.subr.bf16.mxu0 0
    %2090 = vmatpush2.bf16.msra.mxu0 0
    %2091 = vmatprep.subr.bf16.mxu0 0
    %2092 = vmatpush2.bf16.msra.mxu0 0
    %2093 = vmatprep.subr.bf16.mxu0 0
    %2094 = vmatpush2.bf16.msra.mxu0 0
    %2095 = vmatprep.subr.bf16.mxu0 0
    %2096 = vmatpush2.bf16.msra.mxu0 0
    %2097 = vmatprep.subr.bf16.mxu0 0
    %2098 = vmatpush2.bf16.msra.mxu0 0
    %2099 = vmatprep.subr.bf16.mxu0 0
    %2100 = vmatpush2.bf16.msra.mxu0 0
    %2101 = vmatprep.mubr.bf16.mxu0 0
    %2102 = vmatmul.mubr.bf16.gmra.mxu0 %v2067
    %v2103 = vpop.f32.mrf.mxu0
    %v2104 = vadd.f32 0.0, %v2103
    %v2105 = vpop.f32.mrf.mxu0
    %v2106 = vpop.f32.mrf.mxu0
    %v2107 = vpop.f32.mrf.mxu0
    %2108 = vdwg.mxu0
    %v2109 = vadd.f32 %v144, %v2104
    %v2110 = vxor.u32 %v2109, 2147483648
    %v2111 = vmul.f32 %v2110, 1.442695
    %v2112 = vpow.pop %v2111
    %v2113 = vadd.f32 %v2112, 1.0
    %v2114 = vrcp.pop %v2113
    %v2115 = vmul.f32 1.0, %v2114
    %v2116 = vtanh.pop %v2109
    %v2118 = vrot.slane %v2052, 7
    %v2120 = vmul.f32 %v2115, %v2118
    %2122 = vrot.lane.b32.xlu0 %v2116, 64
    %v2123 = vpop.permute.xlu0 %2122
    %v2125 = vmul.f32 %v2115, %v2123
    %2127 = vrot.lane.b32.xlu0 %v2125, 32
    %v2128 = vpop.permute.xlu0 %2127
    %v2130 = vadd.f32 %v2120, %v2128
    %v2131 = vtanh.pop %v2130
    %2133 = vrot.lane.b32.xlu0 %v2131, 64
    %v2134 = vpop.permute.xlu0 %2133
    %v2136 = vmul.f32 %v2115, %v2134
    %v2137 = vpack.c.bf16 %v2136, %v2136
    %2139 = vrot.lane.b32.xlu0 %v2137, 32
    %v2140 = vpop.permute.xlu0 %2139
    %v2142 = vsel %vm163, %v2140, 0
    %2144 = vmatprep.subr.bf16.mxu0 0
    %2145 = vmatpush1.bf16.msra.mxu0 0
    %2146 = vmatprep.subr.bf16.mxu0 0
    %2147 = vmatpush1.bf16.msra.mxu0 0
    %2148 = vmatprep.subr.bf16.mxu0 0
    %2149 = vmatpush1.bf16.msra.mxu0 0
    %2150 = vmatprep.subr.bf16.mxu0 0
    %2151 = vmatpush1.bf16.msra.mxu0 0
    %2152 = vmatprep.subr.bf16.mxu0 0
    %2153 = vmatpush1.bf16.msra.mxu0 0
    %2154 = vmatprep.subr.bf16.mxu0 0
    %2155 = vmatpush1.bf16.msra.mxu0 0
    %2156 = vmatprep.subr.bf16.mxu0 0
    %2157 = vmatpush1.bf16.msra.mxu0 %v160
    %2158 = vmatprep.subr.bf16.mxu0 0
    %2159 = vmatpush1.bf16.msra.mxu0 %v159
    %2160 = vmatprep.subr.bf16.mxu0 0
    %2161 = vmatpush2.bf16.msra.mxu0 0
    %2162 = vmatprep.subr.bf16.mxu0 0
    %2163 = vmatpush2.bf16.msra.mxu0 0
    %2164 = vmatprep.subr.bf16.mxu0 0
    %2165 = vmatpush2.bf16.msra.mxu0 0
    %2166 = vmatprep.subr.bf16.mxu0 0
    %2167 = vmatpush2.bf16.msra.mxu0 0
    %2168 = vmatprep.subr.bf16.mxu0 0
    %2169 = vmatpush2.bf16.msra.mxu0 0
    %2170 = vmatprep.subr.bf16.mxu0 0
    %2171 = vmatpush2.bf16.msra.mxu0 0
    %2172 = vmatprep.subr.bf16.mxu0 0
    %2173 = vmatpush2.bf16.msra.mxu0 0
    %2174 = vmatprep.subr.bf16.mxu0 0
    %2175 = vmatpush2.bf16.msra.mxu0 0
    %2176 = vmatprep.mubr.bf16.mxu0 0
    %2177 = vmatmul.mubr.bf16.gmra.mxu0 %v2142
    %v2178 = vpop.f32.mrf.mxu0
    %v2179 = vadd.f32 0.0, %v2178
    %v2180 = vpop.f32.mrf.mxu0
    %v2181 = vpop.f32.mrf.mxu0
    %v2182 = vpop.f32.mrf.mxu0
    %2183 = vdwg.mxu0
    %v2185 = vrot.slane %v2179, 7
    %v2187 = vadd.f32 %v144, %v2185
    %v2188 = vxor.u32 %v2187, 2147483648
    %v2189 = vmul.f32 %v2188, 1.442695
    %v2190 = vpow.pop %v2189
    %v2191 = vadd.f32 %v2190, 1.0
    %v2192 = vrcp.pop %v2191
    %v2193 = vmul.f32 1.0, %v2192
    %v2194 = vtanh.pop %v2187
    %v2196 = vrot.slane %v2130, 7
    %v2198 = vmul.f32 %v2193, %v2196
    %2200 = vrot.lane.b32.xlu0 %v2194, 64
    %v2201 = vpop.permute.xlu0 %2200
    %v2203 = vmul.f32 %v2193, %v2201
    %2205 = vrot.lane.b32.xlu0 %v2203, 32
    %v2206 = vpop.permute.xlu0 %2205
    %v2208 = vadd.f32 %v2198, %v2206
    %v2209 = vtanh.pop %v2208
    %2211 = vrot.lane.b32.xlu0 %v2209, 64
    %v2212 = vpop.permute.xlu0 %2211
    %v2214 = vmul.f32 %v2193, %v2212
    %v2215 = vpack.c.bf16 %v2214, %v2214
    %v2217 = vshrl.u32 %v2215, 16
    %2219 = vrot.lane.b32.xlu0 %v2217, 32
    %v2220 = vpop.permute.xlu0 %2219
    %v2222 = vsel %vm163, %v2220, 0
    %2224 = vmatprep.subr.bf16.mxu0 0
    %2225 = vmatpush1.bf16.msra.mxu0 0
    %2226 = vmatprep.subr.bf16.mxu0 0
    %2227 = vmatpush1.bf16.msra.mxu0 0
    %2228 = vmatprep.subr.bf16.mxu0 0
    %2229 = vmatpush1.bf16.msra.mxu0 0
    %2230 = vmatprep.subr.bf16.mxu0 0
    %2231 = vmatpush1.bf16.msra.mxu0 0
    %2232 = vmatprep.subr.bf16.mxu0 0
    %2233 = vmatpush1.bf16.msra.mxu0 0
    %2234 = vmatprep.subr.bf16.mxu0 0
    %2235 = vmatpush1.bf16.msra.mxu0 0
    %2236 = vmatprep.subr.bf16.mxu0 0
    %2237 = vmatpush1.bf16.msra.mxu0 %v160
    %2238 = vmatprep.subr.bf16.mxu0 0
    %2239 = vmatpush1.bf16.msra.mxu0 %v159
    %2240 = vmatprep.subr.bf16.mxu0 0
    %2241 = vmatpush2.bf16.msra.mxu0 0
    %2242 = vmatprep.subr.bf16.mxu0 0
    %2243 = vmatpush2.bf16.msra.mxu0 0
    %2244 = vmatprep.subr.bf16.mxu0 0
    %2245 = vmatpush2.bf16.msra.mxu0 0
    %2246 = vmatprep.subr.bf16.mxu0 0
    %2247 = vmatpush2.bf16.msra.mxu0 0
    %2248 = vmatprep.subr.bf16.mxu0 0
    %2249 = vmatpush2.bf16.msra.mxu0 0
    %2250 = vmatprep.subr.bf16.mxu0 0
    %2251 = vmatpush2.bf16.msra.mxu0 0
    %2252 = vmatprep.subr.bf16.mxu0 0
    %2253 = vmatpush2.bf16.msra.mxu0 0
    %2254 = vmatprep.subr.bf16.mxu0 0
    %2255 = vmatpush2.bf16.msra.mxu0 0
    %2256 = vmatprep.mubr.bf16.mxu0 0
    %2257 = vmatmul.mubr.bf16.gmra.mxu0 %v2222
    %v2258 = vpop.f32.mrf.mxu0
    %v2259 = vadd.f32 0.0, %v2258
    %v2260 = vpop.f32.mrf.mxu0
    %v2261 = vpop.f32.mrf.mxu0
    %v2262 = vpop.f32.mrf.mxu0
    %2263 = vdwg.mxu0
    %v2265 = vrot.slane %v2259, 6
    %v2267 = vadd.f32 %v144, %v2265
    %v2268 = vxor.u32 %v2267, 2147483648
    %v2269 = vmul.f32 %v2268, 1.442695
    %v2270 = vpow.pop %v2269
    %v2271 = vadd.f32 %v2270, 1.0
    %v2272 = vrcp.pop %v2271
    %v2273 = vmul.f32 1.0, %v2272
    %v2274 = vtanh.pop %v2267
    %v2276 = vrot.slane %v2208, 7
    %v2278 = vmul.f32 %v2273, %v2276
    %2280 = vrot.lane.b32.xlu0 %v2274, 64
    %v2281 = vpop.permute.xlu0 %2280
    %v2283 = vmul.f32 %v2273, %v2281
    %2285 = vrot.lane.b32.xlu0 %v2283, 32
    %v2286 = vpop.permute.xlu0 %2285
    %v2288 = vadd.f32 %v2278, %v2286
    %v2289 = vtanh.pop %v2288
    %2291 = vrot.lane.b32.xlu0 %v2289, 64
    %v2292 = vpop.permute.xlu0 %2291
    %v2294 = vmul.f32 %v2273, %v2292
    %v2295 = vpack.c.bf16 %v2294, %v2294
    %v2297 = vrot.slane %v2295, 1
    %2298 = vrot.lane.b32.xlu0 %v2297, 32
    %v2299 = vpop.permute.xlu0 %2298
    %v2301 = vsel %vm163, %v2299, 0
    %2303 = vmatprep.subr.bf16.mxu0 0
    %2304 = vmatpush1.bf16.msra.mxu0 0
    %2305 = vmatprep.subr.bf16.mxu0 0
    %2306 = vmatpush1.bf16.msra.mxu0 0
    %2307 = vmatprep.subr.bf16.mxu0 0
    %2308 = vmatpush1.bf16.msra.mxu0 0
    %2309 = vmatprep.subr.bf16.mxu0 0
    %2310 = vmatpush1.bf16.msra.mxu0 0
    %2311 = vmatprep.subr.bf16.mxu0 0
    %2312 = vmatpush1.bf16.msra.mxu0 0
    %2313 = vmatprep.subr.bf16.mxu0 0
    %2314 = vmatpush1.bf16.msra.mxu0 0
    %2315 = vmatprep.subr.bf16.mxu0 0
    %2316 = vmatpush1.bf16.msra.mxu0 %v160
    %2317 = vmatprep.subr.bf16.mxu0 0
    %2318 = vmatpush1.bf16.msra.mxu0 %v159
    %2319 = vmatprep.subr.bf16.mxu0 0
    %2320 = vmatpush2.bf16.msra.mxu0 0
    %2321 = vmatprep.subr.bf16.mxu0 0
    %2322 = vmatpush2.bf16.msra.mxu0 0
    %2323 = vmatprep.subr.bf16.mxu0 0
    %2324 = vmatpush2.bf16.msra.mxu0 0
    %2325 = vmatprep.subr.bf16.mxu0 0
    %2326 = vmatpush2.bf16.msra.mxu0 0
    %2327 = vmatprep.subr.bf16.mxu0 0
    %2328 = vmatpush2.bf16.msra.mxu0 0
    %2329 = vmatprep.subr.bf16.mxu0 0
    %2330 = vmatpush2.bf16.msra.mxu0 0
    %2331 = vmatprep.subr.bf16.mxu0 0
    %2332 = vmatpush2.bf16.msra.mxu0 0
    %2333 = vmatprep.subr.bf16.mxu0 0
    %2334 = vmatpush2.bf16.msra.mxu0 0
    %2335 = vmatprep.mubr.bf16.mxu0 0
    %2336 = vmatmul.mubr.bf16.gmra.mxu0 %v2301
    %v2337 = vpop.f32.mrf.mxu0
    %v2338 = vadd.f32 0.0, %v2337
    %v2339 = vpop.f32.mrf.mxu0
    %v2340 = vpop.f32.mrf.mxu0
    %v2341 = vpop.f32.mrf.mxu0
    %2342 = vdwg.mxu0
    %v2344 = vrot.slane %v2338, 5
    %v2346 = vadd.f32 %v144, %v2344
    %v2347 = vxor.u32 %v2346, 2147483648
    %v2348 = vmul.f32 %v2347, 1.442695
    %v2349 = vpow.pop %v2348
    %v2350 = vadd.f32 %v2349, 1.0
    %v2351 = vrcp.pop %v2350
    %v2352 = vmul.f32 1.0, %v2351
    %v2353 = vtanh.pop %v2346
    %v2355 = vrot.slane %v2288, 7
    %v2357 = vmul.f32 %v2352, %v2355
    %2359 = vrot.lane.b32.xlu0 %v2353, 64
    %v2360 = vpop.permute.xlu0 %2359
    %v2362 = vmul.f32 %v2352, %v2360
    %2364 = vrot.lane.b32.xlu0 %v2362, 32
    %v2365 = vpop.permute.xlu0 %2364
    %v2367 = vadd.f32 %v2357, %v2365
    %v2368 = vtanh.pop %v2367
    %2370 = vrot.lane.b32.xlu0 %v2368, 64
    %v2371 = vpop.permute.xlu0 %2370
    %v2373 = vmul.f32 %v2352, %v2371
    %v2374 = vpack.c.bf16 %v2373, %v2373
    %v2376 = vshrl.u32 %v2374, 16
    %v2378 = vrot.slane %v2376, 1
    %2379 = vrot.lane.b32.xlu0 %v2378, 32
    %v2380 = vpop.permute.xlu0 %2379
    %v2382 = vsel %vm163, %v2380, 0
    %2384 = vmatprep.subr.bf16.mxu0 0
    %2385 = vmatpush1.bf16.msra.mxu0 0
    %2386 = vmatprep.subr.bf16.mxu0 0
    %2387 = vmatpush1.bf16.msra.mxu0 0
    %2388 = vmatprep.subr.bf16.mxu0 0
    %2389 = vmatpush1.bf16.msra.mxu0 0
    %2390 = vmatprep.subr.bf16.mxu0 0
    %2391 = vmatpush1.bf16.msra.mxu0 0
    %2392 = vmatprep.subr.bf16.mxu0 0
    %2393 = vmatpush1.bf16.msra.mxu0 0
    %2394 = vmatprep.subr.bf16.mxu0 0
    %2395 = vmatpush1.bf16.msra.mxu0 0
    %2396 = vmatprep.subr.bf16.mxu0 0
    %2397 = vmatpush1.bf16.msra.mxu0 %v160
    %2398 = vmatprep.subr.bf16.mxu0 0
    %2399 = vmatpush1.bf16.msra.mxu0 %v159
    %2400 = vmatprep.subr.bf16.mxu0 0
    %2401 = vmatpush2.bf16.msra.mxu0 0
    %2402 = vmatprep.subr.bf16.mxu0 0
    %2403 = vmatpush2.bf16.msra.mxu0 0
    %2404 = vmatprep.subr.bf16.mxu0 0
    %2405 = vmatpush2.bf16.msra.mxu0 0
    %2406 = vmatprep.subr.bf16.mxu0 0
    %2407 = vmatpush2.bf16.msra.mxu0 0
    %2408 = vmatprep.subr.bf16.mxu0 0
    %2409 = vmatpush2.bf16.msra.mxu0 0
    %2410 = vmatprep.subr.bf16.mxu0 0
    %2411 = vmatpush2.bf16.msra.mxu0 0
    %2412 = vmatprep.subr.bf16.mxu0 0
    %2413 = vmatpush2.bf16.msra.mxu0 0
    %2414 = vmatprep.subr.bf16.mxu0 0
    %2415 = vmatpush2.bf16.msra.mxu0 0
    %2416 = vmatprep.mubr.bf16.mxu0 0
    %2417 = vmatmul.mubr.bf16.gmra.mxu0 %v2382
    %v2418 = vpop.f32.mrf.mxu0
    %v2419 = vadd.f32 0.0, %v2418
    %v2420 = vpop.f32.mrf.mxu0
    %v2421 = vpop.f32.mrf.mxu0
    %v2422 = vpop.f32.mrf.mxu0
    %2423 = vdwg.mxu0
    %v2425 = vrot.slane %v2419, 4
    %v2427 = vadd.f32 %v144, %v2425
    %v2428 = vxor.u32 %v2427, 2147483648
    %v2429 = vmul.f32 %v2428, 1.442695
    %v2430 = vpow.pop %v2429
    %v2431 = vadd.f32 %v2430, 1.0
    %v2432 = vrcp.pop %v2431
    %v2433 = vmul.f32 1.0, %v2432
    %v2434 = vtanh.pop %v2427
    %v2436 = vrot.slane %v2367, 7
    %v2438 = vmul.f32 %v2433, %v2436
    %2440 = vrot.lane.b32.xlu0 %v2434, 64
    %v2441 = vpop.permute.xlu0 %2440
    %v2443 = vmul.f32 %v2433, %v2441
    %2445 = vrot.lane.b32.xlu0 %v2443, 32
    %v2446 = vpop.permute.xlu0 %2445
    %v2448 = vadd.f32 %v2438, %v2446
    %v2449 = vtanh.pop %v2448
    %2451 = vrot.lane.b32.xlu0 %v2449, 64
    %v2452 = vpop.permute.xlu0 %2451
    %v2454 = vmul.f32 %v2433, %v2452
    %v2455 = vpack.c.bf16 %v2454, %v2454
    %v2457 = vrot.slane %v2455, 2
    %2458 = vrot.lane.b32.xlu0 %v2457, 32
    %v2459 = vpop.permute.xlu0 %2458
    %v2461 = vsel %vm163, %v2459, 0
    %2463 = vmatprep.subr.bf16.mxu0 0
    %2464 = vmatpush1.bf16.msra.mxu0 0
    %2465 = vmatprep.subr.bf16.mxu0 0
    %2466 = vmatpush1.bf16.msra.mxu0 0
    %2467 = vmatprep.subr.bf16.mxu0 0
    %2468 = vmatpush1.bf16.msra.mxu0 0
    %2469 = vmatprep.subr.bf16.mxu0 0
    %2470 = vmatpush1.bf16.msra.mxu0 0
    %2471 = vmatprep.subr.bf16.mxu0 0
    %2472 = vmatpush1.bf16.msra.mxu0 0
    %2473 = vmatprep.subr.bf16.mxu0 0
    %2474 = vmatpush1.bf16.msra.mxu0 0
    %2475 = vmatprep.subr.bf16.mxu0 0
    %2476 = vmatpush1.bf16.msra.mxu0 %v160
    %2477 = vmatprep.subr.bf16.mxu0 0
    %2478 = vmatpush1.bf16.msra.mxu0 %v159
    %2479 = vmatprep.subr.bf16.mxu0 0
    %2480 = vmatpush2.bf16.msra.mxu0 0
    %2481 = vmatprep.subr.bf16.mxu0 0
    %2482 = vmatpush2.bf16.msra.mxu0 0
    %2483 = vmatprep.subr.bf16.mxu0 0
    %2484 = vmatpush2.bf16.msra.mxu0 0
    %2485 = vmatprep.subr.bf16.mxu0 0
    %2486 = vmatpush2.bf16.msra.mxu0 0
    %2487 = vmatprep.subr.bf16.mxu0 0
    %2488 = vmatpush2.bf16.msra.mxu0 0
    %2489 = vmatprep.subr.bf16.mxu0 0
    %2490 = vmatpush2.bf16.msra.mxu0 0
    %2491 = vmatprep.subr.bf16.mxu0 0
    %2492 = vmatpush2.bf16.msra.mxu0 0
    %2493 = vmatprep.subr.bf16.mxu0 0
    %2494 = vmatpush2.bf16.msra.mxu0 0
    %2495 = vmatprep.mubr.bf16.mxu0 0
    %2496 = vmatmul.mubr.bf16.gmra.mxu0 %v2461
    %v2497 = vpop.f32.mrf.mxu0
    %v2498 = vadd.f32 0.0, %v2497
    %v2499 = vpop.f32.mrf.mxu0
    %v2500 = vpop.f32.mrf.mxu0
    %v2501 = vpop.f32.mrf.mxu0
    %2502 = vdwg.mxu0
    %v2504 = vrot.slane %v2498, 3
    %v2506 = vadd.f32 %v144, %v2504
    %v2507 = vxor.u32 %v2506, 2147483648
    %v2508 = vmul.f32 %v2507, 1.442695
    %v2509 = vpow.pop %v2508
    %v2510 = vadd.f32 %v2509, 1.0
    %v2511 = vrcp.pop %v2510
    %v2512 = vmul.f32 1.0, %v2511
    %v2513 = vtanh.pop %v2506
    %v2515 = vrot.slane %v2448, 7
    %v2517 = vmul.f32 %v2512, %v2515
    %2519 = vrot.lane.b32.xlu0 %v2513, 64
    %v2520 = vpop.permute.xlu0 %2519
    %v2522 = vmul.f32 %v2512, %v2520
    %2524 = vrot.lane.b32.xlu0 %v2522, 32
    %v2525 = vpop.permute.xlu0 %2524
    %v2527 = vadd.f32 %v2517, %v2525
    %v2528 = vtanh.pop %v2527
    %2530 = vrot.lane.b32.xlu0 %v2528, 64
    %v2531 = vpop.permute.xlu0 %2530
    %v2533 = vmul.f32 %v2512, %v2531
    %v2534 = vpack.c.bf16 %v2533, %v2533
    %v2536 = vshrl.u32 %v2534, 16
    %v2538 = vrot.slane %v2536, 2
    %2539 = vrot.lane.b32.xlu0 %v2538, 32
    %v2540 = vpop.permute.xlu0 %2539
    %v2542 = vsel %vm163, %v2540, 0
    %2544 = vmatprep.subr.bf16.mxu0 0
    %2545 = vmatpush1.bf16.msra.mxu0 0
    %2546 = vmatprep.subr.bf16.mxu0 0
    %2547 = vmatpush1.bf16.msra.mxu0 0
    %2548 = vmatprep.subr.bf16.mxu0 0
    %2549 = vmatpush1.bf16.msra.mxu0 0
    %2550 = vmatprep.subr.bf16.mxu0 0
    %2551 = vmatpush1.bf16.msra.mxu0 0
    %2552 = vmatprep.subr.bf16.mxu0 0
    %2553 = vmatpush1.bf16.msra.mxu0 0
    %2554 = vmatprep.subr.bf16.mxu0 0
    %2555 = vmatpush1.bf16.msra.mxu0 0
    %2556 = vmatprep.subr.bf16.mxu0 0
    %2557 = vmatpush1.bf16.msra.mxu0 %v160
    %2558 = vmatprep.subr.bf16.mxu0 0
    %2559 = vmatpush1.bf16.msra.mxu0 %v159
    %2560 = vmatprep.subr.bf16.mxu0 0
    %2561 = vmatpush2.bf16.msra.mxu0 0
    %2562 = vmatprep.subr.bf16.mxu0 0
    %2563 = vmatpush2.bf16.msra.mxu0 0
    %2564 = vmatprep.subr.bf16.mxu0 0
    %2565 = vmatpush2.bf16.msra.mxu0 0
    %2566 = vmatprep.subr.bf16.mxu0 0
    %2567 = vmatpush2.bf16.msra.mxu0 0
    %2568 = vmatprep.subr.bf16.mxu0 0
    %2569 = vmatpush2.bf16.msra.mxu0 0
    %2570 = vmatprep.subr.bf16.mxu0 0
    %2571 = vmatpush2.bf16.msra.mxu0 0
    %2572 = vmatprep.subr.bf16.mxu0 0
    %2573 = vmatpush2.bf16.msra.mxu0 0
    %2574 = vmatprep.subr.bf16.mxu0 0
    %2575 = vmatpush2.bf16.msra.mxu0 0
    %2576 = vmatprep.mubr.bf16.mxu0 0
    %2577 = vmatmul.mubr.bf16.gmra.mxu0 %v2542
    %v2578 = vpop.f32.mrf.mxu0
    %v2579 = vadd.f32 0.0, %v2578
    %v2580 = vpop.f32.mrf.mxu0
    %v2581 = vpop.f32.mrf.mxu0
    %v2582 = vpop.f32.mrf.mxu0
    %2583 = vdwg.mxu0
    %v2585 = vrot.slane %v2579, 2
    %v2587 = vadd.f32 %v144, %v2585
    %v2588 = vxor.u32 %v2587, 2147483648
    %v2589 = vmul.f32 %v2588, 1.442695
    %v2590 = vpow.pop %v2589
    %v2591 = vadd.f32 %v2590, 1.0
    %v2592 = vrcp.pop %v2591
    %v2593 = vmul.f32 1.0, %v2592
    %v2594 = vtanh.pop %v2587
    %v2596 = vrot.slane %v2527, 7
    %v2598 = vmul.f32 %v2593, %v2596
    %2600 = vrot.lane.b32.xlu0 %v2594, 64
    %v2601 = vpop.permute.xlu0 %2600
    %v2603 = vmul.f32 %v2593, %v2601
    %2605 = vrot.lane.b32.xlu0 %v2603, 32
    %v2606 = vpop.permute.xlu0 %2605
    %v2608 = vadd.f32 %v2598, %v2606
    %v2609 = vtanh.pop %v2608
    %2611 = vrot.lane.b32.xlu0 %v2609, 64
    %v2612 = vpop.permute.xlu0 %2611
    %v2614 = vmul.f32 %v2593, %v2612
    %v2615 = vpack.c.bf16 %v2614, %v2614
    %v2617 = vrot.slane %v2615, 3
    %2618 = vrot.lane.b32.xlu0 %v2617, 32
    %v2619 = vpop.permute.xlu0 %2618
    %v2621 = vsel %vm163, %v2619, 0
    %2623 = vmatprep.subr.bf16.mxu0 0
    %2624 = vmatpush1.bf16.msra.mxu0 0
    %2625 = vmatprep.subr.bf16.mxu0 0
    %2626 = vmatpush1.bf16.msra.mxu0 0
    %2627 = vmatprep.subr.bf16.mxu0 0
    %2628 = vmatpush1.bf16.msra.mxu0 0
    %2629 = vmatprep.subr.bf16.mxu0 0
    %2630 = vmatpush1.bf16.msra.mxu0 0
    %2631 = vmatprep.subr.bf16.mxu0 0
    %2632 = vmatpush1.bf16.msra.mxu0 0
    %2633 = vmatprep.subr.bf16.mxu0 0
    %2634 = vmatpush1.bf16.msra.mxu0 0
    %2635 = vmatprep.subr.bf16.mxu0 0
    %2636 = vmatpush1.bf16.msra.mxu0 %v160
    %2637 = vmatprep.subr.bf16.mxu0 0
    %2638 = vmatpush1.bf16.msra.mxu0 %v159
    %2639 = vmatprep.subr.bf16.mxu0 0
    %2640 = vmatpush2.bf16.msra.mxu0 0
    %2641 = vmatprep.subr.bf16.mxu0 0
    %2642 = vmatpush2.bf16.msra.mxu0 0
    %2643 = vmatprep.subr.bf16.mxu0 0
    %2644 = vmatpush2.bf16.msra.mxu0 0
    %2645 = vmatprep.subr.bf16.mxu0 0
    %2646 = vmatpush2.bf16.msra.mxu0 0
    %2647 = vmatprep.subr.bf16.mxu0 0
    %2648 = vmatpush2.bf16.msra.mxu0 0
    %2649 = vmatprep.subr.bf16.mxu0 0
    %2650 = vmatpush2.bf16.msra.mxu0 0
    %2651 = vmatprep.subr.bf16.mxu0 0
    %2652 = vmatpush2.bf16.msra.mxu0 0
    %2653 = vmatprep.subr.bf16.mxu0 0
    %2654 = vmatpush2.bf16.msra.mxu0 0
    %2655 = vmatprep.mubr.bf16.mxu0 0
    %2656 = vmatmul.mubr.bf16.gmra.mxu0 %v2621
    %v2657 = vpop.f32.mrf.mxu0
    %v2658 = vadd.f32 0.0, %v2657
    %v2659 = vpop.f32.mrf.mxu0
    %v2660 = vpop.f32.mrf.mxu0
    %v2661 = vpop.f32.mrf.mxu0
    %2662 = vdwg.mxu0
    %v2664 = vrot.slane %v2658, 1
    %v2666 = vadd.f32 %v144, %v2664
    %v2667 = vxor.u32 %v2666, 2147483648
    %v2668 = vmul.f32 %v2667, 1.442695
    %v2669 = vpow.pop %v2668
    %v2670 = vadd.f32 %v2669, 1.0
    %v2671 = vrcp.pop %v2670
    %v2672 = vmul.f32 1.0, %v2671
    %v2673 = vtanh.pop %v2666
    %v2675 = vrot.slane %v2608, 7
    %v2677 = vmul.f32 %v2672, %v2675
    %2679 = vrot.lane.b32.xlu0 %v2673, 64
    %v2680 = vpop.permute.xlu0 %2679
    %v2682 = vmul.f32 %v2672, %v2680
    %2684 = vrot.lane.b32.xlu0 %v2682, 32
    %v2685 = vpop.permute.xlu0 %2684
    %v2687 = vadd.f32 %v2677, %v2685
    %v2688 = vtanh.pop %v2687
    %2690 = vrot.lane.b32.xlu0 %v2688, 64
    %v2691 = vpop.permute.xlu0 %2690
    %v2693 = vmul.f32 %v2672, %v2691
    %v2694 = vmul.f32 %v2693, %v2693
    %2696 = vrot.lane.b32.xlu0 %v2694, 32
    %v2697 = vpop.permute.xlu0 %2696
    %vm2699 = vcmask 261127
    %v2700 = vsel %vm2699, %v2697, 0.0
    %2701 = vadd.xlane.f32.xlu0 %v2700
    %v2702 = vpop.xlane.xlu0 %2701
    %v2703 = vrsqrt.pop %v2702
    %v2704 = vmul.f32 %v2702, %v2703
    %vm2705 = vcmp.eq.f32.partialorder %v2702, inf
    %v2706 = vsel %vm2705, %v2702, %v2704
    %vm2707 = vcmp.eq.f32.partialorder %v2702, 0.0
    %v2708 = vand.u32 %v2702, 2147483648
    %v2709 = vsel %vm2707, %v2708, %v2706
    %v2710 = vmax.f32 %v2709, 1e-12
    %v2711 = vrcp.pop %v2710
    %v2712 = vmul.f32 %v2693, %v2711
    %v2713 = vld [vmem:[%s4 + $0x38] sm:$0xf]
    %v2714 = vld [vmem:[%s4 + $0x3c] sm:$0xf]
    %v2715 = vld [vmem:[%s4 + $0x40] sm:$0xf]
    %v2716 = vld [vmem:[%s4 + $0x44] sm:$0xf]
    %v2717 = vld [vmem:[%s4 + $0x48] sm:$0x1]
    %v2718 = vunpack.c.l.bf16 %v2717
    %v2719 = vpack.c.bf16 %v2693, %v2693
    %v2721 = vshrl.u32 %v2719, 16
    %v2723 = vrot.slane %v2721, 3
    %2724 = vrot.lane.b32.xlu0 %v2723, 32
    %v2725 = vpop.permute.xlu0 %2724
    %v2730 = vunpack.c.l.b16 %v2713
    %v2731 = vunpack.c.l.b16 %v2714
    %v2732 = vunpack.c.l.b16 %v2715
    %v2733 = vunpack.c.l.b16 %v2716
    %v2734 = vpack.c.b16 %v2731, %v2730
    %v2735 = vpack.c.b16 %v2733, %v2732
    %v2739 = vsel %vm163, %v2725, 0
    %2741 = vmatprep.subr.bf16.mxu0 0
    %2742 = vmatpush1.bf16.msra.mxu0 0
    %2743 = vmatprep.subr.bf16.mxu0 0
    %2744 = vmatpush1.bf16.msra.mxu0 0
    %2745 = vmatprep.subr.bf16.mxu0 0
    %2746 = vmatpush1.bf16.msra.mxu0 0
    %2747 = vmatprep.subr.bf16.mxu0 0
    %2748 = vmatpush1.bf16.msra.mxu0 0
    %2749 = vmatprep.subr.bf16.mxu0 0
    %2750 = vmatpush1.bf16.msra.mxu0 0
    %2751 = vmatprep.subr.bf16.mxu0 0
    %2752 = vmatpush1.bf16.msra.mxu0 0
    %2753 = vmatprep.subr.bf16.mxu0 0
    %2754 = vmatpush1.bf16.msra.mxu0 %v2735
    %2755 = vmatprep.subr.bf16.mxu0 0
    %2756 = vmatpush1.bf16.msra.mxu0 %v2734
    %2757 = vmatprep.subr.bf16.mxu0 0
    %2758 = vmatpush2.bf16.msra.mxu0 0
    %2759 = vmatprep.subr.bf16.mxu0 0
    %2760 = vmatpush2.bf16.msra.mxu0 0
    %2761 = vmatprep.subr.bf16.mxu0 0
    %2762 = vmatpush2.bf16.msra.mxu0 0
    %2763 = vmatprep.subr.bf16.mxu0 0
    %2764 = vmatpush2.bf16.msra.mxu0 0
    %2765 = vmatprep.subr.bf16.mxu0 0
    %2766 = vmatpush2.bf16.msra.mxu0 0
    %2767 = vmatprep.subr.bf16.mxu0 0
    %2768 = vmatpush2.bf16.msra.mxu0 0
    %2769 = vmatprep.subr.bf16.mxu0 0
    %2770 = vmatpush2.bf16.msra.mxu0 0
    %2771 = vmatprep.subr.bf16.mxu0 0
    %2772 = vmatpush2.bf16.msra.mxu0 0
    %2773 = vmatprep.mubr.bf16.mxu0 0
    %2774 = vmatmul.mubr.bf16.gmra.mxu0 %v2739
    %v2775 = vpop.f32.mrf.mxu0
    %v2776 = vadd.f32 %v2718, %v2775
    %v2777 = vpop.f32.mrf.mxu0
    %v2778 = vpop.f32.mrf.mxu0
    %v2779 = vpop.f32.mrf.mxu0
    %2780 = vdwg.mxu0
    %vm2781 = vcmp.lt.s32.totalorder %v23, 3
    %v2782 = vsel %vm2781, %v2776, -1e+30
    %vm2783 = vcmask 253952
    %v2784 = vsel %vm2783, %v2782, -inf
    %2785 = vmax.xlane.f32.xlu0 %v2784
    %v2786 = vpop.xlane.xlu0 %2785
    %v2787 = vsub.f32 %v2782, %v2786
    %v2788 = vmul.f32 %v2787, 1.442695
    %v2789 = vpow.pop %v2788
    %v2790 = vsel %vm2783, %v2789, 0.0
    %2791 = vadd.xlane.f32.xlu0 %v2790
    %v2792 = vpop.xlane.xlu0 %2791
    %v2793 = vrcp.pop %v2792
    %v2794 = vmul.f32 %v2789, %v2793
    %v2795 = vld [vmem:[%s1] sm:$0xff]
    %v2796 = vld [vmem:[%s1 + $0x8] sm:$0xff]
    %2797 = vset.pattern.permute.xlu0 0
    %2798 = vperm.xlu0 %2797, %v2795
    %v2799 = vpop.permute.xlu0 %2798
    %2800 = vset.pattern.permute.xlu0 0
    %2801 = vperm.xlu0 %2800, %v2796
    %v2802 = vpop.permute.xlu0 %2801
    %vm2803 = vcmp.eq.s32.totalorder %v23, %v2799
    %vm2804 = vcmp.eq.s32.totalorder %v23, %v2802
    %2805 = vset.pattern.permute.xlu0 1
    %2806 = vperm.xlu0 %2805, %v2795
    %v2807 = vpop.permute.xlu0 %2806
    %2808 = vset.pattern.permute.xlu0 1
    %2809 = vperm.xlu0 %2808, %v2796
    %v2810 = vpop.permute.xlu0 %2809
    %vm2811 = vcmp.eq.s32.totalorder %v23, %v2807
    %vm2812 = vcmp.eq.s32.totalorder %v23, %v2810
    %vm2813 = vmor %vm2803, %vm2811
    %vm2814 = vmor %vm2804, %vm2812
    %2815 = vset.pattern.permute.xlu0 2
    %2816 = vperm.xlu0 %2815, %v2795
    %v2817 = vpop.permute.xlu0 %2816
    %2818 = vset.pattern.permute.xlu0 2
    %2819 = vperm.xlu0 %2818, %v2796
    %v2820 = vpop.permute.xlu0 %2819
    %vm2821 = vcmp.eq.s32.totalorder %v23, %v2817
    %vm2822 = vcmp.eq.s32.totalorder %v23, %v2820
    %vm2823 = vmor %vm2813, %vm2821
    %vm2824 = vmor %vm2814, %vm2822
    %v2825 = vsel %vm2823, 1, 0
    %v2826 = vsel %vm2824, 1, 0
    %v2827 = vcvt.s32.f32 %v2825
    %v2828 = vcvt.s32.f32 %v2826
    %v2829 = vpack.c.bf16 %v2828, %v2827
    %v2830 = vld [vmem:[%s4] sm:$0xf]
    %v2831 = vld [vmem:[%s4 + $0x4] sm:$0xf]
    %v2832 = vld [vmem:[%s4 + $0x8] sm:$0xf]
    %v2833 = vld [vmem:[%s4 + $0xc] sm:$0xf]
    %v2834 = vld [vmem:[%s4 + $0x10] sm:$0xf]
    %v2835 = vld [vmem:[%s4 + $0x14] sm:$0xf]
    %v2842 = vunpack.c.l.b16 %v2830
    %v2843 = vunpack.c.l.b16 %v2831
    %v2844 = vunpack.c.l.b16 %v2832
    %v2845 = vunpack.c.l.b16 %v2833
    %v2846 = vunpack.c.l.b16 %v2834
    %v2847 = vunpack.c.l.b16 %v2835
    %v2848 = vpack.c.b16 %v2843, %v2842
    %v2849 = vpack.c.b16 %v2845, %v2844
    %v2850 = vpack.c.b16 %v2847, %v2846
    %vm2854 = vcmask 392192
    %v2856 = vsel %vm2854, %v2829, 0
    %2858 = vmatprep.subr.bf16.mxu0 0
    %2859 = vmatpush1.bf16.msra.mxu0 0
    %2860 = vmatprep.subr.bf16.mxu0 0
    %2861 = vmatpush1.bf16.msra.mxu0 0
    %2862 = vmatprep.subr.bf16.mxu0 0
    %2863 = vmatpush1.bf16.msra.mxu0 0
    %2864 = vmatprep.subr.bf16.mxu0 0
    %2865 = vmatpush1.bf16.msra.mxu0 0
    %2866 = vmatprep.subr.bf16.mxu0 0
    %2867 = vmatpush1.bf16.msra.mxu0 0
    %2868 = vmatprep.subr.bf16.mxu0 0
    %2869 = vmatpush1.bf16.msra.mxu0 %v2850
    %2870 = vmatprep.subr.bf16.mxu0 0
    %2871 = vmatpush1.bf16.msra.mxu0 %v2849
    %2872 = vmatprep.subr.bf16.mxu0 0
    %2873 = vmatpush1.bf16.msra.mxu0 %v2848
    %2874 = vmatprep.subr.bf16.mxu0 0
    %2875 = vmatpush2.bf16.msra.mxu0 0
    %2876 = vmatprep.subr.bf16.mxu0 0
    %2877 = vmatpush2.bf16.msra.mxu0 0
    %2878 = vmatprep.subr.bf16.mxu0 0
    %2879 = vmatpush2.bf16.msra.mxu0 0
    %2880 = vmatprep.subr.bf16.mxu0 0
    %2881 = vmatpush2.bf16.msra.mxu0 0
    %2882 = vmatprep.subr.bf16.mxu0 0
    %2883 = vmatpush2.bf16.msra.mxu0 0
    %2884 = vmatprep.subr.bf16.mxu0 0
    %2885 = vmatpush2.bf16.msra.mxu0 0
    %2886 = vmatprep.subr.bf16.mxu0 0
    %2887 = vmatpush2.bf16.msra.mxu0 0
    %2888 = vmatprep.subr.bf16.mxu0 0
    %2889 = vmatpush2.bf16.msra.mxu0 0
    %2890 = vmatprep.mubr.bf16.mxu0 0
    %2891 = vmatmul.mubr.bf16.gmra.mxu0 %v2856
    %v2892 = vpop.f32.mrf.mxu0
    %v2893 = vadd.f32 0.0, %v2892
    %v2894 = vpop.f32.mrf.mxu0
    %v2895 = vpop.f32.mrf.mxu0
    %v2896 = vadd.f32 0.0, %v2895
    %v2897 = vpop.f32.mrf.mxu0
    %2898 = vdwg.mxu0
    %v2899 = vsel %vm163, %v2893, 0.0
    %v2900 = vsel %vm163, %v2896, 0.0
    %v2901 = vadd.f32 %v2899, %v2900
    %v2902 = vrot.slane %v2901, 4
    %v2903 = vadd.f32 %v2901, %v2902
    %v2904 = vrot.slane %v2903, 2
    %v2905 = vadd.f32 %v2903, %v2904
    %v2906 = vrot.slane %v2905, 1
    %v2907 = vadd.f32 %v2905, %v2906
    %v2908 = vrcp.pop 16.0
    %v2909 = vmul.f32 %v2907, %v2908
    %v2910 = vsub.f32 %v2893, %v2909
    %v2911 = vsub.f32 %v2896, %v2909
    %v2912 = vmul.f32 %v2910, %v2910
    %v2913 = vmul.f32 %v2911, %v2911
    %v2914 = vsel %vm163, %v2912, 0.0
    %v2915 = vsel %vm163, %v2913, 0.0
    %v2916 = vadd.f32 %v2914, %v2915
    %v2917 = vrot.slane %v2916, 4
    %v2918 = vadd.f32 %v2916, %v2917
    %v2919 = vrot.slane %v2918, 2
    %v2920 = vadd.f32 %v2918, %v2919
    %v2921 = vrot.slane %v2920, 1
    %v2922 = vadd.f32 %v2920, %v2921
    %v2923 = vmul.f32 %v2922, %v2908
    %v2924 = vadd.f32 %v2923, 1e-05
    %v2925 = vrsqrt.pop %v2924
    %v2926 = vmul.f32 %v2910, %v2925
    %v2927 = vmul.f32 %v2911, %v2925
    %v2928 = vlaneseq
    %v2929 = vshrl.u32 %v2928, 7
    %v2930 = vadd.s32 %v2929, 8
    %v2931 = vld [vmem:[%s2] sm:$0xff]
    %v2932 = vld [vmem:[%s2 + $0x8] sm:$0xff]
    %vm2933 = vcmp.eq.s32.totalorder %v2929, %v23
    %vm2934 = vcmp.eq.s32.totalorder %v2930, %v23
    %v2935 = vsel %vm2933, 1, 0
    %v2936 = vsel %vm2934, 1, 0
    %v2937 = vcvt.s32.f32 %v2935
    %v2938 = vcvt.s32.f32 %v2936
    %v2939 = vadd.f32 %v2931, %v2937
    %v2940 = vadd.f32 %v2932, %v2938
    %vm2941 = vcmask 130048
    %v2942 = vsel %vm2941, %v2939, 0.0
    %2943 = vadd.xlane.f32.xlu0 %v2942
    %v2944 = vpop.xlane.xlu0 %2943
    %v2945 = vsel %vm2941, %v2940, 0.0
    %2946 = vadd.xlane.f32.xlu0 %v2945
    %v2947 = vpop.xlane.xlu0 %2946
    %v2948 = vrsqrt.pop %v2944
    %v2949 = vrsqrt.pop %v2947
    %v2950 = vpack.c.bf16 %v2940, %v2939
    %v2951 = vld [vmem:[%s4 + $0x18] sm:$0xf]
    %v2952 = vld [vmem:[%s4 + $0x1c] sm:$0xf]
    %v2953 = vld [vmem:[%s4 + $0x20] sm:$0xf]
    %v2954 = vld [vmem:[%s4 + $0x24] sm:$0xf]
    %v2955 = vld [vmem:[%s4 + $0x28] sm:$0xf]
    %v2956 = vld [vmem:[%s4 + $0x2c] sm:$0xf]
    %v2957 = vld [vmem:[%s4 + $0x30] sm:$0xf]
    %v2958 = vld [vmem:[%s4 + $0x34] sm:$0xf]
    %v2959 = vmul.f32 %v2948, %v2926
    %v2960 = vmul.f32 %v2949, %v2927
    %v2961 = vpack.c.bf16 %v2960, %v2959
    %v2963 = vsel %vm2941, %v2950, 0
    %2965 = vmatprep.subr.bf16.mxu0 0
    %2966 = vmatpush1.bf16.msra.mxu0 0
    %2967 = vmatprep.subr.bf16.mxu0 0
    %2968 = vmatpush1.bf16.msra.mxu0 0
    %2969 = vmatprep.subr.bf16.mxu0 0
    %2970 = vmatpush1.bf16.msra.mxu0 0
    %2971 = vmatprep.subr.bf16.mxu0 0
    %2972 = vmatpush1.bf16.msra.mxu0 0
    %2973 = vmatprep.subr.bf16.mxu0 0
    %2974 = vmatpush1.bf16.msra.mxu0 0
    %2975 = vmatprep.subr.bf16.mxu0 0
    %2976 = vmatpush1.bf16.msra.mxu0 0
    %2977 = vmatprep.subr.bf16.mxu0 0
    %2978 = vmatpush1.bf16.msra.mxu0 0
    %2979 = vmatprep.subr.bf16.mxu0 0
    %2980 = vmatpush1.bf16.msra.mxu0 %v2961
    %2981 = vmatprep.subr.bf16.mxu0 0
    %2982 = vmatpush2.bf16.msra.mxu0 0
    %2983 = vmatprep.subr.bf16.mxu0 0
    %2984 = vmatpush2.bf16.msra.mxu0 0
    %2985 = vmatprep.subr.bf16.mxu0 0
    %2986 = vmatpush2.bf16.msra.mxu0 0
    %2987 = vmatprep.subr.bf16.mxu0 0
    %2988 = vmatpush2.bf16.msra.mxu0 0
    %2989 = vmatprep.subr.bf16.mxu0 0
    %2990 = vmatpush2.bf16.msra.mxu0 0
    %2991 = vmatprep.subr.bf16.mxu0 0
    %2992 = vmatpush2.bf16.msra.mxu0 0
    %2993 = vmatprep.subr.bf16.mxu0 0
    %2994 = vmatpush2.bf16.msra.mxu0 0
    %2995 = vmatprep.subr.bf16.mxu0 0
    %2996 = vmatpush2.bf16.msra.mxu0 0
    %2997 = vmatprep.mubr.bf16.mxu0 0
    %2998 = vmatmul.mubr.bf16.gmra.mxu0 %v2963
    %v2999 = vpop.f32.mrf.mxu0
    %v3000 = vadd.f32 0.0, %v2999
    %v3001 = vpop.f32.mrf.mxu0
    %v3002 = vpop.f32.mrf.mxu0
    %v3003 = vadd.f32 0.0, %v3002
    %v3004 = vpop.f32.mrf.mxu0
    %3005 = vdwg.mxu0
    %v3006 = vmul.f32 %v2948, %v3000
    %v3007 = vmul.f32 %v2949, %v3003
    %v3008 = vpack.c.bf16 %v3007, %v3006
    %v3013 = vunpack.c.l.b16 %v2951
    %v3014 = vunpack.c.l.b16 %v2952
    %v3015 = vunpack.c.l.b16 %v2953
    %v3016 = vunpack.c.l.b16 %v2954
    %v3017 = vpack.c.b16 %v3014, %v3013
    %v3018 = vpack.c.b16 %v3016, %v3015
    %v3022 = vsel %vm163, %v3008, 0
    %3024 = vmatprep.subr.bf16.mxu0 0
    %3025 = vmatpush1.bf16.msra.mxu0 0
    %3026 = vmatprep.subr.bf16.mxu0 0
    %3027 = vmatpush1.bf16.msra.mxu0 0
    %3028 = vmatprep.subr.bf16.mxu0 0
    %3029 = vmatpush1.bf16.msra.mxu0 0
    %3030 = vmatprep.subr.bf16.mxu0 0
    %3031 = vmatpush1.bf16.msra.mxu0 0
    %3032 = vmatprep.subr.bf16.mxu0 0
    %3033 = vmatpush1.bf16.msra.mxu0 0
    %3034 = vmatprep.subr.bf16.mxu0 0
    %3035 = vmatpush1.bf16.msra.mxu0 0
    %3036 = vmatprep.subr.bf16.mxu0 0
    %3037 = vmatpush1.bf16.msra.mxu0 %v3018
    %3038 = vmatprep.subr.bf16.mxu0 0
    %3039 = vmatpush1.bf16.msra.mxu0 %v3017
    %3040 = vmatprep.subr.bf16.mxu0 0
    %3041 = vmatpush2.bf16.msra.mxu0 0
    %3042 = vmatprep.subr.bf16.mxu0 0
    %3043 = vmatpush2.bf16.msra.mxu0 0
    %3044 = vmatprep.subr.bf16.mxu0 0
    %3045 = vmatpush2.bf16.msra.mxu0 0
    %3046 = vmatprep.subr.bf16.mxu0 0
    %3047 = vmatpush2.bf16.msra.mxu0 0
    %3048 = vmatprep.subr.bf16.mxu0 0
    %3049 = vmatpush2.bf16.msra.mxu0 0
    %3050 = vmatprep.subr.bf16.mxu0 0
    %3051 = vmatpush2.bf16.msra.mxu0 0
    %3052 = vmatprep.subr.bf16.mxu0 0
    %3053 = vmatpush2.bf16.msra.mxu0 0
    %3054 = vmatprep.subr.bf16.mxu0 0
    %3055 = vmatpush2.bf16.msra.mxu0 0
    %3056 = vmatprep.mubr.bf16.mxu0 0
    %3057 = vmatmul.mubr.bf16.gmra.mxu0 %v3022
    %v3058 = vpop.f32.mrf.mxu0
    %v3059 = vadd.f32 0.0, %v3058
    %v3060 = vpop.f32.mrf.mxu0
    %v3061 = vpop.f32.mrf.mxu0
    %v3062 = vadd.f32 0.0, %v3061
    %v3063 = vpop.f32.mrf.mxu0
    %3064 = vdwg.mxu0
    %v3065 = vmax.f32 %v3059, 0.0
    %v3066 = vmax.f32 %v3062, 0.0
    %v3067 = vmul.f32 %v2948, %v3065
    %v3068 = vmul.f32 %v2949, %v3066
    %v3069 = vpack.c.bf16 %v3068, %v3067
    %3070 = vmatprep.subr.bf16.mxu0 0
    %3071 = vmatpush1.bf16.msra.mxu0 0
    %3072 = vmatprep.subr.bf16.mxu0 0
    %3073 = vmatpush1.bf16.msra.mxu0 0
    %3074 = vmatprep.subr.bf16.mxu0 0
    %3075 = vmatpush1.bf16.msra.mxu0 0
    %3076 = vmatprep.subr.bf16.mxu0 0
    %3077 = vmatpush1.bf16.msra.mxu0 0
    %3078 = vmatprep.subr.bf16.mxu0 0
    %3079 = vmatpush1.bf16.msra.mxu0 0
    %3080 = vmatprep.subr.bf16.mxu0 0
    %3081 = vmatpush1.bf16.msra.mxu0 0
    %3082 = vmatprep.subr.bf16.mxu0 0
    %3083 = vmatpush1.bf16.msra.mxu0 0
    %3084 = vmatprep.subr.bf16.mxu0 0
    %3085 = vmatpush1.bf16.msra.mxu0 %v3069
    %3086 = vmatprep.subr.bf16.mxu0 0
    %3087 = vmatpush2.bf16.msra.mxu0 0
    %3088 = vmatprep.subr.bf16.mxu0 0
    %3089 = vmatpush2.bf16.msra.mxu0 0
    %3090 = vmatprep.subr.bf16.mxu0 0
    %3091 = vmatpush2.bf16.msra.mxu0 0
    %3092 = vmatprep.subr.bf16.mxu0 0
    %3093 = vmatpush2.bf16.msra.mxu0 0
    %3094 = vmatprep.subr.bf16.mxu0 0
    %3095 = vmatpush2.bf16.msra.mxu0 0
    %3096 = vmatprep.subr.bf16.mxu0 0
    %3097 = vmatpush2.bf16.msra.mxu0 0
    %3098 = vmatprep.subr.bf16.mxu0 0
    %3099 = vmatpush2.bf16.msra.mxu0 0
    %3100 = vmatprep.subr.bf16.mxu0 0
    %3101 = vmatpush2.bf16.msra.mxu0 0
    %3102 = vmatprep.mubr.bf16.mxu0 0
    %3103 = vmatmul.mubr.bf16.gmra.mxu0 %v2963
    %v3104 = vpop.f32.mrf.mxu0
    %v3105 = vadd.f32 0.0, %v3104
    %v3106 = vpop.f32.mrf.mxu0
    %v3107 = vpop.f32.mrf.mxu0
    %v3108 = vadd.f32 0.0, %v3107
    %v3109 = vpop.f32.mrf.mxu0
    %3110 = vdwg.mxu0
    %v3111 = vmul.f32 %v2948, %v3105
    %v3112 = vmul.f32 %v2949, %v3108
    %v3113 = vpack.c.bf16 %v3112, %v3111
    %v3118 = vunpack.c.l.b16 %v2955
    %v3119 = vunpack.c.l.b16 %v2956
    %v3120 = vunpack.c.l.b16 %v2957
    %v3121 = vunpack.c.l.b16 %v2958
    %v3122 = vpack.c.b16 %v3119, %v3118
    %v3123 = vpack.c.b16 %v3121, %v3120
    %v3127 = vsel %vm163, %v3113, 0
    %3129 = vmatprep.subr.bf16.mxu0 0
    %3130 = vmatpush1.bf16.msra.mxu0 0
    %3131 = vmatprep.subr.bf16.mxu0 0
    %3132 = vmatpush1.bf16.msra.mxu0 0
    %3133 = vmatprep.subr.bf16.mxu0 0
    %3134 = vmatpush1.bf16.msra.mxu0 0
    %3135 = vmatprep.subr.bf16.mxu0 0
    %3136 = vmatpush1.bf16.msra.mxu0 0
    %3137 = vmatprep.subr.bf16.mxu0 0
    %3138 = vmatpush1.bf16.msra.mxu0 0
    %3139 = vmatprep.subr.bf16.mxu0 0
    %3140 = vmatpush1.bf16.msra.mxu0 0
    %3141 = vmatprep.subr.bf16.mxu0 0
    %3142 = vmatpush1.bf16.msra.mxu0 %v3123
    %3143 = vmatprep.subr.bf16.mxu0 0
    %3144 = vmatpush1.bf16.msra.mxu0 %v3122
    %3145 = vmatprep.subr.bf16.mxu0 0
    %3146 = vmatpush2.bf16.msra.mxu0 0
    %3147 = vmatprep.subr.bf16.mxu0 0
    %3148 = vmatpush2.bf16.msra.mxu0 0
    %3149 = vmatprep.subr.bf16.mxu0 0
    %3150 = vmatpush2.bf16.msra.mxu0 0
    %3151 = vmatprep.subr.bf16.mxu0 0
    %3152 = vmatpush2.bf16.msra.mxu0 0
    %3153 = vmatprep.subr.bf16.mxu0 0
    %3154 = vmatpush2.bf16.msra.mxu0 0
    %3155 = vmatprep.subr.bf16.mxu0 0
    %3156 = vmatpush2.bf16.msra.mxu0 0
    %3157 = vmatprep.subr.bf16.mxu0 0
    %3158 = vmatpush2.bf16.msra.mxu0 0
    %3159 = vmatprep.subr.bf16.mxu0 0
    %3160 = vmatpush2.bf16.msra.mxu0 0
    %3161 = vmatprep.mubr.bf16.mxu0 0
    %3162 = vmatmul.mubr.bf16.gmra.mxu0 %v3127
    %v3163 = vpop.f32.mrf.mxu0
    %v3164 = vadd.f32 0.0, %v3163
    %v3165 = vpop.f32.mrf.mxu0
    %v3166 = vpop.f32.mrf.mxu0
    %v3167 = vadd.f32 0.0, %v3166
    %v3168 = vpop.f32.mrf.mxu0
    %3169 = vdwg.mxu0
    %v3170 = vmul.f32 %v3164, %v3164
    %v3171 = vmul.f32 %v3167, %v3167
    %v3172 = vsel %vm163, %v3170, 0.0
    %3173 = vadd.xlane.f32.xlu0 %v3172
    %v3174 = vpop.xlane.xlu0 %3173
    %v3175 = vsel %vm163, %v3171, 0.0
    %3176 = vadd.xlane.f32.xlu0 %v3175
    %v3177 = vpop.xlane.xlu0 %3176
    %v3178 = vrsqrt.pop %v3174
    %v3179 = vmul.f32 %v3174, %v3178
    %vm3180 = vcmp.eq.f32.partialorder %v3174, inf
    %v3181 = vsel %vm3180, %v3174, %v3179
    %vm3182 = vcmp.eq.f32.partialorder %v3174, 0.0
    %v3183 = vand.u32 %v3174, 2147483648
    %v3184 = vsel %vm3182, %v3183, %v3181
    %v3185 = vrsqrt.pop %v3177
    %v3186 = vmul.f32 %v3177, %v3185
    %vm3187 = vcmp.eq.f32.partialorder %v3177, inf
    %v3188 = vsel %vm3187, %v3177, %v3186
    %vm3189 = vcmp.eq.f32.partialorder %v3177, 0.0
    %v3190 = vand.u32 %v3177, 2147483648
    %v3191 = vsel %vm3189, %v3190, %v3188
    %v3192 = vmax.f32 %v3184, 1e-12
    %v3193 = vmax.f32 %v3191, 1e-12
    %v3194 = vrcp.pop %v3192
    %v3195 = vmul.f32 %v3164, %v3194
    %v3196 = vrcp.pop %v3193
    %v3197 = vmul.f32 %v3167, %v3196
    %v3198 = vsel %vm163, %v3195, 0.0
    %v3199 = vsel %vm163, %v3197, 0.0
    %3201 = vrot.lane.b32.xlu0 %v2712, 32
    %v3202 = vpop.permute.xlu0 %3201
    %v3205 = vrot.slane %v2794, 1
    %3206 = vrot.lane.b32.xlu0 %v3205, 32
    %v3207 = vpop.permute.xlu0 %3206
    %v3209 = vsel %vm163, %v3202, %v3207
    %vm3210 = vcmask 523264
    %v3211 = vsel %vm3210, %v3209, 0.0
    %v3213 = vrot.slane %v3211, 7
    %vm3215 = vcmask 1040384
    %v3216 = vsel %vm3215, %v3213, 0.0
    %3217 = vst [vmem:[#allocation2] sm:$0xff] %v3198
    %3218 = vst [vmem:[#allocation2 + $0x8] sm:$0xff] %v3199
    %3219 = vst [vmem:[#allocation2 + $0x10] sm:$0xff] %v3216
    // Predicated region
    $region22: #{tpu_custom_call.1} parent=1 // pred_check
      _
    $region23: #{tpu_custom_call.1} parent=1 // pred_check_branch
      %3221 = sbr.rel (0) target = $region25
    $region24: #{tpu_custom_call.1} parent=1 // pred_region
      %s3223 = ssub.s32 384, 384
      %3224 = vsyncadd [#allocation3], %s3223
      %s3225 = sshll.u32 [#allocation2], 4
      %s3226 = int_to_ptr.vmem [resolvable:$true] %s3225
      %3231 = dma.vmem_to_hbm [thread:$0]  %s3226, 384, %s5, [#allocation3], 128, 128, 8
    $region25: #{tpu_custom_call.1} parent=1 // pred_fallthru
      _
    // Predicated region
    $region26: #{tpu_custom_call.1} parent=1 // pred_check
      _
    $region27: #{tpu_custom_call.1} parent=1 // pred_check_branch
      %3233 = sbr.rel (0) target = $region29
    $region28: #{tpu_custom_call.1} parent=1 // pred_region
      %3234 = dma.done [#allocation3], 384
    $region29: #{tpu_custom_call.1} parent=1 // pred_fallthru
      _
    %3235 = vsyncpa [#allocation3], 1

</llo_original>
